<compile_context>
chip_gen: v5e
topology: v5e:2x2
jax: 0.10.0
libtpu: 0.0.40
codegen_flags: <defaults>
</compile_context>

<pallas_src>
import math

import jax
import jax.numpy as jnp
from jax.experimental import pallas as pl
from jax.experimental.pallas import tpu as pltpu

DIM = 32
NUM_HEADS = 4
HEAD_DIM = DIM // NUM_HEADS
LN_EPS = 1e-5


def _layernorm(x, gamma, beta):
    mean = jnp.mean(x, axis=-1, keepdims=True)
    var = jnp.mean((x - mean) ** 2, axis=-1, keepdims=True)
    return (x - mean) * jax.lax.rsqrt(var + LN_EPS) * gamma + beta


def self_attention_kernel(x_ref, mask_ref, wpack_ref, w2_ref, bpack_ref,
                          y_ref, w_ref):
    TB, L, D = x_ref.shape
    H = NUM_HEADS
    HD = D // H

    xf = x_ref[...].reshape(TB * L, D)          # fold batch into matmul rows

    # ---- packed parameters (static lane slices; layout set host-side) ----
    w_qkv = wpack_ref[:, :3 * D]                # (D, 3D); 1/sqrt(HD) folded into q cols
    w_out = wpack_ref[:, 3 * D:4 * D]           # (D, D)
    w1 = wpack_ref[:, 4 * D:8 * D]              # (D, 4D)

    b_qkv = bpack_ref[0:1, :3 * D]              # (1, 3D)
    b_out = bpack_ref[0:1, 3 * D:4 * D]         # (1, D)
    b1 = bpack_ref[1:2, :]                      # (1, 4D)
    b2 = bpack_ref[2:3, :D]                     # (1, D)
    ln1_g = bpack_ref[2:3, D:2 * D]
    ln1_b = bpack_ref[2:3, 2 * D:3 * D]
    ln2_g = bpack_ref[2:3, 3 * D:4 * D]
    ln2_b = bpack_ref[3:4, :D]

    # ---- fused QKV projection: one (TB*L, D) @ (D, 3D) MXU matmul ----
    qkv = jnp.dot(xf, w_qkv, preferred_element_type=jnp.float32) + b_qkv

    mask = jnp.broadcast_to(mask_ref[...], (TB, L, L))   # hoisted: one broadcast

    o_heads = []
    w_sum = jnp.zeros((TB, L, L), jnp.float32)
    for h in range(H):                          # static, tiny head loop
        q = qkv[:, h * HD:(h + 1) * HD].reshape(TB, L, HD)
        k = qkv[:, D + h * HD:D + (h + 1) * HD].reshape(TB, L, HD)
        v = qkv[:, 2 * D + h * HD:2 * D + (h + 1) * HD].reshape(TB, L, HD)

        s = jnp.einsum("bqd,bkd->bqk", q, k,
                       preferred_element_type=jnp.float32) + mask
        s = s - jnp.max(s, axis=-1, keepdims=True)
        p = jnp.exp(s)
        # softmax divide -> EUP reciprocal (frees VALU slots)
        p = p * pl.reciprocal(jnp.sum(p, axis=-1, keepdims=True), approx=True)
        w_sum = w_sum + p
        o_heads.append(jnp.einsum("bqk,bkd->bqd", p, v,
                                  preferred_element_type=jnp.float32))

    # heads land in adjacent lane columns (cheap lane concat) -> one out-proj matmul
    o = jnp.concatenate(o_heads, axis=-1).reshape(TB * L, D)
    attn = jnp.dot(o, w_out, preferred_element_type=jnp.float32) + b_out

    # TODO(synk): attn dropout, drop_mha and drop_fcn are eval-mode identity.
    h1 = _layernorm(xf + attn, ln1_g, ln1_b)

    f = jnp.dot(h1, w1, preferred_element_type=jnp.float32) + b1
    f = jnp.maximum(f, 0.0)
    f = jnp.dot(f, w2_ref[...], preferred_element_type=jnp.float32) + b2
    h2 = _layernorm(h1 + f, ln2_g, ln2_b)

    # ---- lane-dense outputs: y rows are L*D (=256) lanes, w rows are L*L lanes ----
    h2v = h2.reshape(TB, L, D)
    y_ref[...] = jnp.concatenate([h2v[:, t, :] for t in range(L)], axis=-1)
    wv = w_sum * (1.0 / H)
    w_ref[...] = jnp.concatenate([wv[:, t, :] for t in range(L)], axis=-1)


def self_attention_forward(x, x_mask, params):
    """params are in PyTorch layout (see reference_forward). Weight re-layout
    (transpose / QKV fusion / scale folding / parameter packing) happens
    host-side, once, so the kernel runs pure x @ W matmuls on 5 operands."""
    B, L, D = x.shape
    HD = HEAD_DIM
    (in_w, in_b, out_w, out_b, fc1_w, fc1_b, fc2_w, fc2_b,
     ln1_g, ln1_b, ln2_g, ln2_b) = params

    # ---- host-side parameter packing (grid-invariant, done once) ----
    scale = 1.0 / math.sqrt(HD)
    w_q = in_w[0 * D:1 * D].T * scale           # scale folded into W_q / b_q
    w_k = in_w[1 * D:2 * D].T
    w_v = in_w[2 * D:3 * D].T
    # [W_qkv | W_out | W1] all contract over D rows -> one packed (D, 8D) operand.
    wpack = jnp.concatenate([w_q, w_k, w_v, out_w.T, fc1_w.T], axis=1)
    w2 = fc2_w.T                                # (4D, D)

    b_qkv = jnp.concatenate([in_b[0, :D] * scale, in_b[0, D:2 * D], in_b[0, 2 * D:]])
    bpack = jnp.stack([
        jnp.concatenate([b_qkv, out_b[0]]),                               # (4D,)
        fc1_b[0],                                                         # (4D,)
        jnp.concatenate([fc2_b[0], ln1_g[0], ln1_b[0], ln2_g[0]]),        # (4D,)
        jnp.concatenate([ln2_b[0], jnp.zeros((3 * D,), jnp.float32)]),    # (4D,)
    ])                                                                    # (4, 4D)

    # ---- grid: single step unless per-step work clearly exceeds the ~0.35us
    # step overhead.  v5e/v6e have 1 TensorCore (splitting is pure overhead);
    # on v7x (2 TCs) only split once there are >= 256 rows per step. ----
    if B * L >= 512:
        nb = 2
        TB = pl.cdiv(B, nb)
        TB = ((TB + 7) // 8) * 8                # keep output sublane dim 8-aligned
    else:
        nb = 1
        TB = B
    B_pad = nb * TB
    if B_pad != B:
        x = jnp.pad(x, ((0, B_pad - B), (0, 0), (0, 0)))

    in_specs = [
        pl.BlockSpec((TB, L, D), lambda b: (b, 0, 0)),   # x block
        pl.BlockSpec(x_mask.shape, lambda b: (0, 0)),    # additive attn mask
        pl.BlockSpec(wpack.shape, lambda b: (0, 0)),     # packed matmul weights
        pl.BlockSpec(w2.shape, lambda b: (0, 0)),        # FFN second weight
        pl.BlockSpec(bpack.shape, lambda b: (0, 0)),     # packed biases / LN params
    ]
    out_specs = [
        pl.BlockSpec((TB, L * D), lambda b: (b, 0)),     # y: 256-lane rows
        pl.BlockSpec((TB, L * L), lambda b: (b, 0)),     # attn weights
    ]
    out_shape = [
        jax.ShapeDtypeStruct((B_pad, L * D), jnp.float32),
        jax.ShapeDtypeStruct((B_pad, L * L), jnp.float32),
    ]

    flops = int(B_pad) * L * (24 * D * D + 4 * L * D)
    bytes_accessed = 4 * (int(B_pad) * L * (2 * D + L) + L * L
                          + int(wpack.size) + int(w2.size) + int(bpack.size))
    cost = pl.CostEstimate(flops=flops,
                           transcendentals=int(B_pad) * NUM_HEADS * L * L,
                           bytes_accessed=bytes_accessed)

    y_flat, w_flat = pl.pallas_call(
        self_attention_kernel,
        out_shape=out_shape,
        grid_spec=pltpu.PrefetchScalarGridSpec(
            num_scalar_prefetch=0,
            grid=(nb,),
            in_specs=in_specs,
            out_specs=out_specs,
        ),
        compiler_params=pltpu.CompilerParams(
            dimension_semantics=("parallel",)),
        cost_estimate=cost,
    )(x, x_mask, wpack, w2, bpack)

    y = y_flat[:B].reshape(B, L, D)
    w = w_flat[:B].reshape(B, L, L)
    return y, w


# -------- pure-JAX reference (for correctness check) --------
def reference_forward(x, mask, params):
    (in_w, in_b, out_w, out_b, fc1_w, fc1_b, fc2_w, fc2_b,
     ln1_g, ln1_b, ln2_g, ln2_b) = params
    B, L, D = x.shape
    qkv = x @ in_w.T + in_b[0]
    q, k, v = qkv[..., :D], qkv[..., D:2 * D], qkv[..., 2 * D:]

    def split_heads(t):
        return t.reshape(B, L, NUM_HEADS, HEAD_DIM).transpose(0, 2, 1, 3)

    qh, kh, vh = split_heads(q), split_heads(k), split_heads(v)
    s = jnp.einsum("bhld,bhmd->bhlm", qh, kh) / math.sqrt(HEAD_DIM) + mask
    p = jax.nn.softmax(s, axis=-1)
    o = jnp.einsum("bhlm,bhmd->bhld", p, vh).transpose(0, 2, 1, 3).reshape(B, L, D)
    attn = o @ out_w.T + out_b[0]
    h1 = _layernorm(x + attn, ln1_g[0], ln1_b[0])
    f = jnp.maximum(h1 @ fc1_w.T + fc1_b[0], 0.0) @ fc2_w.T + fc2_b[0]
    h2 = _layernorm(h1 + f, ln2_g[0], ln2_b[0])
    return h2, jnp.mean(p, axis=1)


if __name__ == "__main__":
    B, L, D = 8, 8, DIM
    key = jax.random.PRNGKey(0)
    keys = jax.random.split(key, 8)

    x = jax.random.normal(keys[0], (B, L, D), jnp.float32)

    # Additive causal float mask (large negative = masked), matching PyTorch attn_mask.
    causal = jnp.triu(jnp.ones((L, L), jnp.float32), k=1)
    x_mask = causal * (-1e9)

    # Deterministic synthetic parameters (PyTorch layout: weight (out, in)).
    params = [
        0.05 * jax.random.normal(keys[1], (3 * D, D), jnp.float32),    # in_proj_weight
        0.01 * jax.random.normal(keys[2], (1, 3 * D), jnp.float32),    # in_proj_bias
        0.05 * jax.random.normal(keys[3], (D, D), jnp.float32),        # out_proj.weight
        0.01 * jax.random.normal(keys[4], (1, D), jnp.float32),        # out_proj.bias
        0.05 * jax.random.normal(keys[5], (4 * D, D), jnp.float32),    # fcn[0].weight
        0.01 * jax.random.normal(keys[6], (1, 4 * D), jnp.float32),    # fcn[0].bias
        0.05 * jax.random.normal(keys[7], (D, 4 * D), jnp.float32),    # fcn[3].weight
        jnp.zeros((1, D), jnp.float32),                                 # fcn[3].bias
        jnp.ones((1, D), jnp.float32),                                  # ln_mha.weight
        jnp.zeros((1, D), jnp.float32),                                 # ln_mha.bias
        jnp.ones((1, D), jnp.float32),                                  # ln_fcn.weight
        jnp.zeros((1, D), jnp.float32),                                 # ln_fcn.bias
    ]

    y, w = self_attention_forward(x, x_mask, params)
    jax.block_until_ready((y, w))

    y_ref, w_ref = reference_forward(x, x_mask, params)
    # 1e-3 tolerance: the EUP approx reciprocal in the softmax adds ~1e-4-scale
    # relative error vs the exact divide used by the reference.
    assert jnp.allclose(y, y_ref, atol=1e-3, rtol=1e-3), "output mismatch"
    assert jnp.allclose(w, w_ref, atol=1e-3, rtol=1e-3), "attn-weight mismatch"

    print("KERNEL_OK")
</pallas_src>

<mosaic_0001>
module attributes {stable_mosaic.version = 11 : i64} {
  func.func @self_attention_kernel(%arg0: i32, %arg1: memref<8x8x32xf32, #tpu.memory_space<vmem>>, %arg2: memref<8x8xf32, #tpu.memory_space<vmem>>, %arg3: memref<32x256xf32, #tpu.memory_space<vmem>>, %arg4: memref<128x32xf32, #tpu.memory_space<vmem>>, %arg5: memref<4x128xf32, #tpu.memory_space<vmem>>, %arg6: memref<8x256xf32, #tpu.memory_space<vmem>>, %arg7: memref<8x64xf32, #tpu.memory_space<vmem>>) attributes {dimension_semantics = [#tpu.dimension_semantics<parallel>], iteration_bounds = array<i64: 1>, scalar_prefetch = 0 : i64, scratch_operands = 0 : i64, tpu.core_type = #tpu.core_type<tc>, window_params = [{transform_indices = @transform_0, window_bounds = array<i64: 8, 8, 32>}, {pipeline_mode = #tpu.pipeline_mode<synchronous>, transform_indices = @transform_1, window_bounds = array<i64: 8, 8>}, {pipeline_mode = #tpu.pipeline_mode<synchronous>, transform_indices = @transform_2, window_bounds = array<i64: 32, 256>}, {pipeline_mode = #tpu.pipeline_mode<synchronous>, transform_indices = @transform_3, window_bounds = array<i64: 128, 32>}, {pipeline_mode = #tpu.pipeline_mode<synchronous>, transform_indices = @transform_4, window_bounds = array<i64: 4, 128>}, {transform_indices = @transform_5, window_bounds = array<i64: 8, 256>}, {transform_indices = @transform_6, window_bounds = array<i64: 8, 64>}]} {
    %c0 = arith.constant 0 : index
    %c0_0 = arith.constant 0 : index
    %c0_1 = arith.constant 0 : index
    %0 = vector.load %arg1[%c0, %c0_0, %c0_1] : memref<8x8x32xf32, #tpu.memory_space<vmem>>, vector<8x8x32xf32>
    %1 = vector.shape_cast %0 : vector<8x8x32xf32> to vector<64x32xf32>
    %c0_2 = arith.constant 0 : index
    %c0_3 = arith.constant 0 : index
    %2 = vector.load %arg3[%c0_2, %c0_3] : memref<32x256xf32, #tpu.memory_space<vmem>>, vector<32x96xf32>
    %c0_4 = arith.constant 0 : index
    %c96 = arith.constant 96 : index
    %3 = vector.load %arg3[%c0_4, %c96] : memref<32x256xf32, #tpu.memory_space<vmem>>, vector<32x32xf32>
    %c0_5 = arith.constant 0 : index
    %c128 = arith.constant 128 : index
    %4 = vector.load %arg3[%c0_5, %c128] : memref<32x256xf32, #tpu.memory_space<vmem>>, vector<32x128xf32>
    %c0_6 = arith.constant 0 : index
    %c0_7 = arith.constant 0 : index
    %5 = vector.load %arg5[%c0_6, %c0_7] : memref<4x128xf32, #tpu.memory_space<vmem>>, vector<1x96xf32>
    %c0_8 = arith.constant 0 : index
    %c96_9 = arith.constant 96 : index
    %6 = vector.load %arg5[%c0_8, %c96_9] : memref<4x128xf32, #tpu.memory_space<vmem>>, vector<1x32xf32>
    %c1 = arith.constant 1 : index
    %c0_10 = arith.constant 0 : index
    %7 = vector.load %arg5[%c1, %c0_10] : memref<4x128xf32, #tpu.memory_space<vmem>>, vector<1x128xf32>
    %c2 = arith.constant 2 : index
    %c0_11 = arith.constant 0 : index
    %8 = vector.load %arg5[%c2, %c0_11] : memref<4x128xf32, #tpu.memory_space<vmem>>, vector<1x32xf32>
    %c2_12 = arith.constant 2 : index
    %c32 = arith.constant 32 : index
    %9 = vector.load %arg5[%c2_12, %c32] : memref<4x128xf32, #tpu.memory_space<vmem>>, vector<1x32xf32>
    %c2_13 = arith.constant 2 : index
    %c64 = arith.constant 64 : index
    %10 = vector.load %arg5[%c2_13, %c64] : memref<4x128xf32, #tpu.memory_space<vmem>>, vector<1x32xf32>
    %c2_14 = arith.constant 2 : index
    %c96_15 = arith.constant 96 : index
    %11 = vector.load %arg5[%c2_14, %c96_15] : memref<4x128xf32, #tpu.memory_space<vmem>>, vector<1x32xf32>
    %c3 = arith.constant 3 : index
    %c0_16 = arith.constant 0 : index
    %12 = vector.load %arg5[%c3, %c0_16] : memref<4x128xf32, #tpu.memory_space<vmem>>, vector<1x32xf32>
    %cst = arith.constant dense<0.000000e+00> : vector<64x96xf32>
    %13 = tpu.matmul %1, %2, %cst {dimension_numbers = #tpu.dot_dimension_numbers<[1], [0], [0], [1], [0, 0, 1, 1], [], []>} : vector<64x32xf32>, vector<32x96xf32>, vector<64x96xf32> -> vector<64x96xf32>
    %14 = vector.broadcast %5 : vector<1x96xf32> to vector<64x96xf32>
    %15 = arith.addf %13, %14 : vector<64x96xf32>
    %c0_17 = arith.constant 0 : index
    %c0_18 = arith.constant 0 : index
    %16 = vector.load %arg2[%c0_17, %c0_18] : memref<8x8xf32, #tpu.memory_space<vmem>>, vector<8x8xf32>
    %17 = vector.shape_cast %16 : vector<8x8xf32> to vector<1x8x8xf32>
    %18 = vector.broadcast %17 : vector<1x8x8xf32> to vector<8x8x8xf32>
    %cst_19 = arith.constant 0.000000e+00 : f32
    %19 = vector.broadcast %cst_19 : f32 to vector<8x8x8xf32>
    %20 = vector.extract_strided_slice %15 {offsets = [0, 0], sizes = [64, 8], strides = [1, 1]} : vector<64x96xf32> to vector<64x8xf32>
    %21 = vector.shape_cast %20 : vector<64x8xf32> to vector<8x8x8xf32>
    %22 = vector.extract_strided_slice %15 {offsets = [0, 32], sizes = [64, 8], strides = [1, 1]} : vector<64x96xf32> to vector<64x8xf32>
    %23 = vector.shape_cast %22 : vector<64x8xf32> to vector<8x8x8xf32>
    %24 = vector.extract_strided_slice %15 {offsets = [0, 64], sizes = [64, 8], strides = [1, 1]} : vector<64x96xf32> to vector<64x8xf32>
    %25 = vector.shape_cast %24 : vector<64x8xf32> to vector<8x8x8xf32>
    "tpu.trace_start"() <{level = 10 : i32, message = "bqd,bkd->bqk"}> : () -> ()
    %cst_20 = arith.constant dense<0.000000e+00> : vector<8x8x8xf32>
    %26 = tpu.matmul %21, %23, %cst_20 {dimension_numbers = #tpu.dot_dimension_numbers<[2], [2], [1], [1], [0, 0, 0, 1, 1, 1], [0], [0]>} : vector<8x8x8xf32>, vector<8x8x8xf32>, vector<8x8x8xf32> -> vector<8x8x8xf32>
    "tpu.trace_stop"() : () -> ()
    %27 = arith.addf %26, %18 : vector<8x8x8xf32>
    %cst_21 = arith.constant dense<0xFF800000> : vector<8x8xf32>
    %28 = vector.multi_reduction <maximumf>, %27, %cst_21 [2] : vector<8x8x8xf32> to vector<8x8xf32>
    %29 = vector.shape_cast %28 : vector<8x8xf32> to vector<8x8x1xf32>
    %30 = vector.broadcast %29 : vector<8x8x1xf32> to vector<8x8x8xf32>
    %31 = arith.subf %27, %30 : vector<8x8x8xf32>
    %32 = math.exp %31 : vector<8x8x8xf32>
    %cst_22 = arith.constant dense<0.000000e+00> : vector<8x8xf32>
    %33 = vector.multi_reduction <add>, %32, %cst_22 [2] : vector<8x8x8xf32> to vector<8x8xf32>
    %34 = vector.shape_cast %33 : vector<8x8xf32> to vector<8x8x1xf32>
    %35 = tpu.reciprocal %34 {approx = true} : vector<8x8x1xf32> -> vector<8x8x1xf32>
    %36 = vector.broadcast %35 : vector<8x8x1xf32> to vector<8x8x8xf32>
    %37 = arith.mulf %32, %36 : vector<8x8x8xf32>
    %38 = arith.addf %19, %37 : vector<8x8x8xf32>
    "tpu.trace_start"() <{level = 10 : i32, message = "bqk,bkd->bqd"}> : () -> ()
    %cst_23 = arith.constant dense<0.000000e+00> : vector<8x8x8xf32>
    %39 = tpu.matmul %37, %25, %cst_23 {dimension_numbers = #tpu.dot_dimension_numbers<[2], [1], [1], [2], [0, 0, 0, 1, 1, 2], [0], [0]>} : vector<8x8x8xf32>, vector<8x8x8xf32>, vector<8x8x8xf32> -> vector<8x8x8xf32>
    "tpu.trace_stop"() : () -> ()
    %40 = vector.extract_strided_slice %15 {offsets = [0, 8], sizes = [64, 8], strides = [1, 1]} : vector<64x96xf32> to vector<64x8xf32>
    %41 = vector.shape_cast %40 : vector<64x8xf32> to vector<8x8x8xf32>
    %42 = vector.extract_strided_slice %15 {offsets = [0, 40], sizes = [64, 8], strides = [1, 1]} : vector<64x96xf32> to vector<64x8xf32>
    %43 = vector.shape_cast %42 : vector<64x8xf32> to vector<8x8x8xf32>
    %44 = vector.extract_strided_slice %15 {offsets = [0, 72], sizes = [64, 8], strides = [1, 1]} : vector<64x96xf32> to vector<64x8xf32>
    %45 = vector.shape_cast %44 : vector<64x8xf32> to vector<8x8x8xf32>
    "tpu.trace_start"() <{level = 10 : i32, message = "bqd,bkd->bqk"}> : () -> ()
    %cst_24 = arith.constant dense<0.000000e+00> : vector<8x8x8xf32>
    %46 = tpu.matmul %41, %43, %cst_24 {dimension_numbers = #tpu.dot_dimension_numbers<[2], [2], [1], [1], [0, 0, 0, 1, 1, 1], [0], [0]>} : vector<8x8x8xf32>, vector<8x8x8xf32>, vector<8x8x8xf32> -> vector<8x8x8xf32>
    "tpu.trace_stop"() : () -> ()
    %47 = arith.addf %46, %18 : vector<8x8x8xf32>
    %cst_25 = arith.constant dense<0xFF800000> : vector<8x8xf32>
    %48 = vector.multi_reduction <maximumf>, %47, %cst_25 [2] : vector<8x8x8xf32> to vector<8x8xf32>
    %49 = vector.shape_cast %48 : vector<8x8xf32> to vector<8x8x1xf32>
    %50 = vector.broadcast %49 : vector<8x8x1xf32> to vector<8x8x8xf32>
    %51 = arith.subf %47, %50 : vector<8x8x8xf32>
    %52 = math.exp %51 : vector<8x8x8xf32>
    %cst_26 = arith.constant dense<0.000000e+00> : vector<8x8xf32>
    %53 = vector.multi_reduction <add>, %52, %cst_26 [2] : vector<8x8x8xf32> to vector<8x8xf32>
    %54 = vector.shape_cast %53 : vector<8x8xf32> to vector<8x8x1xf32>
    %55 = tpu.reciprocal %54 {approx = true} : vector<8x8x1xf32> -> vector<8x8x1xf32>
    %56 = vector.broadcast %55 : vector<8x8x1xf32> to vector<8x8x8xf32>
    %57 = arith.mulf %52, %56 : vector<8x8x8xf32>
    %58 = arith.addf %38, %57 : vector<8x8x8xf32>
    "tpu.trace_start"() <{level = 10 : i32, message = "bqk,bkd->bqd"}> : () -> ()
    %cst_27 = arith.constant dense<0.000000e+00> : vector<8x8x8xf32>
    %59 = tpu.matmul %57, %45, %cst_27 {dimension_numbers = #tpu.dot_dimension_numbers<[2], [1], [1], [2], [0, 0, 0, 1, 1, 2], [0], [0]>} : vector<8x8x8xf32>, vector<8x8x8xf32>, vector<8x8x8xf32> -> vector<8x8x8xf32>
    "tpu.trace_stop"() : () -> ()
    %60 = vector.extract_strided_slice %15 {offsets = [0, 16], sizes = [64, 8], strides = [1, 1]} : vector<64x96xf32> to vector<64x8xf32>
    %61 = vector.shape_cast %60 : vector<64x8xf32> to vector<8x8x8xf32>
    %62 = vector.extract_strided_slice %15 {offsets = [0, 48], sizes = [64, 8], strides = [1, 1]} : vector<64x96xf32> to vector<64x8xf32>
    %63 = vector.shape_cast %62 : vector<64x8xf32> to vector<8x8x8xf32>
    %64 = vector.extract_strided_slice %15 {offsets = [0, 80], sizes = [64, 8], strides = [1, 1]} : vector<64x96xf32> to vector<64x8xf32>
    %65 = vector.shape_cast %64 : vector<64x8xf32> to vector<8x8x8xf32>
    "tpu.trace_start"() <{level = 10 : i32, message = "bqd,bkd->bqk"}> : () -> ()
    %cst_28 = arith.constant dense<0.000000e+00> : vector<8x8x8xf32>
    %66 = tpu.matmul %61, %63, %cst_28 {dimension_numbers = #tpu.dot_dimension_numbers<[2], [2], [1], [1], [0, 0, 0, 1, 1, 1], [0], [0]>} : vector<8x8x8xf32>, vector<8x8x8xf32>, vector<8x8x8xf32> -> vector<8x8x8xf32>
    "tpu.trace_stop"() : () -> ()
    %67 = arith.addf %66, %18 : vector<8x8x8xf32>
    %cst_29 = arith.constant dense<0xFF800000> : vector<8x8xf32>
    %68 = vector.multi_reduction <maximumf>, %67, %cst_29 [2] : vector<8x8x8xf32> to vector<8x8xf32>
    %69 = vector.shape_cast %68 : vector<8x8xf32> to vector<8x8x1xf32>
    %70 = vector.broadcast %69 : vector<8x8x1xf32> to vector<8x8x8xf32>
    %71 = arith.subf %67, %70 : vector<8x8x8xf32>
    %72 = math.exp %71 : vector<8x8x8xf32>
    %cst_30 = arith.constant dense<0.000000e+00> : vector<8x8xf32>
    %73 = vector.multi_reduction <add>, %72, %cst_30 [2] : vector<8x8x8xf32> to vector<8x8xf32>
    %74 = vector.shape_cast %73 : vector<8x8xf32> to vector<8x8x1xf32>
    %75 = tpu.reciprocal %74 {approx = true} : vector<8x8x1xf32> -> vector<8x8x1xf32>
    %76 = vector.broadcast %75 : vector<8x8x1xf32> to vector<8x8x8xf32>
    %77 = arith.mulf %72, %76 : vector<8x8x8xf32>
    %78 = arith.addf %58, %77 : vector<8x8x8xf32>
    "tpu.trace_start"() <{level = 10 : i32, message = "bqk,bkd->bqd"}> : () -> ()
    %cst_31 = arith.constant dense<0.000000e+00> : vector<8x8x8xf32>
    %79 = tpu.matmul %77, %65, %cst_31 {dimension_numbers = #tpu.dot_dimension_numbers<[2], [1], [1], [2], [0, 0, 0, 1, 1, 2], [0], [0]>} : vector<8x8x8xf32>, vector<8x8x8xf32>, vector<8x8x8xf32> -> vector<8x8x8xf32>
    "tpu.trace_stop"() : () -> ()
    %80 = vector.extract_strided_slice %15 {offsets = [0, 24], sizes = [64, 8], strides = [1, 1]} : vector<64x96xf32> to vector<64x8xf32>
    %81 = vector.shape_cast %80 : vector<64x8xf32> to vector<8x8x8xf32>
    %82 = vector.extract_strided_slice %15 {offsets = [0, 56], sizes = [64, 8], strides = [1, 1]} : vector<64x96xf32> to vector<64x8xf32>
    %83 = vector.shape_cast %82 : vector<64x8xf32> to vector<8x8x8xf32>
    %84 = vector.extract_strided_slice %15 {offsets = [0, 88], sizes = [64, 8], strides = [1, 1]} : vector<64x96xf32> to vector<64x8xf32>
    %85 = vector.shape_cast %84 : vector<64x8xf32> to vector<8x8x8xf32>
    "tpu.trace_start"() <{level = 10 : i32, message = "bqd,bkd->bqk"}> : () -> ()
    %cst_32 = arith.constant dense<0.000000e+00> : vector<8x8x8xf32>
    %86 = tpu.matmul %81, %83, %cst_32 {dimension_numbers = #tpu.dot_dimension_numbers<[2], [2], [1], [1], [0, 0, 0, 1, 1, 1], [0], [0]>} : vector<8x8x8xf32>, vector<8x8x8xf32>, vector<8x8x8xf32> -> vector<8x8x8xf32>
    "tpu.trace_stop"() : () -> ()
    %87 = arith.addf %86, %18 : vector<8x8x8xf32>
    %cst_33 = arith.constant dense<0xFF800000> : vector<8x8xf32>
    %88 = vector.multi_reduction <maximumf>, %87, %cst_33 [2] : vector<8x8x8xf32> to vector<8x8xf32>
    %89 = vector.shape_cast %88 : vector<8x8xf32> to vector<8x8x1xf32>
    %90 = vector.broadcast %89 : vector<8x8x1xf32> to vector<8x8x8xf32>
    %91 = arith.subf %87, %90 : vector<8x8x8xf32>
    %92 = math.exp %91 : vector<8x8x8xf32>
    %cst_34 = arith.constant dense<0.000000e+00> : vector<8x8xf32>
    %93 = vector.multi_reduction <add>, %92, %cst_34 [2] : vector<8x8x8xf32> to vector<8x8xf32>
    %94 = vector.shape_cast %93 : vector<8x8xf32> to vector<8x8x1xf32>
    %95 = tpu.reciprocal %94 {approx = true} : vector<8x8x1xf32> -> vector<8x8x1xf32>
    %96 = vector.broadcast %95 : vector<8x8x1xf32> to vector<8x8x8xf32>
    %97 = arith.mulf %92, %96 : vector<8x8x8xf32>
    %98 = arith.addf %78, %97 : vector<8x8x8xf32>
    "tpu.trace_start"() <{level = 10 : i32, message = "bqk,bkd->bqd"}> : () -> ()
    %cst_35 = arith.constant dense<0.000000e+00> : vector<8x8x8xf32>
    %99 = tpu.matmul %97, %85, %cst_35 {dimension_numbers = #tpu.dot_dimension_numbers<[2], [1], [1], [2], [0, 0, 0, 1, 1, 2], [0], [0]>} : vector<8x8x8xf32>, vector<8x8x8xf32>, vector<8x8x8xf32> -> vector<8x8x8xf32>
    "tpu.trace_stop"() : () -> ()
    %100 = tpu.concatenate %39, %59, %79, %99 in 2 : vector<8x8x8xf32>, vector<8x8x8xf32>, vector<8x8x8xf32>, vector<8x8x8xf32> -> vector<8x8x32xf32>
    %101 = vector.shape_cast %100 : vector<8x8x32xf32> to vector<64x32xf32>
    %cst_36 = arith.constant dense<0.000000e+00> : vector<64x32xf32>
    %102 = tpu.matmul %101, %3, %cst_36 {dimension_numbers = #tpu.dot_dimension_numbers<[1], [0], [0], [1], [0, 0, 1, 1], [], []>} : vector<64x32xf32>, vector<32x32xf32>, vector<64x32xf32> -> vector<64x32xf32>
    %103 = vector.broadcast %6 : vector<1x32xf32> to vector<64x32xf32>
    %104 = arith.addf %102, %103 : vector<64x32xf32>
    %105 = arith.addf %1, %104 : vector<64x32xf32>
    %cst_37 = arith.constant dense<0.000000e+00> : vector<64xf32>
    %106 = vector.multi_reduction <add>, %105, %cst_37 [1] : vector<64x32xf32> to vector<64xf32>
    %107 = vector.shape_cast %106 : vector<64xf32> to vector<64x1xf32>
    %cst_38 = arith.constant 3.200000e+01 : f32
    %108 = vector.broadcast %cst_38 : f32 to vector<64x1xf32>
    %109 = arith.divf %107, %108 : vector<64x1xf32>
    %110 = vector.broadcast %109 : vector<64x1xf32> to vector<64x32xf32>
    %111 = arith.subf %105, %110 : vector<64x32xf32>
    %112 = arith.mulf %111, %111 : vector<64x32xf32>
    %cst_39 = arith.constant dense<0.000000e+00> : vector<64xf32>
    %113 = vector.multi_reduction <add>, %112, %cst_39 [1] : vector<64x32xf32> to vector<64xf32>
    %114 = vector.shape_cast %113 : vector<64xf32> to vector<64x1xf32>
    %cst_40 = arith.constant 3.200000e+01 : f32
    %115 = vector.broadcast %cst_40 : f32 to vector<64x1xf32>
    %116 = arith.divf %114, %115 : vector<64x1xf32>
    %117 = vector.broadcast %109 : vector<64x1xf32> to vector<64x32xf32>
    %118 = arith.subf %105, %117 : vector<64x32xf32>
    %cst_41 = arith.constant 9.99999974E-6 : f32
    %119 = vector.broadcast %cst_41 : f32 to vector<64x1xf32>
    %120 = arith.addf %116, %119 : vector<64x1xf32>
    %121 = math.rsqrt %120 : vector<64x1xf32>
    %122 = vector.broadcast %121 : vector<64x1xf32> to vector<64x32xf32>
    %123 = arith.mulf %118, %122 : vector<64x32xf32>
    %124 = vector.broadcast %9 : vector<1x32xf32> to vector<64x32xf32>
    %125 = arith.mulf %123, %124 : vector<64x32xf32>
    %126 = vector.broadcast %10 : vector<1x32xf32> to vector<64x32xf32>
    %127 = arith.addf %125, %126 : vector<64x32xf32>
    %cst_42 = arith.constant dense<0.000000e+00> : vector<64x128xf32>
    %128 = tpu.matmul %127, %4, %cst_42 {dimension_numbers = #tpu.dot_dimension_numbers<[1], [0], [0], [1], [0, 0, 1, 1], [], []>} : vector<64x32xf32>, vector<32x128xf32>, vector<64x128xf32> -> vector<64x128xf32>
    %129 = vector.broadcast %7 : vector<1x128xf32> to vector<64x128xf32>
    %130 = arith.addf %128, %129 : vector<64x128xf32>
    %cst_43 = arith.constant 0.000000e+00 : f32
    %131 = vector.broadcast %cst_43 : f32 to vector<64x128xf32>
    %132 = arith.maximumf %130, %131 : vector<64x128xf32>
    %c0_44 = arith.constant 0 : index
    %c0_45 = arith.constant 0 : index
    %133 = vector.load %arg4[%c0_44, %c0_45] : memref<128x32xf32, #tpu.memory_space<vmem>>, vector<128x32xf32>
    %cst_46 = arith.constant dense<0.000000e+00> : vector<64x32xf32>
    %134 = tpu.matmul %132, %133, %cst_46 {dimension_numbers = #tpu.dot_dimension_numbers<[1], [0], [0], [1], [0, 0, 1, 1], [], []>} : vector<64x128xf32>, vector<128x32xf32>, vector<64x32xf32> -> vector<64x32xf32>
    %135 = vector.broadcast %8 : vector<1x32xf32> to vector<64x32xf32>
    %136 = arith.addf %134, %135 : vector<64x32xf32>
    %137 = arith.addf %127, %136 : vector<64x32xf32>
    %cst_47 = arith.constant dense<0.000000e+00> : vector<64xf32>
    %138 = vector.multi_reduction <add>, %137, %cst_47 [1] : vector<64x32xf32> to vector<64xf32>
    %139 = vector.shape_cast %138 : vector<64xf32> to vector<64x1xf32>
    %cst_48 = arith.constant 3.200000e+01 : f32
    %140 = vector.broadcast %cst_48 : f32 to vector<64x1xf32>
    %141 = arith.divf %139, %140 : vector<64x1xf32>
    %142 = vector.broadcast %141 : vector<64x1xf32> to vector<64x32xf32>
    %143 = arith.subf %137, %142 : vector<64x32xf32>
    %144 = arith.mulf %143, %143 : vector<64x32xf32>
    %cst_49 = arith.constant dense<0.000000e+00> : vector<64xf32>
    %145 = vector.multi_reduction <add>, %144, %cst_49 [1] : vector<64x32xf32> to vector<64xf32>
    %146 = vector.shape_cast %145 : vector<64xf32> to vector<64x1xf32>
    %cst_50 = arith.constant 3.200000e+01 : f32
    %147 = vector.broadcast %cst_50 : f32 to vector<64x1xf32>
    %148 = arith.divf %146, %147 : vector<64x1xf32>
    %149 = vector.broadcast %141 : vector<64x1xf32> to vector<64x32xf32>
    %150 = arith.subf %137, %149 : vector<64x32xf32>
    %cst_51 = arith.constant 9.99999974E-6 : f32
    %151 = vector.broadcast %cst_51 : f32 to vector<64x1xf32>
    %152 = arith.addf %148, %151 : vector<64x1xf32>
    %153 = math.rsqrt %152 : vector<64x1xf32>
    %154 = vector.broadcast %153 : vector<64x1xf32> to vector<64x32xf32>
    %155 = arith.mulf %150, %154 : vector<64x32xf32>
    %156 = vector.broadcast %11 : vector<1x32xf32> to vector<64x32xf32>
    %157 = arith.mulf %155, %156 : vector<64x32xf32>
    %158 = vector.broadcast %12 : vector<1x32xf32> to vector<64x32xf32>
    %159 = arith.addf %157, %158 : vector<64x32xf32>
    %160 = vector.shape_cast %159 : vector<64x32xf32> to vector<8x8x32xf32>
    %161 = vector.extract_strided_slice %160 {offsets = [0, 0, 0], sizes = [8, 1, 32], strides = [1, 1, 1]} : vector<8x8x32xf32> to vector<8x1x32xf32>
    %162 = vector.shape_cast %161 : vector<8x1x32xf32> to vector<8x32xf32>
    %163 = vector.extract_strided_slice %160 {offsets = [0, 1, 0], sizes = [8, 1, 32], strides = [1, 1, 1]} : vector<8x8x32xf32> to vector<8x1x32xf32>
    %164 = vector.shape_cast %163 : vector<8x1x32xf32> to vector<8x32xf32>
    %165 = vector.extract_strided_slice %160 {offsets = [0, 2, 0], sizes = [8, 1, 32], strides = [1, 1, 1]} : vector<8x8x32xf32> to vector<8x1x32xf32>
    %166 = vector.shape_cast %165 : vector<8x1x32xf32> to vector<8x32xf32>
    %167 = vector.extract_strided_slice %160 {offsets = [0, 3, 0], sizes = [8, 1, 32], strides = [1, 1, 1]} : vector<8x8x32xf32> to vector<8x1x32xf32>
    %168 = vector.shape_cast %167 : vector<8x1x32xf32> to vector<8x32xf32>
    %169 = vector.extract_strided_slice %160 {offsets = [0, 4, 0], sizes = [8, 1, 32], strides = [1, 1, 1]} : vector<8x8x32xf32> to vector<8x1x32xf32>
    %170 = vector.shape_cast %169 : vector<8x1x32xf32> to vector<8x32xf32>
    %171 = vector.extract_strided_slice %160 {offsets = [0, 5, 0], sizes = [8, 1, 32], strides = [1, 1, 1]} : vector<8x8x32xf32> to vector<8x1x32xf32>
    %172 = vector.shape_cast %171 : vector<8x1x32xf32> to vector<8x32xf32>
    %173 = vector.extract_strided_slice %160 {offsets = [0, 6, 0], sizes = [8, 1, 32], strides = [1, 1, 1]} : vector<8x8x32xf32> to vector<8x1x32xf32>
    %174 = vector.shape_cast %173 : vector<8x1x32xf32> to vector<8x32xf32>
    %175 = vector.extract_strided_slice %160 {offsets = [0, 7, 0], sizes = [8, 1, 32], strides = [1, 1, 1]} : vector<8x8x32xf32> to vector<8x1x32xf32>
    %176 = vector.shape_cast %175 : vector<8x1x32xf32> to vector<8x32xf32>
    %177 = tpu.concatenate %162, %164, %166, %168, %170, %172, %174, %176 in 1 : vector<8x32xf32>, vector<8x32xf32>, vector<8x32xf32>, vector<8x32xf32>, vector<8x32xf32>, vector<8x32xf32>, vector<8x32xf32>, vector<8x32xf32> -> vector<8x256xf32>
    %c0_52 = arith.constant 0 : index
    %c0_53 = arith.constant 0 : index
    %178 = vector.load %arg6[%c0_52, %c0_53] : memref<8x256xf32, #tpu.memory_space<vmem>>, vector<8x256xf32>
    tpu.vector_store %arg6[%c0_52, %c0_53], %177 {strides = array<i32>} : memref<8x256xf32, #tpu.memory_space<vmem>>, vector<8x256xf32>,
    %cst_54 = arith.constant 2.500000e-01 : f32
    %179 = vector.broadcast %cst_54 : f32 to vector<8x8x8xf32>
    %180 = arith.mulf %98, %179 : vector<8x8x8xf32>
    %181 = vector.extract_strided_slice %180 {offsets = [0, 0, 0], sizes = [8, 1, 8], strides = [1, 1, 1]} : vector<8x8x8xf32> to vector<8x1x8xf32>
    %182 = vector.shape_cast %181 : vector<8x1x8xf32> to vector<8x8xf32>
    %183 = vector.extract_strided_slice %180 {offsets = [0, 1, 0], sizes = [8, 1, 8], strides = [1, 1, 1]} : vector<8x8x8xf32> to vector<8x1x8xf32>
    %184 = vector.shape_cast %183 : vector<8x1x8xf32> to vector<8x8xf32>
    %185 = vector.extract_strided_slice %180 {offsets = [0, 2, 0], sizes = [8, 1, 8], strides = [1, 1, 1]} : vector<8x8x8xf32> to vector<8x1x8xf32>
    %186 = vector.shape_cast %185 : vector<8x1x8xf32> to vector<8x8xf32>
    %187 = vector.extract_strided_slice %180 {offsets = [0, 3, 0], sizes = [8, 1, 8], strides = [1, 1, 1]} : vector<8x8x8xf32> to vector<8x1x8xf32>
    %188 = vector.shape_cast %187 : vector<8x1x8xf32> to vector<8x8xf32>
    %189 = vector.extract_strided_slice %180 {offsets = [0, 4, 0], sizes = [8, 1, 8], strides = [1, 1, 1]} : vector<8x8x8xf32> to vector<8x1x8xf32>
    %190 = vector.shape_cast %189 : vector<8x1x8xf32> to vector<8x8xf32>
    %191 = vector.extract_strided_slice %180 {offsets = [0, 5, 0], sizes = [8, 1, 8], strides = [1, 1, 1]} : vector<8x8x8xf32> to vector<8x1x8xf32>
    %192 = vector.shape_cast %191 : vector<8x1x8xf32> to vector<8x8xf32>
    %193 = vector.extract_strided_slice %180 {offsets = [0, 6, 0], sizes = [8, 1, 8], strides = [1, 1, 1]} : vector<8x8x8xf32> to vector<8x1x8xf32>
    %194 = vector.shape_cast %193 : vector<8x1x8xf32> to vector<8x8xf32>
    %195 = vector.extract_strided_slice %180 {offsets = [0, 7, 0], sizes = [8, 1, 8], strides = [1, 1, 1]} : vector<8x8x8xf32> to vector<8x1x8xf32>
    %196 = vector.shape_cast %195 : vector<8x1x8xf32> to vector<8x8xf32>
    %197 = tpu.concatenate %182, %184, %186, %188, %190, %192, %194, %196 in 1 : vector<8x8xf32>, vector<8x8xf32>, vector<8x8xf32>, vector<8x8xf32>, vector<8x8xf32>, vector<8x8xf32>, vector<8x8xf32>, vector<8x8xf32> -> vector<8x64xf32>
    %c0_55 = arith.constant 0 : index
    %c0_56 = arith.constant 0 : index
    %198 = vector.load %arg7[%c0_55, %c0_56] : memref<8x64xf32, #tpu.memory_space<vmem>>, vector<8x64xf32>
    tpu.vector_store %arg7[%c0_55, %c0_56], %197 {strides = array<i32>} : memref<8x64xf32, #tpu.memory_space<vmem>>, vector<8x64xf32>,
    return
  }
  func.func @transform_0(%arg0: i32) -> (i32, i32, i32) {
    %c0_i32 = arith.constant 0 : i32
    %c0_i32_0 = arith.constant 0 : i32
    %c0_i32_1 = arith.constant 0 : i32
    return %arg0, %c0_i32, %c0_i32_0 : i32, i32, i32
  }
  func.func @transform_1(%arg0: i32) -> (i32, i32) {
    %c0_i32 = arith.constant 0 : i32
    %c0_i32_0 = arith.constant 0 : i32
    %c0_i32_1 = arith.constant 0 : i32
    return %c0_i32, %c0_i32_0 : i32, i32
  }
  func.func @transform_2(%arg0: i32) -> (i32, i32) {
    %c0_i32 = arith.constant 0 : i32
    %c0_i32_0 = arith.constant 0 : i32
    %c0_i32_1 = arith.constant 0 : i32
    return %c0_i32, %c0_i32_0 : i32, i32
  }
  func.func @transform_3(%arg0: i32) -> (i32, i32) {
    %c0_i32 = arith.constant 0 : i32
    %c0_i32_0 = arith.constant 0 : i32
    %c0_i32_1 = arith.constant 0 : i32
    return %c0_i32, %c0_i32_0 : i32, i32
  }
  func.func @transform_4(%arg0: i32) -> (i32, i32) {
    %c0_i32 = arith.constant 0 : i32
    %c0_i32_0 = arith.constant 0 : i32
    %c0_i32_1 = arith.constant 0 : i32
    return %c0_i32, %c0_i32_0 : i32, i32
  }
  func.func @transform_5(%arg0: i32) -> (i32, i32) {
    %c0_i32 = arith.constant 0 : i32
    %c0_i32_0 = arith.constant 0 : i32
    return %arg0, %c0_i32 : i32, i32
  }
  func.func @transform_6(%arg0: i32) -> (i32, i32) {
    %c0_i32 = arith.constant 0 : i32
    %c0_i32_0 = arith.constant 0 : i32
    return %arg0, %c0_i32 : i32, i32
  }
}

</mosaic_0001>

<llo_original>
// kernel: tpu_custom_call.1
$region0: #{tpu_custom_call.1}
  #allocation0 [shape = 'u32[]', space=smem, size = 0x4, offset = 0x4, fixed_abs, tag = 'smem constant byte address 0x4 - core index']
  #allocation1 [shape = 'u32[72,128]{1,0:T(1,128)}', space=vmem, size = 0x9000, scoped, tag = 'internal scratch']
  %s0 = inlined_call_operand.vmem [shape: f32[8,8,32], index: 0, kind: input, shape index: {}]
  %s1 = inlined_call_operand.vmem [shape: f32[8,8], index: 1, kind: input, shape index: {}]
  %s2 = inlined_call_operand.vmem [shape: f32[32,256], index: 2, kind: input, shape index: {}]
  %s3 = inlined_call_operand.vmem [shape: f32[128,32], index: 3, kind: input, shape index: {}]
  %s4 = inlined_call_operand.vmem [shape: f32[4,128], index: 4, kind: input, shape index: {}]
  %s5 = inlined_call_operand.hbm [shape: f32[8,256], index: 5, kind: output, shape index: {0}]
  %s6 = inlined_call_operand.hbm [shape: f32[8,64], index: 6, kind: output, shape index: {1}]
  %7 = xla_tuple %s5, %s6
  %s8 = sld [smem:[#allocation0]]
  $region38: #{tpu_custom_call.1} parent=0
    _
  %s10 = ssub.s32 1, %s8
  %s11 = scalar_select 0, %s10, %s8
  $region1: #{tpu_custom_call.1} parent=0
    #allocation2 [shape = 'u8[8192]{0}', space=vmem, size = 0x2000, scoped, tag = 'output window, operand 0, single buffered']
    #allocation3 [shape = 's32[1]{0}', space=sflag, size = 0x4, scoped, tag = 'scoped memory for tpu_custom_call.1']
    #allocation4 [shape = 'u8[4096]{0}', space=vmem, size = 0x1000, scoped, tag = 'output window, operand 1, single buffered']
    #allocation5 [shape = 's32[1]{0}', space=sflag, size = 0x4, scoped, tag = 'scoped memory for tpu_custom_call.1']
    %12 = vsyncpa [#allocation3], 0
    %13 = vsyncpa [#allocation5], 0
    // Predicated region
    $region2: #{tpu_custom_call.1} parent=1 // pred_check
      _
    $region3: #{tpu_custom_call.1} parent=1 // pred_check_branch
      %15 = sbr.rel (0) target = $region5
    $region4: #{tpu_custom_call.1} parent=1 // pred_region
      _
    $region5: #{tpu_custom_call.1} parent=1 // pred_fallthru
      _
    // Predicated region
    $region6: #{tpu_custom_call.1} parent=1 // pred_check
      _
    $region7: #{tpu_custom_call.1} parent=1 // pred_check_branch
      %17 = sbr.rel (0) target = $region9
    $region8: #{tpu_custom_call.1} parent=1 // pred_region
      _
    $region9: #{tpu_custom_call.1} parent=1 // pred_fallthru
      _
    // Predicated region
    $region10: #{tpu_custom_call.1} parent=1 // pred_check
      _
    $region11: #{tpu_custom_call.1} parent=1 // pred_check_branch
      %19 = sbr.rel (0) target = $region13
    $region12: #{tpu_custom_call.1} parent=1 // pred_region
      _
    $region13: #{tpu_custom_call.1} parent=1 // pred_fallthru
      _
    // Predicated region
    $region14: #{tpu_custom_call.1} parent=1 // pred_check
      _
    $region15: #{tpu_custom_call.1} parent=1 // pred_check_branch
      %21 = sbr.rel (0) target = $region17
    $region16: #{tpu_custom_call.1} parent=1 // pred_region
      _
    $region17: #{tpu_custom_call.1} parent=1 // pred_fallthru
      _
    // Predicated region
    $region18: #{tpu_custom_call.1} parent=1 // pred_check
      _
    $region19: #{tpu_custom_call.1} parent=1 // pred_check_branch
      %23 = sbr.rel (0) target = $region21
    $region20: #{tpu_custom_call.1} parent=1 // pred_region
      _
    $region21: #{tpu_custom_call.1} parent=1 // pred_fallthru
      _
    %v24 = vld [vmem:[%s0] sm:$0xff]
    %v25 = vld [vmem:[%s0 + $0x8] sm:$0xff]
    %v26 = vld [vmem:[%s0 + $0x10] sm:$0xff]
    %v27 = vld [vmem:[%s0 + $0x18] sm:$0xff]
    %v28 = vld [vmem:[%s0 + $0x20] sm:$0xff]
    %v29 = vld [vmem:[%s0 + $0x28] sm:$0xff]
    %v30 = vld [vmem:[%s0 + $0x30] sm:$0xff]
    %v31 = vld [vmem:[%s0 + $0x38] sm:$0xff]
    %v32 = vld [vmem:[%s2] sm:$0xff]
    %v33 = vld [vmem:[%s2 + $0x10] sm:$0xff]
    %v34 = vld [vmem:[%s2 + $0x20] sm:$0xff]
    %v35 = vld [vmem:[%s2 + $0x30] sm:$0xff]
    %v36 = vld [vmem:[%s2 + $0x8] sm:$0xff]
    %v37 = vld [vmem:[%s2 + $0x18] sm:$0xff]
    %v38 = vld [vmem:[%s2 + $0x28] sm:$0xff]
    %v39 = vld [vmem:[%s2 + $0x38] sm:$0xff]
    %v40 = vld [vmem:[%s4] sm:$0x1]
    %v41 = vld [vmem:[%s4 + $0x1] sm:$0x1]
    %v42 = vld [vmem:[%s4 + $0x2] sm:$0x1]
    %v43 = vld [vmem:[%s4 + $0x3] sm:$0x1]
    %v44 = vperm.slane %v40, 0
    %vm45 = vcmask 261120
    %v47 = vsel %vm45, %v24, 0
    %v50 = vsel %vm45, %v25, 0
    %v53 = vsel %vm45, %v26, 0
    %v56 = vsel %vm45, %v27, 0
    %v59 = vsel %vm45, %v28, 0
    %v62 = vsel %vm45, %v29, 0
    %v65 = vsel %vm45, %v30, 0
    %v68 = vsel %vm45, %v31, 0
    %70 = vmatpush.msra.mxu0 0.0
    %71 = vmatpush.msra.mxu0 0.0
    %72 = vmatpush.msra.mxu0 0.0
    %73 = vmatpush.msra.mxu0 0.0
    %74 = vmatpush.msra.mxu0 0.0
    %75 = vmatpush.msra.mxu0 0.0
    %76 = vmatpush.msra.mxu0 0.0
    %77 = vmatpush.msra.mxu0 0.0
    %78 = vmatpush.msra.mxu0 0.0
    %79 = vmatpush.msra.mxu0 0.0
    %80 = vmatpush.msra.mxu0 0.0
    %81 = vmatpush.msra.mxu0 0.0
    %82 = vmatpush.msra.mxu0 %v35
    %83 = vmatpush.msra.mxu0 %v34
    %84 = vmatpush.msra.mxu0 %v33
    %85 = vmatpush.msra.mxu0 %v32
    %86 = vmatmul.f32.gmra.mxu0 %v47
    %v87 = vpop.f32.mrf.mxu0
    %v88 = vadd.f32 %v44, %v87
    %89 = vmatmul.f32.gmra.mxu0 %v50
    %v90 = vpop.f32.mrf.mxu0
    %v91 = vadd.f32 %v44, %v90
    %92 = vmatmul.f32.gmra.mxu0 %v53
    %v93 = vpop.f32.mrf.mxu0
    %v94 = vadd.f32 %v44, %v93
    %95 = vmatmul.f32.gmra.mxu0 %v56
    %v96 = vpop.f32.mrf.mxu0
    %v97 = vadd.f32 %v44, %v96
    %98 = vmatmul.f32.gmra.mxu0 %v59
    %v99 = vpop.f32.mrf.mxu0
    %v100 = vadd.f32 %v44, %v99
    %101 = vmatmul.f32.gmra.mxu0 %v62
    %v102 = vpop.f32.mrf.mxu0
    %v103 = vadd.f32 %v44, %v102
    %104 = vmatmul.f32.gmra.mxu0 %v65
    %v105 = vpop.f32.mrf.mxu0
    %v106 = vadd.f32 %v44, %v105
    %107 = vmatmul.f32.gmra.mxu0 %v68
    %v108 = vpop.f32.mrf.mxu0
    %v109 = vadd.f32 %v44, %v108
    %110 = vdwg.mxu0
    %v111 = vld [vmem:[%s1] sm:$0xff]
    %113 = vrot.lane.b32.xlu0 %v88, 96
    %v114 = vpop.permute.xlu0 %113
    %vm115 = vcmask 64512
    %v116 = vsel %vm115, %v88, 0
    %v118 = vsel %vm115, %v114, 0
    %120 = vmatpush.xpose.msra.mxu0 0.0
    %121 = vmatpush.xpose.msra.mxu0 0.0
    %122 = vmatpush.xpose.msra.mxu0 0.0
    %123 = vmatpush.xpose.msra.mxu0 0.0
    %124 = vmatpush.xpose.msra.mxu0 0.0
    %125 = vmatpush.xpose.msra.mxu0 0.0
    %126 = vmatpush.xpose.msra.mxu0 0.0
    %127 = vmatpush.xpose.msra.mxu0 0.0
    %128 = vmatpush.xpose.msra.mxu0 0.0
    %129 = vmatpush.xpose.msra.mxu0 0.0
    %130 = vmatpush.xpose.msra.mxu0 0.0
    %131 = vmatpush.xpose.msra.mxu0 0.0
    %132 = vmatpush.xpose.msra.mxu0 0.0
    %133 = vmatpush.xpose.msra.mxu0 0.0
    %134 = vmatpush.xpose.msra.mxu0 0.0
    %135 = vmatpush.xpose.msra.mxu0 %v118
    %136 = vmatmul.f32.gmra.mxu0 %v116
    %v137 = vpop.f32.mrf.mxu0
    %v138 = vadd.f32 %v111, %v137
    %139 = vdwg.mxu0
    %141 = vrot.lane.b32.xlu0 %v91, 96
    %v142 = vpop.permute.xlu0 %141
    %v143 = vsel %vm115, %v91, 0
    %v145 = vsel %vm115, %v142, 0
    %147 = vmatpush.xpose.msra.mxu0 0.0
    %148 = vmatpush.xpose.msra.mxu0 0.0
    %149 = vmatpush.xpose.msra.mxu0 0.0
    %150 = vmatpush.xpose.msra.mxu0 0.0
    %151 = vmatpush.xpose.msra.mxu0 0.0
    %152 = vmatpush.xpose.msra.mxu0 0.0
    %153 = vmatpush.xpose.msra.mxu0 0.0
    %154 = vmatpush.xpose.msra.mxu0 0.0
    %155 = vmatpush.xpose.msra.mxu0 0.0
    %156 = vmatpush.xpose.msra.mxu0 0.0
    %157 = vmatpush.xpose.msra.mxu0 0.0
    %158 = vmatpush.xpose.msra.mxu0 0.0
    %159 = vmatpush.xpose.msra.mxu0 0.0
    %160 = vmatpush.xpose.msra.mxu0 0.0
    %161 = vmatpush.xpose.msra.mxu0 0.0
    %162 = vmatpush.xpose.msra.mxu0 %v145
    %163 = vmatmul.f32.gmra.mxu0 %v143
    %v164 = vpop.f32.mrf.mxu0
    %v165 = vadd.f32 %v111, %v164
    %166 = vdwg.mxu0
    %168 = vrot.lane.b32.xlu0 %v94, 96
    %v169 = vpop.permute.xlu0 %168
    %v170 = vsel %vm115, %v94, 0
    %v172 = vsel %vm115, %v169, 0
    %174 = vmatpush.xpose.msra.mxu0 0.0
    %175 = vmatpush.xpose.msra.mxu0 0.0
    %176 = vmatpush.xpose.msra.mxu0 0.0
    %177 = vmatpush.xpose.msra.mxu0 0.0
    %178 = vmatpush.xpose.msra.mxu0 0.0
    %179 = vmatpush.xpose.msra.mxu0 0.0
    %180 = vmatpush.xpose.msra.mxu0 0.0
    %181 = vmatpush.xpose.msra.mxu0 0.0
    %182 = vmatpush.xpose.msra.mxu0 0.0
    %183 = vmatpush.xpose.msra.mxu0 0.0
    %184 = vmatpush.xpose.msra.mxu0 0.0
    %185 = vmatpush.xpose.msra.mxu0 0.0
    %186 = vmatpush.xpose.msra.mxu0 0.0
    %187 = vmatpush.xpose.msra.mxu0 0.0
    %188 = vmatpush.xpose.msra.mxu0 0.0
    %189 = vmatpush.xpose.msra.mxu0 %v172
    %190 = vmatmul.f32.gmra.mxu0 %v170
    %v191 = vpop.f32.mrf.mxu0
    %v192 = vadd.f32 %v111, %v191
    %193 = vdwg.mxu0
    %195 = vrot.lane.b32.xlu0 %v97, 96
    %v196 = vpop.permute.xlu0 %195
    %v197 = vsel %vm115, %v97, 0
    %v199 = vsel %vm115, %v196, 0
    %201 = vmatpush.xpose.msra.mxu0 0.0
    %202 = vmatpush.xpose.msra.mxu0 0.0
    %203 = vmatpush.xpose.msra.mxu0 0.0
    %204 = vmatpush.xpose.msra.mxu0 0.0
    %205 = vmatpush.xpose.msra.mxu0 0.0
    %206 = vmatpush.xpose.msra.mxu0 0.0
    %207 = vmatpush.xpose.msra.mxu0 0.0
    %208 = vmatpush.xpose.msra.mxu0 0.0
    %209 = vmatpush.xpose.msra.mxu0 0.0
    %210 = vmatpush.xpose.msra.mxu0 0.0
    %211 = vmatpush.xpose.msra.mxu0 0.0
    %212 = vmatpush.xpose.msra.mxu0 0.0
    %213 = vmatpush.xpose.msra.mxu0 0.0
    %214 = vmatpush.xpose.msra.mxu0 0.0
    %215 = vmatpush.xpose.msra.mxu0 0.0
    %216 = vmatpush.xpose.msra.mxu0 %v199
    %217 = vmatmul.f32.gmra.mxu0 %v197
    %v218 = vpop.f32.mrf.mxu0
    %v219 = vadd.f32 %v111, %v218
    %220 = vdwg.mxu0
    %222 = vrot.lane.b32.xlu0 %v100, 96
    %v223 = vpop.permute.xlu0 %222
    %v224 = vsel %vm115, %v100, 0
    %v226 = vsel %vm115, %v223, 0
    %228 = vmatpush.xpose.msra.mxu0 0.0
    %229 = vmatpush.xpose.msra.mxu0 0.0
    %230 = vmatpush.xpose.msra.mxu0 0.0
    %231 = vmatpush.xpose.msra.mxu0 0.0
    %232 = vmatpush.xpose.msra.mxu0 0.0
    %233 = vmatpush.xpose.msra.mxu0 0.0
    %234 = vmatpush.xpose.msra.mxu0 0.0
    %235 = vmatpush.xpose.msra.mxu0 0.0
    %236 = vmatpush.xpose.msra.mxu0 0.0
    %237 = vmatpush.xpose.msra.mxu0 0.0
    %238 = vmatpush.xpose.msra.mxu0 0.0
    %239 = vmatpush.xpose.msra.mxu0 0.0
    %240 = vmatpush.xpose.msra.mxu0 0.0
    %241 = vmatpush.xpose.msra.mxu0 0.0
    %242 = vmatpush.xpose.msra.mxu0 0.0
    %243 = vmatpush.xpose.msra.mxu0 %v226
    %244 = vmatmul.f32.gmra.mxu0 %v224
    %v245 = vpop.f32.mrf.mxu0
    %v246 = vadd.f32 %v111, %v245
    %247 = vdwg.mxu0
    %249 = vrot.lane.b32.xlu0 %v103, 96
    %v250 = vpop.permute.xlu0 %249
    %v251 = vsel %vm115, %v103, 0
    %v253 = vsel %vm115, %v250, 0
    %255 = vmatpush.xpose.msra.mxu0 0.0
    %256 = vmatpush.xpose.msra.mxu0 0.0
    %257 = vmatpush.xpose.msra.mxu0 0.0
    %258 = vmatpush.xpose.msra.mxu0 0.0
    %259 = vmatpush.xpose.msra.mxu0 0.0
    %260 = vmatpush.xpose.msra.mxu0 0.0
    %261 = vmatpush.xpose.msra.mxu0 0.0
    %262 = vmatpush.xpose.msra.mxu0 0.0
    %263 = vmatpush.xpose.msra.mxu0 0.0
    %264 = vmatpush.xpose.msra.mxu0 0.0
    %265 = vmatpush.xpose.msra.mxu0 0.0
    %266 = vmatpush.xpose.msra.mxu0 0.0
    %267 = vmatpush.xpose.msra.mxu0 0.0
    %268 = vmatpush.xpose.msra.mxu0 0.0
    %269 = vmatpush.xpose.msra.mxu0 0.0
    %270 = vmatpush.xpose.msra.mxu0 %v253
    %271 = vmatmul.f32.gmra.mxu0 %v251
    %v272 = vpop.f32.mrf.mxu0
    %v273 = vadd.f32 %v111, %v272
    %274 = vdwg.mxu0
    %276 = vrot.lane.b32.xlu0 %v106, 96
    %v277 = vpop.permute.xlu0 %276
    %v278 = vsel %vm115, %v106, 0
    %v280 = vsel %vm115, %v277, 0
    %282 = vmatpush.xpose.msra.mxu0 0.0
    %283 = vmatpush.xpose.msra.mxu0 0.0
    %284 = vmatpush.xpose.msra.mxu0 0.0
    %285 = vmatpush.xpose.msra.mxu0 0.0
    %286 = vmatpush.xpose.msra.mxu0 0.0
    %287 = vmatpush.xpose.msra.mxu0 0.0
    %288 = vmatpush.xpose.msra.mxu0 0.0
    %289 = vmatpush.xpose.msra.mxu0 0.0
    %290 = vmatpush.xpose.msra.mxu0 0.0
    %291 = vmatpush.xpose.msra.mxu0 0.0
    %292 = vmatpush.xpose.msra.mxu0 0.0
    %293 = vmatpush.xpose.msra.mxu0 0.0
    %294 = vmatpush.xpose.msra.mxu0 0.0
    %295 = vmatpush.xpose.msra.mxu0 0.0
    %296 = vmatpush.xpose.msra.mxu0 0.0
    %297 = vmatpush.xpose.msra.mxu0 %v280
    %298 = vmatmul.f32.gmra.mxu0 %v278
    %v299 = vpop.f32.mrf.mxu0
    %v300 = vadd.f32 %v111, %v299
    %301 = vdwg.mxu0
    %303 = vrot.lane.b32.xlu0 %v109, 96
    %v304 = vpop.permute.xlu0 %303
    %v305 = vsel %vm115, %v109, 0
    %v307 = vsel %vm115, %v304, 0
    %309 = vmatpush.xpose.msra.mxu0 0.0
    %310 = vmatpush.xpose.msra.mxu0 0.0
    %311 = vmatpush.xpose.msra.mxu0 0.0
    %312 = vmatpush.xpose.msra.mxu0 0.0
    %313 = vmatpush.xpose.msra.mxu0 0.0
    %314 = vmatpush.xpose.msra.mxu0 0.0
    %315 = vmatpush.xpose.msra.mxu0 0.0
    %316 = vmatpush.xpose.msra.mxu0 0.0
    %317 = vmatpush.xpose.msra.mxu0 0.0
    %318 = vmatpush.xpose.msra.mxu0 0.0
    %319 = vmatpush.xpose.msra.mxu0 0.0
    %320 = vmatpush.xpose.msra.mxu0 0.0
    %321 = vmatpush.xpose.msra.mxu0 0.0
    %322 = vmatpush.xpose.msra.mxu0 0.0
    %323 = vmatpush.xpose.msra.mxu0 0.0
    %324 = vmatpush.xpose.msra.mxu0 %v307
    %325 = vmatmul.f32.gmra.mxu0 %v305
    %v326 = vpop.f32.mrf.mxu0
    %v327 = vadd.f32 %v111, %v326
    %328 = vdwg.mxu0
    %v329 = vsel %vm115, %v138, -inf
    %330 = vmax.xlane.f32.xlu0 %v329
    %v331 = vpop.xlane.xlu0 %330
    %v332 = vsel %vm115, %v165, -inf
    %333 = vmax.xlane.f32.xlu0 %v332
    %v334 = vpop.xlane.xlu0 %333
    %v335 = vsel %vm115, %v192, -inf
    %336 = vmax.xlane.f32.xlu0 %v335
    %v337 = vpop.xlane.xlu0 %336
    %v338 = vsel %vm115, %v219, -inf
    %339 = vmax.xlane.f32.xlu0 %v338
    %v340 = vpop.xlane.xlu0 %339
    %v341 = vsel %vm115, %v246, -inf
    %342 = vmax.xlane.f32.xlu0 %v341
    %v343 = vpop.xlane.xlu0 %342
    %v344 = vsel %vm115, %v273, -inf
    %345 = vmax.xlane.f32.xlu0 %v344
    %v346 = vpop.xlane.xlu0 %345
    %v347 = vsel %vm115, %v300, -inf
    %348 = vmax.xlane.f32.xlu0 %v347
    %v349 = vpop.xlane.xlu0 %348
    %v350 = vsel %vm115, %v327, -inf
    %351 = vmax.xlane.f32.xlu0 %v350
    %v352 = vpop.xlane.xlu0 %351
    %v353 = vsub.f32 %v138, %v331
    %v354 = vsub.f32 %v165, %v334
    %v355 = vsub.f32 %v192, %v337
    %v356 = vsub.f32 %v219, %v340
    %v357 = vsub.f32 %v246, %v343
    %v358 = vsub.f32 %v273, %v346
    %v359 = vsub.f32 %v300, %v349
    %v360 = vsub.f32 %v327, %v352
    %v361 = vmul.f32 %v353, 1.442695
    %v362 = vpow.pop %v361
    %v363 = vmul.f32 %v354, 1.442695
    %v364 = vpow.pop %v363
    %v365 = vmul.f32 %v355, 1.442695
    %v366 = vpow.pop %v365
    %v367 = vmul.f32 %v356, 1.442695
    %v368 = vpow.pop %v367
    %v369 = vmul.f32 %v357, 1.442695
    %v370 = vpow.pop %v369
    %v371 = vmul.f32 %v358, 1.442695
    %v372 = vpow.pop %v371
    %v373 = vmul.f32 %v359, 1.442695
    %v374 = vpow.pop %v373
    %v375 = vmul.f32 %v360, 1.442695
    %v376 = vpow.pop %v375
    %v377 = vsel %vm115, %v362, 0.0
    %378 = vadd.xlane.f32.xlu0 %v377
    %v379 = vpop.xlane.xlu0 %378
    %v380 = vsel %vm115, %v364, 0.0
    %381 = vadd.xlane.f32.xlu0 %v380
    %v382 = vpop.xlane.xlu0 %381
    %v383 = vsel %vm115, %v366, 0.0
    %384 = vadd.xlane.f32.xlu0 %v383
    %v385 = vpop.xlane.xlu0 %384
    %v386 = vsel %vm115, %v368, 0.0
    %387 = vadd.xlane.f32.xlu0 %v386
    %v388 = vpop.xlane.xlu0 %387
    %v389 = vsel %vm115, %v370, 0.0
    %390 = vadd.xlane.f32.xlu0 %v389
    %v391 = vpop.xlane.xlu0 %390
    %v392 = vsel %vm115, %v372, 0.0
    %393 = vadd.xlane.f32.xlu0 %v392
    %v394 = vpop.xlane.xlu0 %393
    %v395 = vsel %vm115, %v374, 0.0
    %396 = vadd.xlane.f32.xlu0 %v395
    %v397 = vpop.xlane.xlu0 %396
    %v398 = vsel %vm115, %v376, 0.0
    %399 = vadd.xlane.f32.xlu0 %v398
    %v400 = vpop.xlane.xlu0 %399
    %v401 = vrcp.pop %v379
    %v402 = vrcp.pop %v382
    %v403 = vrcp.pop %v385
    %v404 = vrcp.pop %v388
    %v405 = vrcp.pop %v391
    %v406 = vrcp.pop %v394
    %v407 = vrcp.pop %v397
    %v408 = vrcp.pop %v400
    %v409 = vmul.f32 %v362, %v401
    %v410 = vmul.f32 %v364, %v402
    %v411 = vmul.f32 %v366, %v403
    %v412 = vmul.f32 %v368, %v404
    %v413 = vmul.f32 %v370, %v405
    %v414 = vmul.f32 %v372, %v406
    %v415 = vmul.f32 %v374, %v407
    %v416 = vmul.f32 %v376, %v408
    %v417 = vadd.f32 %v409, 0.0
    %v418 = vadd.f32 %v410, 0.0
    %v419 = vadd.f32 %v411, 0.0
    %v420 = vadd.f32 %v412, 0.0
    %v421 = vadd.f32 %v413, 0.0
    %v422 = vadd.f32 %v414, 0.0
    %v423 = vadd.f32 %v415, 0.0
    %v424 = vadd.f32 %v416, 0.0
    %425 = vrot.lane.b32.xlu0 %v88, 64
    %v426 = vpop.permute.xlu0 %425
    %v429 = vsel %vm115, %v409, 0
    %431 = vmatpush.msra.mxu0 0.0
    %432 = vmatpush.msra.mxu0 0.0
    %433 = vmatpush.msra.mxu0 0.0
    %434 = vmatpush.msra.mxu0 0.0
    %435 = vmatpush.msra.mxu0 0.0
    %436 = vmatpush.msra.mxu0 0.0
    %437 = vmatpush.msra.mxu0 0.0
    %438 = vmatpush.msra.mxu0 0.0
    %439 = vmatpush.msra.mxu0 0.0
    %440 = vmatpush.msra.mxu0 0.0
    %441 = vmatpush.msra.mxu0 0.0
    %442 = vmatpush.msra.mxu0 0.0
    %443 = vmatpush.msra.mxu0 0.0
    %444 = vmatpush.msra.mxu0 0.0
    %445 = vmatpush.msra.mxu0 0.0
    %446 = vmatpush.msra.mxu0 %v426
    %447 = vmatmul.f32.gmra.mxu0 %v429
    %v448 = vpop.f32.mrf.mxu0
    %v449 = vadd.f32 0.0, %v448
    %450 = vdwg.mxu0
    %451 = vrot.lane.b32.xlu0 %v91, 64
    %v452 = vpop.permute.xlu0 %451
    %v455 = vsel %vm115, %v410, 0
    %457 = vmatpush.msra.mxu0 0.0
    %458 = vmatpush.msra.mxu0 0.0
    %459 = vmatpush.msra.mxu0 0.0
    %460 = vmatpush.msra.mxu0 0.0
    %461 = vmatpush.msra.mxu0 0.0
    %462 = vmatpush.msra.mxu0 0.0
    %463 = vmatpush.msra.mxu0 0.0
    %464 = vmatpush.msra.mxu0 0.0
    %465 = vmatpush.msra.mxu0 0.0
    %466 = vmatpush.msra.mxu0 0.0
    %467 = vmatpush.msra.mxu0 0.0
    %468 = vmatpush.msra.mxu0 0.0
    %469 = vmatpush.msra.mxu0 0.0
    %470 = vmatpush.msra.mxu0 0.0
    %471 = vmatpush.msra.mxu0 0.0
    %472 = vmatpush.msra.mxu0 %v452
    %473 = vmatmul.f32.gmra.mxu0 %v455
    %v474 = vpop.f32.mrf.mxu0
    %v475 = vadd.f32 0.0, %v474
    %476 = vdwg.mxu0
    %477 = vrot.lane.b32.xlu0 %v94, 64
    %v478 = vpop.permute.xlu0 %477
    %v481 = vsel %vm115, %v411, 0
    %483 = vmatpush.msra.mxu0 0.0
    %484 = vmatpush.msra.mxu0 0.0
    %485 = vmatpush.msra.mxu0 0.0
    %486 = vmatpush.msra.mxu0 0.0
    %487 = vmatpush.msra.mxu0 0.0
    %488 = vmatpush.msra.mxu0 0.0
    %489 = vmatpush.msra.mxu0 0.0
    %490 = vmatpush.msra.mxu0 0.0
    %491 = vmatpush.msra.mxu0 0.0
    %492 = vmatpush.msra.mxu0 0.0
    %493 = vmatpush.msra.mxu0 0.0
    %494 = vmatpush.msra.mxu0 0.0
    %495 = vmatpush.msra.mxu0 0.0
    %496 = vmatpush.msra.mxu0 0.0
    %497 = vmatpush.msra.mxu0 0.0
    %498 = vmatpush.msra.mxu0 %v478
    %499 = vmatmul.f32.gmra.mxu0 %v481
    %v500 = vpop.f32.mrf.mxu0
    %v501 = vadd.f32 0.0, %v500
    %502 = vdwg.mxu0
    %503 = vrot.lane.b32.xlu0 %v97, 64
    %v504 = vpop.permute.xlu0 %503
    %v507 = vsel %vm115, %v412, 0
    %509 = vmatpush.msra.mxu0 0.0
    %510 = vmatpush.msra.mxu0 0.0
    %511 = vmatpush.msra.mxu0 0.0
    %512 = vmatpush.msra.mxu0 0.0
    %513 = vmatpush.msra.mxu0 0.0
    %514 = vmatpush.msra.mxu0 0.0
    %515 = vmatpush.msra.mxu0 0.0
    %516 = vmatpush.msra.mxu0 0.0
    %517 = vmatpush.msra.mxu0 0.0
    %518 = vmatpush.msra.mxu0 0.0
    %519 = vmatpush.msra.mxu0 0.0
    %520 = vmatpush.msra.mxu0 0.0
    %521 = vmatpush.msra.mxu0 0.0
    %522 = vmatpush.msra.mxu0 0.0
    %523 = vmatpush.msra.mxu0 0.0
    %524 = vmatpush.msra.mxu0 %v504
    %525 = vmatmul.f32.gmra.mxu0 %v507
    %v526 = vpop.f32.mrf.mxu0
    %v527 = vadd.f32 0.0, %v526
    %528 = vdwg.mxu0
    %529 = vrot.lane.b32.xlu0 %v100, 64
    %v530 = vpop.permute.xlu0 %529
    %v533 = vsel %vm115, %v413, 0
    %535 = vmatpush.msra.mxu0 0.0
    %536 = vmatpush.msra.mxu0 0.0
    %537 = vmatpush.msra.mxu0 0.0
    %538 = vmatpush.msra.mxu0 0.0
    %539 = vmatpush.msra.mxu0 0.0
    %540 = vmatpush.msra.mxu0 0.0
    %541 = vmatpush.msra.mxu0 0.0
    %542 = vmatpush.msra.mxu0 0.0
    %543 = vmatpush.msra.mxu0 0.0
    %544 = vmatpush.msra.mxu0 0.0
    %545 = vmatpush.msra.mxu0 0.0
    %546 = vmatpush.msra.mxu0 0.0
    %547 = vmatpush.msra.mxu0 0.0
    %548 = vmatpush.msra.mxu0 0.0
    %549 = vmatpush.msra.mxu0 0.0
    %550 = vmatpush.msra.mxu0 %v530
    %551 = vmatmul.f32.gmra.mxu0 %v533
    %v552 = vpop.f32.mrf.mxu0
    %v553 = vadd.f32 0.0, %v552
    %554 = vdwg.mxu0
    %555 = vrot.lane.b32.xlu0 %v103, 64
    %v556 = vpop.permute.xlu0 %555
    %v559 = vsel %vm115, %v414, 0
    %561 = vmatpush.msra.mxu0 0.0
    %562 = vmatpush.msra.mxu0 0.0
    %563 = vmatpush.msra.mxu0 0.0
    %564 = vmatpush.msra.mxu0 0.0
    %565 = vmatpush.msra.mxu0 0.0
    %566 = vmatpush.msra.mxu0 0.0
    %567 = vmatpush.msra.mxu0 0.0
    %568 = vmatpush.msra.mxu0 0.0
    %569 = vmatpush.msra.mxu0 0.0
    %570 = vmatpush.msra.mxu0 0.0
    %571 = vmatpush.msra.mxu0 0.0
    %572 = vmatpush.msra.mxu0 0.0
    %573 = vmatpush.msra.mxu0 0.0
    %574 = vmatpush.msra.mxu0 0.0
    %575 = vmatpush.msra.mxu0 0.0
    %576 = vmatpush.msra.mxu0 %v556
    %577 = vmatmul.f32.gmra.mxu0 %v559
    %v578 = vpop.f32.mrf.mxu0
    %v579 = vadd.f32 0.0, %v578
    %580 = vdwg.mxu0
    %581 = vrot.lane.b32.xlu0 %v106, 64
    %v582 = vpop.permute.xlu0 %581
    %v585 = vsel %vm115, %v415, 0
    %587 = vmatpush.msra.mxu0 0.0
    %588 = vmatpush.msra.mxu0 0.0
    %589 = vmatpush.msra.mxu0 0.0
    %590 = vmatpush.msra.mxu0 0.0
    %591 = vmatpush.msra.mxu0 0.0
    %592 = vmatpush.msra.mxu0 0.0
    %593 = vmatpush.msra.mxu0 0.0
    %594 = vmatpush.msra.mxu0 0.0
    %595 = vmatpush.msra.mxu0 0.0
    %596 = vmatpush.msra.mxu0 0.0
    %597 = vmatpush.msra.mxu0 0.0
    %598 = vmatpush.msra.mxu0 0.0
    %599 = vmatpush.msra.mxu0 0.0
    %600 = vmatpush.msra.mxu0 0.0
    %601 = vmatpush.msra.mxu0 0.0
    %602 = vmatpush.msra.mxu0 %v582
    %603 = vmatmul.f32.gmra.mxu0 %v585
    %v604 = vpop.f32.mrf.mxu0
    %v605 = vadd.f32 0.0, %v604
    %606 = vdwg.mxu0
    %607 = vrot.lane.b32.xlu0 %v109, 64
    %v608 = vpop.permute.xlu0 %607
    %v611 = vsel %vm115, %v416, 0
    %613 = vmatpush.msra.mxu0 0.0
    %614 = vmatpush.msra.mxu0 0.0
    %615 = vmatpush.msra.mxu0 0.0
    %616 = vmatpush.msra.mxu0 0.0
    %617 = vmatpush.msra.mxu0 0.0
    %618 = vmatpush.msra.mxu0 0.0
    %619 = vmatpush.msra.mxu0 0.0
    %620 = vmatpush.msra.mxu0 0.0
    %621 = vmatpush.msra.mxu0 0.0
    %622 = vmatpush.msra.mxu0 0.0
    %623 = vmatpush.msra.mxu0 0.0
    %624 = vmatpush.msra.mxu0 0.0
    %625 = vmatpush.msra.mxu0 0.0
    %626 = vmatpush.msra.mxu0 0.0
    %627 = vmatpush.msra.mxu0 0.0
    %628 = vmatpush.msra.mxu0 %v608
    %629 = vmatmul.f32.gmra.mxu0 %v611
    %v630 = vpop.f32.mrf.mxu0
    %v631 = vadd.f32 0.0, %v630
    %632 = vdwg.mxu0
    %633 = vrot.lane.b32.xlu0 %v88, 120
    %v634 = vpop.permute.xlu0 %633
    %635 = vrot.lane.b32.xlu0 %v88, 88
    %v636 = vpop.permute.xlu0 %635
    %v637 = vsel %vm115, %v634, 0
    %v639 = vsel %vm115, %v636, 0
    %641 = vmatpush.xpose.msra.mxu0 0.0
    %642 = vmatpush.xpose.msra.mxu0 0.0
    %643 = vmatpush.xpose.msra.mxu0 0.0
    %644 = vmatpush.xpose.msra.mxu0 0.0
    %645 = vmatpush.xpose.msra.mxu0 0.0
    %646 = vmatpush.xpose.msra.mxu0 0.0
    %647 = vmatpush.xpose.msra.mxu0 0.0
    %648 = vmatpush.xpose.msra.mxu0 0.0
    %649 = vmatpush.xpose.msra.mxu0 0.0
    %650 = vmatpush.xpose.msra.mxu0 0.0
    %651 = vmatpush.xpose.msra.mxu0 0.0
    %652 = vmatpush.xpose.msra.mxu0 0.0
    %653 = vmatpush.xpose.msra.mxu0 0.0
    %654 = vmatpush.xpose.msra.mxu0 0.0
    %655 = vmatpush.xpose.msra.mxu0 0.0
    %656 = vmatpush.xpose.msra.mxu0 %v639
    %657 = vmatmul.f32.gmra.mxu0 %v637
    %v658 = vpop.f32.mrf.mxu0
    %v659 = vadd.f32 %v111, %v658
    %660 = vdwg.mxu0
    %661 = vrot.lane.b32.xlu0 %v91, 120
    %v662 = vpop.permute.xlu0 %661
    %663 = vrot.lane.b32.xlu0 %v91, 88
    %v664 = vpop.permute.xlu0 %663
    %v665 = vsel %vm115, %v662, 0
    %v667 = vsel %vm115, %v664, 0
    %669 = vmatpush.xpose.msra.mxu0 0.0
    %670 = vmatpush.xpose.msra.mxu0 0.0
    %671 = vmatpush.xpose.msra.mxu0 0.0
    %672 = vmatpush.xpose.msra.mxu0 0.0
    %673 = vmatpush.xpose.msra.mxu0 0.0
    %674 = vmatpush.xpose.msra.mxu0 0.0
    %675 = vmatpush.xpose.msra.mxu0 0.0
    %676 = vmatpush.xpose.msra.mxu0 0.0
    %677 = vmatpush.xpose.msra.mxu0 0.0
    %678 = vmatpush.xpose.msra.mxu0 0.0
    %679 = vmatpush.xpose.msra.mxu0 0.0
    %680 = vmatpush.xpose.msra.mxu0 0.0
    %681 = vmatpush.xpose.msra.mxu0 0.0
    %682 = vmatpush.xpose.msra.mxu0 0.0
    %683 = vmatpush.xpose.msra.mxu0 0.0
    %684 = vmatpush.xpose.msra.mxu0 %v667
    %685 = vmatmul.f32.gmra.mxu0 %v665
    %v686 = vpop.f32.mrf.mxu0
    %v687 = vadd.f32 %v111, %v686
    %688 = vdwg.mxu0
    %689 = vrot.lane.b32.xlu0 %v94, 120
    %v690 = vpop.permute.xlu0 %689
    %691 = vrot.lane.b32.xlu0 %v94, 88
    %v692 = vpop.permute.xlu0 %691
    %v693 = vsel %vm115, %v690, 0
    %v695 = vsel %vm115, %v692, 0
    %697 = vmatpush.xpose.msra.mxu0 0.0
    %698 = vmatpush.xpose.msra.mxu0 0.0
    %699 = vmatpush.xpose.msra.mxu0 0.0
    %700 = vmatpush.xpose.msra.mxu0 0.0
    %701 = vmatpush.xpose.msra.mxu0 0.0
    %702 = vmatpush.xpose.msra.mxu0 0.0
    %703 = vmatpush.xpose.msra.mxu0 0.0
    %704 = vmatpush.xpose.msra.mxu0 0.0
    %705 = vmatpush.xpose.msra.mxu0 0.0
    %706 = vmatpush.xpose.msra.mxu0 0.0
    %707 = vmatpush.xpose.msra.mxu0 0.0
    %708 = vmatpush.xpose.msra.mxu0 0.0
    %709 = vmatpush.xpose.msra.mxu0 0.0
    %710 = vmatpush.xpose.msra.mxu0 0.0
    %711 = vmatpush.xpose.msra.mxu0 0.0
    %712 = vmatpush.xpose.msra.mxu0 %v695
    %713 = vmatmul.f32.gmra.mxu0 %v693
    %v714 = vpop.f32.mrf.mxu0
    %v715 = vadd.f32 %v111, %v714
    %716 = vdwg.mxu0
    %717 = vrot.lane.b32.xlu0 %v97, 120
    %v718 = vpop.permute.xlu0 %717
    %719 = vrot.lane.b32.xlu0 %v97, 88
    %v720 = vpop.permute.xlu0 %719
    %v721 = vsel %vm115, %v718, 0
    %v723 = vsel %vm115, %v720, 0
    %725 = vmatpush.xpose.msra.mxu0 0.0
    %726 = vmatpush.xpose.msra.mxu0 0.0
    %727 = vmatpush.xpose.msra.mxu0 0.0
    %728 = vmatpush.xpose.msra.mxu0 0.0
    %729 = vmatpush.xpose.msra.mxu0 0.0
    %730 = vmatpush.xpose.msra.mxu0 0.0
    %731 = vmatpush.xpose.msra.mxu0 0.0
    %732 = vmatpush.xpose.msra.mxu0 0.0
    %733 = vmatpush.xpose.msra.mxu0 0.0
    %734 = vmatpush.xpose.msra.mxu0 0.0
    %735 = vmatpush.xpose.msra.mxu0 0.0
    %736 = vmatpush.xpose.msra.mxu0 0.0
    %737 = vmatpush.xpose.msra.mxu0 0.0
    %738 = vmatpush.xpose.msra.mxu0 0.0
    %739 = vmatpush.xpose.msra.mxu0 0.0
    %740 = vmatpush.xpose.msra.mxu0 %v723
    %741 = vmatmul.f32.gmra.mxu0 %v721
    %v742 = vpop.f32.mrf.mxu0
    %v743 = vadd.f32 %v111, %v742
    %744 = vdwg.mxu0
    %745 = vrot.lane.b32.xlu0 %v100, 120
    %v746 = vpop.permute.xlu0 %745
    %747 = vrot.lane.b32.xlu0 %v100, 88
    %v748 = vpop.permute.xlu0 %747
    %v749 = vsel %vm115, %v746, 0
    %v751 = vsel %vm115, %v748, 0
    %753 = vmatpush.xpose.msra.mxu0 0.0
    %754 = vmatpush.xpose.msra.mxu0 0.0
    %755 = vmatpush.xpose.msra.mxu0 0.0
    %756 = vmatpush.xpose.msra.mxu0 0.0
    %757 = vmatpush.xpose.msra.mxu0 0.0
    %758 = vmatpush.xpose.msra.mxu0 0.0
    %759 = vmatpush.xpose.msra.mxu0 0.0
    %760 = vmatpush.xpose.msra.mxu0 0.0
    %761 = vmatpush.xpose.msra.mxu0 0.0
    %762 = vmatpush.xpose.msra.mxu0 0.0
    %763 = vmatpush.xpose.msra.mxu0 0.0
    %764 = vmatpush.xpose.msra.mxu0 0.0
    %765 = vmatpush.xpose.msra.mxu0 0.0
    %766 = vmatpush.xpose.msra.mxu0 0.0
    %767 = vmatpush.xpose.msra.mxu0 0.0
    %768 = vmatpush.xpose.msra.mxu0 %v751
    %769 = vmatmul.f32.gmra.mxu0 %v749
    %v770 = vpop.f32.mrf.mxu0
    %v771 = vadd.f32 %v111, %v770
    %772 = vdwg.mxu0
    %773 = vrot.lane.b32.xlu0 %v103, 120
    %v774 = vpop.permute.xlu0 %773
    %775 = vrot.lane.b32.xlu0 %v103, 88
    %v776 = vpop.permute.xlu0 %775
    %v777 = vsel %vm115, %v774, 0
    %v779 = vsel %vm115, %v776, 0
    %781 = vmatpush.xpose.msra.mxu0 0.0
    %782 = vmatpush.xpose.msra.mxu0 0.0
    %783 = vmatpush.xpose.msra.mxu0 0.0
    %784 = vmatpush.xpose.msra.mxu0 0.0
    %785 = vmatpush.xpose.msra.mxu0 0.0
    %786 = vmatpush.xpose.msra.mxu0 0.0
    %787 = vmatpush.xpose.msra.mxu0 0.0
    %788 = vmatpush.xpose.msra.mxu0 0.0
    %789 = vmatpush.xpose.msra.mxu0 0.0
    %790 = vmatpush.xpose.msra.mxu0 0.0
    %791 = vmatpush.xpose.msra.mxu0 0.0
    %792 = vmatpush.xpose.msra.mxu0 0.0
    %793 = vmatpush.xpose.msra.mxu0 0.0
    %794 = vmatpush.xpose.msra.mxu0 0.0
    %795 = vmatpush.xpose.msra.mxu0 0.0
    %796 = vmatpush.xpose.msra.mxu0 %v779
    %797 = vmatmul.f32.gmra.mxu0 %v777
    %v798 = vpop.f32.mrf.mxu0
    %v799 = vadd.f32 %v111, %v798
    %800 = vdwg.mxu0
    %801 = vrot.lane.b32.xlu0 %v106, 120
    %v802 = vpop.permute.xlu0 %801
    %803 = vrot.lane.b32.xlu0 %v106, 88
    %v804 = vpop.permute.xlu0 %803
    %v805 = vsel %vm115, %v802, 0
    %v807 = vsel %vm115, %v804, 0
    %809 = vmatpush.xpose.msra.mxu0 0.0
    %810 = vmatpush.xpose.msra.mxu0 0.0
    %811 = vmatpush.xpose.msra.mxu0 0.0
    %812 = vmatpush.xpose.msra.mxu0 0.0
    %813 = vmatpush.xpose.msra.mxu0 0.0
    %814 = vmatpush.xpose.msra.mxu0 0.0
    %815 = vmatpush.xpose.msra.mxu0 0.0
    %816 = vmatpush.xpose.msra.mxu0 0.0
    %817 = vmatpush.xpose.msra.mxu0 0.0
    %818 = vmatpush.xpose.msra.mxu0 0.0
    %819 = vmatpush.xpose.msra.mxu0 0.0
    %820 = vmatpush.xpose.msra.mxu0 0.0
    %821 = vmatpush.xpose.msra.mxu0 0.0
    %822 = vmatpush.xpose.msra.mxu0 0.0
    %823 = vmatpush.xpose.msra.mxu0 0.0
    %824 = vmatpush.xpose.msra.mxu0 %v807
    %825 = vmatmul.f32.gmra.mxu0 %v805
    %v826 = vpop.f32.mrf.mxu0
    %v827 = vadd.f32 %v111, %v826
    %828 = vdwg.mxu0
    %829 = vrot.lane.b32.xlu0 %v109, 120
    %v830 = vpop.permute.xlu0 %829
    %831 = vrot.lane.b32.xlu0 %v109, 88
    %v832 = vpop.permute.xlu0 %831
    %v833 = vsel %vm115, %v830, 0
    %v835 = vsel %vm115, %v832, 0
    %837 = vmatpush.xpose.msra.mxu0 0.0
    %838 = vmatpush.xpose.msra.mxu0 0.0
    %839 = vmatpush.xpose.msra.mxu0 0.0
    %840 = vmatpush.xpose.msra.mxu0 0.0
    %841 = vmatpush.xpose.msra.mxu0 0.0
    %842 = vmatpush.xpose.msra.mxu0 0.0
    %843 = vmatpush.xpose.msra.mxu0 0.0
    %844 = vmatpush.xpose.msra.mxu0 0.0
    %845 = vmatpush.xpose.msra.mxu0 0.0
    %846 = vmatpush.xpose.msra.mxu0 0.0
    %847 = vmatpush.xpose.msra.mxu0 0.0
    %848 = vmatpush.xpose.msra.mxu0 0.0
    %849 = vmatpush.xpose.msra.mxu0 0.0
    %850 = vmatpush.xpose.msra.mxu0 0.0
    %851 = vmatpush.xpose.msra.mxu0 0.0
    %852 = vmatpush.xpose.msra.mxu0 %v835
    %853 = vmatmul.f32.gmra.mxu0 %v833
    %v854 = vpop.f32.mrf.mxu0
    %v855 = vadd.f32 %v111, %v854
    %856 = vdwg.mxu0
    %v857 = vsel %vm115, %v659, -inf
    %858 = vmax.xlane.f32.xlu0 %v857
    %v859 = vpop.xlane.xlu0 %858
    %v860 = vsel %vm115, %v687, -inf
    %861 = vmax.xlane.f32.xlu0 %v860
    %v862 = vpop.xlane.xlu0 %861
    %v863 = vsel %vm115, %v715, -inf
    %864 = vmax.xlane.f32.xlu0 %v863
    %v865 = vpop.xlane.xlu0 %864
    %v866 = vsel %vm115, %v743, -inf
    %867 = vmax.xlane.f32.xlu0 %v866
    %v868 = vpop.xlane.xlu0 %867
    %v869 = vsel %vm115, %v771, -inf
    %870 = vmax.xlane.f32.xlu0 %v869
    %v871 = vpop.xlane.xlu0 %870
    %v872 = vsel %vm115, %v799, -inf
    %873 = vmax.xlane.f32.xlu0 %v872
    %v874 = vpop.xlane.xlu0 %873
    %v875 = vsel %vm115, %v827, -inf
    %876 = vmax.xlane.f32.xlu0 %v875
    %v877 = vpop.xlane.xlu0 %876
    %v878 = vsel %vm115, %v855, -inf
    %879 = vmax.xlane.f32.xlu0 %v878
    %v880 = vpop.xlane.xlu0 %879
    %v881 = vsub.f32 %v659, %v859
    %v882 = vsub.f32 %v687, %v862
    %v883 = vsub.f32 %v715, %v865
    %v884 = vsub.f32 %v743, %v868
    %v885 = vsub.f32 %v771, %v871
    %v886 = vsub.f32 %v799, %v874
    %v887 = vsub.f32 %v827, %v877
    %v888 = vsub.f32 %v855, %v880
    %v889 = vmul.f32 %v881, 1.442695
    %v890 = vpow.pop %v889
    %v891 = vmul.f32 %v882, 1.442695
    %v892 = vpow.pop %v891
    %v893 = vmul.f32 %v883, 1.442695
    %v894 = vpow.pop %v893
    %v895 = vmul.f32 %v884, 1.442695
    %v896 = vpow.pop %v895
    %v897 = vmul.f32 %v885, 1.442695
    %v898 = vpow.pop %v897
    %v899 = vmul.f32 %v886, 1.442695
    %v900 = vpow.pop %v899
    %v901 = vmul.f32 %v887, 1.442695
    %v902 = vpow.pop %v901
    %v903 = vmul.f32 %v888, 1.442695
    %v904 = vpow.pop %v903
    %v905 = vsel %vm115, %v890, 0.0
    %906 = vadd.xlane.f32.xlu0 %v905
    %v907 = vpop.xlane.xlu0 %906
    %v908 = vsel %vm115, %v892, 0.0
    %909 = vadd.xlane.f32.xlu0 %v908
    %v910 = vpop.xlane.xlu0 %909
    %v911 = vsel %vm115, %v894, 0.0
    %912 = vadd.xlane.f32.xlu0 %v911
    %v913 = vpop.xlane.xlu0 %912
    %v914 = vsel %vm115, %v896, 0.0
    %915 = vadd.xlane.f32.xlu0 %v914
    %v916 = vpop.xlane.xlu0 %915
    %v917 = vsel %vm115, %v898, 0.0
    %918 = vadd.xlane.f32.xlu0 %v917
    %v919 = vpop.xlane.xlu0 %918
    %v920 = vsel %vm115, %v900, 0.0
    %921 = vadd.xlane.f32.xlu0 %v920
    %v922 = vpop.xlane.xlu0 %921
    %v923 = vsel %vm115, %v902, 0.0
    %924 = vadd.xlane.f32.xlu0 %v923
    %v925 = vpop.xlane.xlu0 %924
    %v926 = vsel %vm115, %v904, 0.0
    %927 = vadd.xlane.f32.xlu0 %v926
    %v928 = vpop.xlane.xlu0 %927
    %v929 = vrcp.pop %v907
    %v930 = vrcp.pop %v910
    %v931 = vrcp.pop %v913
    %v932 = vrcp.pop %v916
    %v933 = vrcp.pop %v919
    %v934 = vrcp.pop %v922
    %v935 = vrcp.pop %v925
    %v936 = vrcp.pop %v928
    %v937 = vmul.f32 %v890, %v929
    %v938 = vmul.f32 %v892, %v930
    %v939 = vmul.f32 %v894, %v931
    %v940 = vmul.f32 %v896, %v932
    %v941 = vmul.f32 %v898, %v933
    %v942 = vmul.f32 %v900, %v934
    %v943 = vmul.f32 %v902, %v935
    %v944 = vmul.f32 %v904, %v936
    %v945 = vadd.f32 %v417, %v937
    %v946 = vadd.f32 %v418, %v938
    %v947 = vadd.f32 %v419, %v939
    %v948 = vadd.f32 %v420, %v940
    %v949 = vadd.f32 %v421, %v941
    %v950 = vadd.f32 %v422, %v942
    %v951 = vadd.f32 %v423, %v943
    %v952 = vadd.f32 %v424, %v944
    %953 = vrot.lane.b32.xlu0 %v88, 56
    %v954 = vpop.permute.xlu0 %953
    %v957 = vsel %vm115, %v937, 0
    %959 = vmatpush.msra.mxu0 0.0
    %960 = vmatpush.msra.mxu0 0.0
    %961 = vmatpush.msra.mxu0 0.0
    %962 = vmatpush.msra.mxu0 0.0
    %963 = vmatpush.msra.mxu0 0.0
    %964 = vmatpush.msra.mxu0 0.0
    %965 = vmatpush.msra.mxu0 0.0
    %966 = vmatpush.msra.mxu0 0.0
    %967 = vmatpush.msra.mxu0 0.0
    %968 = vmatpush.msra.mxu0 0.0
    %969 = vmatpush.msra.mxu0 0.0
    %970 = vmatpush.msra.mxu0 0.0
    %971 = vmatpush.msra.mxu0 0.0
    %972 = vmatpush.msra.mxu0 0.0
    %973 = vmatpush.msra.mxu0 0.0
    %974 = vmatpush.msra.mxu0 %v954
    %975 = vmatmul.f32.gmra.mxu0 %v957
    %v976 = vpop.f32.mrf.mxu0
    %v977 = vadd.f32 0.0, %v976
    %978 = vdwg.mxu0
    %979 = vrot.lane.b32.xlu0 %v91, 56
    %v980 = vpop.permute.xlu0 %979
    %v983 = vsel %vm115, %v938, 0
    %985 = vmatpush.msra.mxu0 0.0
    %986 = vmatpush.msra.mxu0 0.0
    %987 = vmatpush.msra.mxu0 0.0
    %988 = vmatpush.msra.mxu0 0.0
    %989 = vmatpush.msra.mxu0 0.0
    %990 = vmatpush.msra.mxu0 0.0
    %991 = vmatpush.msra.mxu0 0.0
    %992 = vmatpush.msra.mxu0 0.0
    %993 = vmatpush.msra.mxu0 0.0
    %994 = vmatpush.msra.mxu0 0.0
    %995 = vmatpush.msra.mxu0 0.0
    %996 = vmatpush.msra.mxu0 0.0
    %997 = vmatpush.msra.mxu0 0.0
    %998 = vmatpush.msra.mxu0 0.0
    %999 = vmatpush.msra.mxu0 0.0
    %1000 = vmatpush.msra.mxu0 %v980
    %1001 = vmatmul.f32.gmra.mxu0 %v983
    %v1002 = vpop.f32.mrf.mxu0
    %v1003 = vadd.f32 0.0, %v1002
    %1004 = vdwg.mxu0
    %1005 = vrot.lane.b32.xlu0 %v94, 56
    %v1006 = vpop.permute.xlu0 %1005
    %v1009 = vsel %vm115, %v939, 0
    %1011 = vmatpush.msra.mxu0 0.0
    %1012 = vmatpush.msra.mxu0 0.0
    %1013 = vmatpush.msra.mxu0 0.0
    %1014 = vmatpush.msra.mxu0 0.0
    %1015 = vmatpush.msra.mxu0 0.0
    %1016 = vmatpush.msra.mxu0 0.0
    %1017 = vmatpush.msra.mxu0 0.0
    %1018 = vmatpush.msra.mxu0 0.0
    %1019 = vmatpush.msra.mxu0 0.0
    %1020 = vmatpush.msra.mxu0 0.0
    %1021 = vmatpush.msra.mxu0 0.0
    %1022 = vmatpush.msra.mxu0 0.0
    %1023 = vmatpush.msra.mxu0 0.0
    %1024 = vmatpush.msra.mxu0 0.0
    %1025 = vmatpush.msra.mxu0 0.0
    %1026 = vmatpush.msra.mxu0 %v1006
    %1027 = vmatmul.f32.gmra.mxu0 %v1009
    %v1028 = vpop.f32.mrf.mxu0
    %v1029 = vadd.f32 0.0, %v1028
    %1030 = vdwg.mxu0
    %1031 = vrot.lane.b32.xlu0 %v97, 56
    %v1032 = vpop.permute.xlu0 %1031
    %v1035 = vsel %vm115, %v940, 0
    %1037 = vmatpush.msra.mxu0 0.0
    %1038 = vmatpush.msra.mxu0 0.0
    %1039 = vmatpush.msra.mxu0 0.0
    %1040 = vmatpush.msra.mxu0 0.0
    %1041 = vmatpush.msra.mxu0 0.0
    %1042 = vmatpush.msra.mxu0 0.0
    %1043 = vmatpush.msra.mxu0 0.0
    %1044 = vmatpush.msra.mxu0 0.0
    %1045 = vmatpush.msra.mxu0 0.0
    %1046 = vmatpush.msra.mxu0 0.0
    %1047 = vmatpush.msra.mxu0 0.0
    %1048 = vmatpush.msra.mxu0 0.0
    %1049 = vmatpush.msra.mxu0 0.0
    %1050 = vmatpush.msra.mxu0 0.0
    %1051 = vmatpush.msra.mxu0 0.0
    %1052 = vmatpush.msra.mxu0 %v1032
    %1053 = vmatmul.f32.gmra.mxu0 %v1035
    %v1054 = vpop.f32.mrf.mxu0
    %v1055 = vadd.f32 0.0, %v1054
    %1056 = vdwg.mxu0
    %1057 = vrot.lane.b32.xlu0 %v100, 56
    %v1058 = vpop.permute.xlu0 %1057
    %v1061 = vsel %vm115, %v941, 0
    %1063 = vmatpush.msra.mxu0 0.0
    %1064 = vmatpush.msra.mxu0 0.0
    %1065 = vmatpush.msra.mxu0 0.0
    %1066 = vmatpush.msra.mxu0 0.0
    %1067 = vmatpush.msra.mxu0 0.0
    %1068 = vmatpush.msra.mxu0 0.0
    %1069 = vmatpush.msra.mxu0 0.0
    %1070 = vmatpush.msra.mxu0 0.0
    %1071 = vmatpush.msra.mxu0 0.0
    %1072 = vmatpush.msra.mxu0 0.0
    %1073 = vmatpush.msra.mxu0 0.0
    %1074 = vmatpush.msra.mxu0 0.0
    %1075 = vmatpush.msra.mxu0 0.0
    %1076 = vmatpush.msra.mxu0 0.0
    %1077 = vmatpush.msra.mxu0 0.0
    %1078 = vmatpush.msra.mxu0 %v1058
    %1079 = vmatmul.f32.gmra.mxu0 %v1061
    %v1080 = vpop.f32.mrf.mxu0
    %v1081 = vadd.f32 0.0, %v1080
    %1082 = vdwg.mxu0
    %1083 = vrot.lane.b32.xlu0 %v103, 56
    %v1084 = vpop.permute.xlu0 %1083
    %v1087 = vsel %vm115, %v942, 0
    %1089 = vmatpush.msra.mxu0 0.0
    %1090 = vmatpush.msra.mxu0 0.0
    %1091 = vmatpush.msra.mxu0 0.0
    %1092 = vmatpush.msra.mxu0 0.0
    %1093 = vmatpush.msra.mxu0 0.0
    %1094 = vmatpush.msra.mxu0 0.0
    %1095 = vmatpush.msra.mxu0 0.0
    %1096 = vmatpush.msra.mxu0 0.0
    %1097 = vmatpush.msra.mxu0 0.0
    %1098 = vmatpush.msra.mxu0 0.0
    %1099 = vmatpush.msra.mxu0 0.0
    %1100 = vmatpush.msra.mxu0 0.0
    %1101 = vmatpush.msra.mxu0 0.0
    %1102 = vmatpush.msra.mxu0 0.0
    %1103 = vmatpush.msra.mxu0 0.0
    %1104 = vmatpush.msra.mxu0 %v1084
    %1105 = vmatmul.f32.gmra.mxu0 %v1087
    %v1106 = vpop.f32.mrf.mxu0
    %v1107 = vadd.f32 0.0, %v1106
    %1108 = vdwg.mxu0
    %1109 = vrot.lane.b32.xlu0 %v106, 56
    %v1110 = vpop.permute.xlu0 %1109
    %v1113 = vsel %vm115, %v943, 0
    %1115 = vmatpush.msra.mxu0 0.0
    %1116 = vmatpush.msra.mxu0 0.0
    %1117 = vmatpush.msra.mxu0 0.0
    %1118 = vmatpush.msra.mxu0 0.0
    %1119 = vmatpush.msra.mxu0 0.0
    %1120 = vmatpush.msra.mxu0 0.0
    %1121 = vmatpush.msra.mxu0 0.0
    %1122 = vmatpush.msra.mxu0 0.0
    %1123 = vmatpush.msra.mxu0 0.0
    %1124 = vmatpush.msra.mxu0 0.0
    %1125 = vmatpush.msra.mxu0 0.0
    %1126 = vmatpush.msra.mxu0 0.0
    %1127 = vmatpush.msra.mxu0 0.0
    %1128 = vmatpush.msra.mxu0 0.0
    %1129 = vmatpush.msra.mxu0 0.0
    %1130 = vmatpush.msra.mxu0 %v1110
    %1131 = vmatmul.f32.gmra.mxu0 %v1113
    %v1132 = vpop.f32.mrf.mxu0
    %v1133 = vadd.f32 0.0, %v1132
    %1134 = vdwg.mxu0
    %1135 = vrot.lane.b32.xlu0 %v109, 56
    %v1136 = vpop.permute.xlu0 %1135
    %v1139 = vsel %vm115, %v944, 0
    %1141 = vmatpush.msra.mxu0 0.0
    %1142 = vmatpush.msra.mxu0 0.0
    %1143 = vmatpush.msra.mxu0 0.0
    %1144 = vmatpush.msra.mxu0 0.0
    %1145 = vmatpush.msra.mxu0 0.0
    %1146 = vmatpush.msra.mxu0 0.0
    %1147 = vmatpush.msra.mxu0 0.0
    %1148 = vmatpush.msra.mxu0 0.0
    %1149 = vmatpush.msra.mxu0 0.0
    %1150 = vmatpush.msra.mxu0 0.0
    %1151 = vmatpush.msra.mxu0 0.0
    %1152 = vmatpush.msra.mxu0 0.0
    %1153 = vmatpush.msra.mxu0 0.0
    %1154 = vmatpush.msra.mxu0 0.0
    %1155 = vmatpush.msra.mxu0 0.0
    %1156 = vmatpush.msra.mxu0 %v1136
    %1157 = vmatmul.f32.gmra.mxu0 %v1139
    %v1158 = vpop.f32.mrf.mxu0
    %v1159 = vadd.f32 0.0, %v1158
    %1160 = vdwg.mxu0
    %1161 = vrot.lane.b32.xlu0 %v88, 112
    %v1162 = vpop.permute.xlu0 %1161
    %1163 = vrot.lane.b32.xlu0 %v88, 80
    %v1164 = vpop.permute.xlu0 %1163
    %v1165 = vsel %vm115, %v1162, 0
    %v1167 = vsel %vm115, %v1164, 0
    %1169 = vmatpush.xpose.msra.mxu0 0.0
    %1170 = vmatpush.xpose.msra.mxu0 0.0
    %1171 = vmatpush.xpose.msra.mxu0 0.0
    %1172 = vmatpush.xpose.msra.mxu0 0.0
    %1173 = vmatpush.xpose.msra.mxu0 0.0
    %1174 = vmatpush.xpose.msra.mxu0 0.0
    %1175 = vmatpush.xpose.msra.mxu0 0.0
    %1176 = vmatpush.xpose.msra.mxu0 0.0
    %1177 = vmatpush.xpose.msra.mxu0 0.0
    %1178 = vmatpush.xpose.msra.mxu0 0.0
    %1179 = vmatpush.xpose.msra.mxu0 0.0
    %1180 = vmatpush.xpose.msra.mxu0 0.0
    %1181 = vmatpush.xpose.msra.mxu0 0.0
    %1182 = vmatpush.xpose.msra.mxu0 0.0
    %1183 = vmatpush.xpose.msra.mxu0 0.0
    %1184 = vmatpush.xpose.msra.mxu0 %v1167
    %1185 = vmatmul.f32.gmra.mxu0 %v1165
    %v1186 = vpop.f32.mrf.mxu0
    %v1187 = vadd.f32 %v111, %v1186
    %1188 = vdwg.mxu0
    %1189 = vrot.lane.b32.xlu0 %v91, 112
    %v1190 = vpop.permute.xlu0 %1189
    %1191 = vrot.lane.b32.xlu0 %v91, 80
    %v1192 = vpop.permute.xlu0 %1191
    %v1193 = vsel %vm115, %v1190, 0
    %v1195 = vsel %vm115, %v1192, 0
    %1197 = vmatpush.xpose.msra.mxu0 0.0
    %1198 = vmatpush.xpose.msra.mxu0 0.0
    %1199 = vmatpush.xpose.msra.mxu0 0.0
    %1200 = vmatpush.xpose.msra.mxu0 0.0
    %1201 = vmatpush.xpose.msra.mxu0 0.0
    %1202 = vmatpush.xpose.msra.mxu0 0.0
    %1203 = vmatpush.xpose.msra.mxu0 0.0
    %1204 = vmatpush.xpose.msra.mxu0 0.0
    %1205 = vmatpush.xpose.msra.mxu0 0.0
    %1206 = vmatpush.xpose.msra.mxu0 0.0
    %1207 = vmatpush.xpose.msra.mxu0 0.0
    %1208 = vmatpush.xpose.msra.mxu0 0.0
    %1209 = vmatpush.xpose.msra.mxu0 0.0
    %1210 = vmatpush.xpose.msra.mxu0 0.0
    %1211 = vmatpush.xpose.msra.mxu0 0.0
    %1212 = vmatpush.xpose.msra.mxu0 %v1195
    %1213 = vmatmul.f32.gmra.mxu0 %v1193
    %v1214 = vpop.f32.mrf.mxu0
    %v1215 = vadd.f32 %v111, %v1214
    %1216 = vdwg.mxu0
    %1217 = vrot.lane.b32.xlu0 %v94, 112
    %v1218 = vpop.permute.xlu0 %1217
    %1219 = vrot.lane.b32.xlu0 %v94, 80
    %v1220 = vpop.permute.xlu0 %1219
    %v1221 = vsel %vm115, %v1218, 0
    %v1223 = vsel %vm115, %v1220, 0
    %1225 = vmatpush.xpose.msra.mxu0 0.0
    %1226 = vmatpush.xpose.msra.mxu0 0.0
    %1227 = vmatpush.xpose.msra.mxu0 0.0
    %1228 = vmatpush.xpose.msra.mxu0 0.0
    %1229 = vmatpush.xpose.msra.mxu0 0.0
    %1230 = vmatpush.xpose.msra.mxu0 0.0
    %1231 = vmatpush.xpose.msra.mxu0 0.0
    %1232 = vmatpush.xpose.msra.mxu0 0.0
    %1233 = vmatpush.xpose.msra.mxu0 0.0
    %1234 = vmatpush.xpose.msra.mxu0 0.0
    %1235 = vmatpush.xpose.msra.mxu0 0.0
    %1236 = vmatpush.xpose.msra.mxu0 0.0
    %1237 = vmatpush.xpose.msra.mxu0 0.0
    %1238 = vmatpush.xpose.msra.mxu0 0.0
    %1239 = vmatpush.xpose.msra.mxu0 0.0
    %1240 = vmatpush.xpose.msra.mxu0 %v1223
    %1241 = vmatmul.f32.gmra.mxu0 %v1221
    %v1242 = vpop.f32.mrf.mxu0
    %v1243 = vadd.f32 %v111, %v1242
    %1244 = vdwg.mxu0
    %1245 = vrot.lane.b32.xlu0 %v97, 112
    %v1246 = vpop.permute.xlu0 %1245
    %1247 = vrot.lane.b32.xlu0 %v97, 80
    %v1248 = vpop.permute.xlu0 %1247
    %v1249 = vsel %vm115, %v1246, 0
    %v1251 = vsel %vm115, %v1248, 0
    %1253 = vmatpush.xpose.msra.mxu0 0.0
    %1254 = vmatpush.xpose.msra.mxu0 0.0
    %1255 = vmatpush.xpose.msra.mxu0 0.0
    %1256 = vmatpush.xpose.msra.mxu0 0.0
    %1257 = vmatpush.xpose.msra.mxu0 0.0
    %1258 = vmatpush.xpose.msra.mxu0 0.0
    %1259 = vmatpush.xpose.msra.mxu0 0.0
    %1260 = vmatpush.xpose.msra.mxu0 0.0
    %1261 = vmatpush.xpose.msra.mxu0 0.0
    %1262 = vmatpush.xpose.msra.mxu0 0.0
    %1263 = vmatpush.xpose.msra.mxu0 0.0
    %1264 = vmatpush.xpose.msra.mxu0 0.0
    %1265 = vmatpush.xpose.msra.mxu0 0.0
    %1266 = vmatpush.xpose.msra.mxu0 0.0
    %1267 = vmatpush.xpose.msra.mxu0 0.0
    %1268 = vmatpush.xpose.msra.mxu0 %v1251
    %1269 = vmatmul.f32.gmra.mxu0 %v1249
    %v1270 = vpop.f32.mrf.mxu0
    %v1271 = vadd.f32 %v111, %v1270
    %1272 = vdwg.mxu0
    %1273 = vrot.lane.b32.xlu0 %v100, 112
    %v1274 = vpop.permute.xlu0 %1273
    %1275 = vrot.lane.b32.xlu0 %v100, 80
    %v1276 = vpop.permute.xlu0 %1275
    %v1277 = vsel %vm115, %v1274, 0
    %v1279 = vsel %vm115, %v1276, 0
    %1281 = vmatpush.xpose.msra.mxu0 0.0
    %1282 = vmatpush.xpose.msra.mxu0 0.0
    %1283 = vmatpush.xpose.msra.mxu0 0.0
    %1284 = vmatpush.xpose.msra.mxu0 0.0
    %1285 = vmatpush.xpose.msra.mxu0 0.0
    %1286 = vmatpush.xpose.msra.mxu0 0.0
    %1287 = vmatpush.xpose.msra.mxu0 0.0
    %1288 = vmatpush.xpose.msra.mxu0 0.0
    %1289 = vmatpush.xpose.msra.mxu0 0.0
    %1290 = vmatpush.xpose.msra.mxu0 0.0
    %1291 = vmatpush.xpose.msra.mxu0 0.0
    %1292 = vmatpush.xpose.msra.mxu0 0.0
    %1293 = vmatpush.xpose.msra.mxu0 0.0
    %1294 = vmatpush.xpose.msra.mxu0 0.0
    %1295 = vmatpush.xpose.msra.mxu0 0.0
    %1296 = vmatpush.xpose.msra.mxu0 %v1279
    %1297 = vmatmul.f32.gmra.mxu0 %v1277
    %v1298 = vpop.f32.mrf.mxu0
    %v1299 = vadd.f32 %v111, %v1298
    %1300 = vdwg.mxu0
    %1301 = vrot.lane.b32.xlu0 %v103, 112
    %v1302 = vpop.permute.xlu0 %1301
    %1303 = vrot.lane.b32.xlu0 %v103, 80
    %v1304 = vpop.permute.xlu0 %1303
    %v1305 = vsel %vm115, %v1302, 0
    %v1307 = vsel %vm115, %v1304, 0
    %1309 = vmatpush.xpose.msra.mxu0 0.0
    %1310 = vmatpush.xpose.msra.mxu0 0.0
    %1311 = vmatpush.xpose.msra.mxu0 0.0
    %1312 = vmatpush.xpose.msra.mxu0 0.0
    %1313 = vmatpush.xpose.msra.mxu0 0.0
    %1314 = vmatpush.xpose.msra.mxu0 0.0
    %1315 = vmatpush.xpose.msra.mxu0 0.0
    %1316 = vmatpush.xpose.msra.mxu0 0.0
    %1317 = vmatpush.xpose.msra.mxu0 0.0
    %1318 = vmatpush.xpose.msra.mxu0 0.0
    %1319 = vmatpush.xpose.msra.mxu0 0.0
    %1320 = vmatpush.xpose.msra.mxu0 0.0
    %1321 = vmatpush.xpose.msra.mxu0 0.0
    %1322 = vmatpush.xpose.msra.mxu0 0.0
    %1323 = vmatpush.xpose.msra.mxu0 0.0
    %1324 = vmatpush.xpose.msra.mxu0 %v1307
    %1325 = vmatmul.f32.gmra.mxu0 %v1305
    %v1326 = vpop.f32.mrf.mxu0
    %v1327 = vadd.f32 %v111, %v1326
    %1328 = vdwg.mxu0
    %1329 = vrot.lane.b32.xlu0 %v106, 112
    %v1330 = vpop.permute.xlu0 %1329
    %1331 = vrot.lane.b32.xlu0 %v106, 80
    %v1332 = vpop.permute.xlu0 %1331
    %v1333 = vsel %vm115, %v1330, 0
    %v1335 = vsel %vm115, %v1332, 0
    %1337 = vmatpush.xpose.msra.mxu0 0.0
    %1338 = vmatpush.xpose.msra.mxu0 0.0
    %1339 = vmatpush.xpose.msra.mxu0 0.0
    %1340 = vmatpush.xpose.msra.mxu0 0.0
    %1341 = vmatpush.xpose.msra.mxu0 0.0
    %1342 = vmatpush.xpose.msra.mxu0 0.0
    %1343 = vmatpush.xpose.msra.mxu0 0.0
    %1344 = vmatpush.xpose.msra.mxu0 0.0
    %1345 = vmatpush.xpose.msra.mxu0 0.0
    %1346 = vmatpush.xpose.msra.mxu0 0.0
    %1347 = vmatpush.xpose.msra.mxu0 0.0
    %1348 = vmatpush.xpose.msra.mxu0 0.0
    %1349 = vmatpush.xpose.msra.mxu0 0.0
    %1350 = vmatpush.xpose.msra.mxu0 0.0
    %1351 = vmatpush.xpose.msra.mxu0 0.0
    %1352 = vmatpush.xpose.msra.mxu0 %v1335
    %1353 = vmatmul.f32.gmra.mxu0 %v1333
    %v1354 = vpop.f32.mrf.mxu0
    %v1355 = vadd.f32 %v111, %v1354
    %1356 = vdwg.mxu0
    %1357 = vrot.lane.b32.xlu0 %v109, 112
    %v1358 = vpop.permute.xlu0 %1357
    %1359 = vrot.lane.b32.xlu0 %v109, 80
    %v1360 = vpop.permute.xlu0 %1359
    %v1361 = vsel %vm115, %v1358, 0
    %v1363 = vsel %vm115, %v1360, 0
    %1365 = vmatpush.xpose.msra.mxu0 0.0
    %1366 = vmatpush.xpose.msra.mxu0 0.0
    %1367 = vmatpush.xpose.msra.mxu0 0.0
    %1368 = vmatpush.xpose.msra.mxu0 0.0
    %1369 = vmatpush.xpose.msra.mxu0 0.0
    %1370 = vmatpush.xpose.msra.mxu0 0.0
    %1371 = vmatpush.xpose.msra.mxu0 0.0
    %1372 = vmatpush.xpose.msra.mxu0 0.0
    %1373 = vmatpush.xpose.msra.mxu0 0.0
    %1374 = vmatpush.xpose.msra.mxu0 0.0
    %1375 = vmatpush.xpose.msra.mxu0 0.0
    %1376 = vmatpush.xpose.msra.mxu0 0.0
    %1377 = vmatpush.xpose.msra.mxu0 0.0
    %1378 = vmatpush.xpose.msra.mxu0 0.0
    %1379 = vmatpush.xpose.msra.mxu0 0.0
    %1380 = vmatpush.xpose.msra.mxu0 %v1363
    %1381 = vmatmul.f32.gmra.mxu0 %v1361
    %v1382 = vpop.f32.mrf.mxu0
    %v1383 = vadd.f32 %v111, %v1382
    %1384 = vdwg.mxu0
    %v1385 = vsel %vm115, %v1187, -inf
    %1386 = vmax.xlane.f32.xlu0 %v1385
    %v1387 = vpop.xlane.xlu0 %1386
    %v1388 = vsel %vm115, %v1215, -inf
    %1389 = vmax.xlane.f32.xlu0 %v1388
    %v1390 = vpop.xlane.xlu0 %1389
    %v1391 = vsel %vm115, %v1243, -inf
    %1392 = vmax.xlane.f32.xlu0 %v1391
    %v1393 = vpop.xlane.xlu0 %1392
    %v1394 = vsel %vm115, %v1271, -inf
    %1395 = vmax.xlane.f32.xlu0 %v1394
    %v1396 = vpop.xlane.xlu0 %1395
    %v1397 = vsel %vm115, %v1299, -inf
    %1398 = vmax.xlane.f32.xlu0 %v1397
    %v1399 = vpop.xlane.xlu0 %1398
    %v1400 = vsel %vm115, %v1327, -inf
    %1401 = vmax.xlane.f32.xlu0 %v1400
    %v1402 = vpop.xlane.xlu0 %1401
    %v1403 = vsel %vm115, %v1355, -inf
    %1404 = vmax.xlane.f32.xlu0 %v1403
    %v1405 = vpop.xlane.xlu0 %1404
    %v1406 = vsel %vm115, %v1383, -inf
    %1407 = vmax.xlane.f32.xlu0 %v1406
    %v1408 = vpop.xlane.xlu0 %1407
    %v1409 = vsub.f32 %v1187, %v1387
    %v1410 = vsub.f32 %v1215, %v1390
    %v1411 = vsub.f32 %v1243, %v1393
    %v1412 = vsub.f32 %v1271, %v1396
    %v1413 = vsub.f32 %v1299, %v1399
    %v1414 = vsub.f32 %v1327, %v1402
    %v1415 = vsub.f32 %v1355, %v1405
    %v1416 = vsub.f32 %v1383, %v1408
    %v1417 = vmul.f32 %v1409, 1.442695
    %v1418 = vpow.pop %v1417
    %v1419 = vmul.f32 %v1410, 1.442695
    %v1420 = vpow.pop %v1419
    %v1421 = vmul.f32 %v1411, 1.442695
    %v1422 = vpow.pop %v1421
    %v1423 = vmul.f32 %v1412, 1.442695
    %v1424 = vpow.pop %v1423
    %v1425 = vmul.f32 %v1413, 1.442695
    %v1426 = vpow.pop %v1425
    %v1427 = vmul.f32 %v1414, 1.442695
    %v1428 = vpow.pop %v1427
    %v1429 = vmul.f32 %v1415, 1.442695
    %v1430 = vpow.pop %v1429
    %v1431 = vmul.f32 %v1416, 1.442695
    %v1432 = vpow.pop %v1431
    %v1433 = vsel %vm115, %v1418, 0.0
    %1434 = vadd.xlane.f32.xlu0 %v1433
    %v1435 = vpop.xlane.xlu0 %1434
    %v1436 = vsel %vm115, %v1420, 0.0
    %1437 = vadd.xlane.f32.xlu0 %v1436
    %v1438 = vpop.xlane.xlu0 %1437
    %v1439 = vsel %vm115, %v1422, 0.0
    %1440 = vadd.xlane.f32.xlu0 %v1439
    %v1441 = vpop.xlane.xlu0 %1440
    %v1442 = vsel %vm115, %v1424, 0.0
    %1443 = vadd.xlane.f32.xlu0 %v1442
    %v1444 = vpop.xlane.xlu0 %1443
    %v1445 = vsel %vm115, %v1426, 0.0
    %1446 = vadd.xlane.f32.xlu0 %v1445
    %v1447 = vpop.xlane.xlu0 %1446
    %v1448 = vsel %vm115, %v1428, 0.0
    %1449 = vadd.xlane.f32.xlu0 %v1448
    %v1450 = vpop.xlane.xlu0 %1449
    %v1451 = vsel %vm115, %v1430, 0.0
    %1452 = vadd.xlane.f32.xlu0 %v1451
    %v1453 = vpop.xlane.xlu0 %1452
    %v1454 = vsel %vm115, %v1432, 0.0
    %1455 = vadd.xlane.f32.xlu0 %v1454
    %v1456 = vpop.xlane.xlu0 %1455
    %v1457 = vrcp.pop %v1435
    %v1458 = vrcp.pop %v1438
    %v1459 = vrcp.pop %v1441
    %v1460 = vrcp.pop %v1444
    %v1461 = vrcp.pop %v1447
    %v1462 = vrcp.pop %v1450
    %v1463 = vrcp.pop %v1453
    %v1464 = vrcp.pop %v1456
    %v1465 = vmul.f32 %v1418, %v1457
    %v1466 = vmul.f32 %v1420, %v1458
    %v1467 = vmul.f32 %v1422, %v1459
    %v1468 = vmul.f32 %v1424, %v1460
    %v1469 = vmul.f32 %v1426, %v1461
    %v1470 = vmul.f32 %v1428, %v1462
    %v1471 = vmul.f32 %v1430, %v1463
    %v1472 = vmul.f32 %v1432, %v1464
    %v1473 = vadd.f32 %v945, %v1465
    %v1474 = vadd.f32 %v946, %v1466
    %v1475 = vadd.f32 %v947, %v1467
    %v1476 = vadd.f32 %v948, %v1468
    %v1477 = vadd.f32 %v949, %v1469
    %v1478 = vadd.f32 %v950, %v1470
    %v1479 = vadd.f32 %v951, %v1471
    %v1480 = vadd.f32 %v952, %v1472
    %1481 = vrot.lane.b32.xlu0 %v88, 48
    %v1482 = vpop.permute.xlu0 %1481
    %v1485 = vsel %vm115, %v1465, 0
    %1487 = vmatpush.msra.mxu0 0.0
    %1488 = vmatpush.msra.mxu0 0.0
    %1489 = vmatpush.msra.mxu0 0.0
    %1490 = vmatpush.msra.mxu0 0.0
    %1491 = vmatpush.msra.mxu0 0.0
    %1492 = vmatpush.msra.mxu0 0.0
    %1493 = vmatpush.msra.mxu0 0.0
    %1494 = vmatpush.msra.mxu0 0.0
    %1495 = vmatpush.msra.mxu0 0.0
    %1496 = vmatpush.msra.mxu0 0.0
    %1497 = vmatpush.msra.mxu0 0.0
    %1498 = vmatpush.msra.mxu0 0.0
    %1499 = vmatpush.msra.mxu0 0.0
    %1500 = vmatpush.msra.mxu0 0.0
    %1501 = vmatpush.msra.mxu0 0.0
    %1502 = vmatpush.msra.mxu0 %v1482
    %1503 = vmatmul.f32.gmra.mxu0 %v1485
    %v1504 = vpop.f32.mrf.mxu0
    %v1505 = vadd.f32 0.0, %v1504
    %1506 = vdwg.mxu0
    %1507 = vrot.lane.b32.xlu0 %v91, 48
    %v1508 = vpop.permute.xlu0 %1507
    %v1511 = vsel %vm115, %v1466, 0
    %1513 = vmatpush.msra.mxu0 0.0
    %1514 = vmatpush.msra.mxu0 0.0
    %1515 = vmatpush.msra.mxu0 0.0
    %1516 = vmatpush.msra.mxu0 0.0
    %1517 = vmatpush.msra.mxu0 0.0
    %1518 = vmatpush.msra.mxu0 0.0
    %1519 = vmatpush.msra.mxu0 0.0
    %1520 = vmatpush.msra.mxu0 0.0
    %1521 = vmatpush.msra.mxu0 0.0
    %1522 = vmatpush.msra.mxu0 0.0
    %1523 = vmatpush.msra.mxu0 0.0
    %1524 = vmatpush.msra.mxu0 0.0
    %1525 = vmatpush.msra.mxu0 0.0
    %1526 = vmatpush.msra.mxu0 0.0
    %1527 = vmatpush.msra.mxu0 0.0
    %1528 = vmatpush.msra.mxu0 %v1508
    %1529 = vmatmul.f32.gmra.mxu0 %v1511
    %v1530 = vpop.f32.mrf.mxu0
    %v1531 = vadd.f32 0.0, %v1530
    %1532 = vdwg.mxu0
    %1533 = vrot.lane.b32.xlu0 %v94, 48
    %v1534 = vpop.permute.xlu0 %1533
    %v1537 = vsel %vm115, %v1467, 0
    %1539 = vmatpush.msra.mxu0 0.0
    %1540 = vmatpush.msra.mxu0 0.0
    %1541 = vmatpush.msra.mxu0 0.0
    %1542 = vmatpush.msra.mxu0 0.0
    %1543 = vmatpush.msra.mxu0 0.0
    %1544 = vmatpush.msra.mxu0 0.0
    %1545 = vmatpush.msra.mxu0 0.0
    %1546 = vmatpush.msra.mxu0 0.0
    %1547 = vmatpush.msra.mxu0 0.0
    %1548 = vmatpush.msra.mxu0 0.0
    %1549 = vmatpush.msra.mxu0 0.0
    %1550 = vmatpush.msra.mxu0 0.0
    %1551 = vmatpush.msra.mxu0 0.0
    %1552 = vmatpush.msra.mxu0 0.0
    %1553 = vmatpush.msra.mxu0 0.0
    %1554 = vmatpush.msra.mxu0 %v1534
    %1555 = vmatmul.f32.gmra.mxu0 %v1537
    %v1556 = vpop.f32.mrf.mxu0
    %v1557 = vadd.f32 0.0, %v1556
    %1558 = vdwg.mxu0
    %1559 = vrot.lane.b32.xlu0 %v97, 48
    %v1560 = vpop.permute.xlu0 %1559
    %v1563 = vsel %vm115, %v1468, 0
    %1565 = vmatpush.msra.mxu0 0.0
    %1566 = vmatpush.msra.mxu0 0.0
    %1567 = vmatpush.msra.mxu0 0.0
    %1568 = vmatpush.msra.mxu0 0.0
    %1569 = vmatpush.msra.mxu0 0.0
    %1570 = vmatpush.msra.mxu0 0.0
    %1571 = vmatpush.msra.mxu0 0.0
    %1572 = vmatpush.msra.mxu0 0.0
    %1573 = vmatpush.msra.mxu0 0.0
    %1574 = vmatpush.msra.mxu0 0.0
    %1575 = vmatpush.msra.mxu0 0.0
    %1576 = vmatpush.msra.mxu0 0.0
    %1577 = vmatpush.msra.mxu0 0.0
    %1578 = vmatpush.msra.mxu0 0.0
    %1579 = vmatpush.msra.mxu0 0.0
    %1580 = vmatpush.msra.mxu0 %v1560
    %1581 = vmatmul.f32.gmra.mxu0 %v1563
    %v1582 = vpop.f32.mrf.mxu0
    %v1583 = vadd.f32 0.0, %v1582
    %1584 = vdwg.mxu0
    %1585 = vrot.lane.b32.xlu0 %v100, 48
    %v1586 = vpop.permute.xlu0 %1585
    %v1589 = vsel %vm115, %v1469, 0
    %1591 = vmatpush.msra.mxu0 0.0
    %1592 = vmatpush.msra.mxu0 0.0
    %1593 = vmatpush.msra.mxu0 0.0
    %1594 = vmatpush.msra.mxu0 0.0
    %1595 = vmatpush.msra.mxu0 0.0
    %1596 = vmatpush.msra.mxu0 0.0
    %1597 = vmatpush.msra.mxu0 0.0
    %1598 = vmatpush.msra.mxu0 0.0
    %1599 = vmatpush.msra.mxu0 0.0
    %1600 = vmatpush.msra.mxu0 0.0
    %1601 = vmatpush.msra.mxu0 0.0
    %1602 = vmatpush.msra.mxu0 0.0
    %1603 = vmatpush.msra.mxu0 0.0
    %1604 = vmatpush.msra.mxu0 0.0
    %1605 = vmatpush.msra.mxu0 0.0
    %1606 = vmatpush.msra.mxu0 %v1586
    %1607 = vmatmul.f32.gmra.mxu0 %v1589
    %v1608 = vpop.f32.mrf.mxu0
    %v1609 = vadd.f32 0.0, %v1608
    %1610 = vdwg.mxu0
    %1611 = vrot.lane.b32.xlu0 %v103, 48
    %v1612 = vpop.permute.xlu0 %1611
    %v1615 = vsel %vm115, %v1470, 0
    %1617 = vmatpush.msra.mxu0 0.0
    %1618 = vmatpush.msra.mxu0 0.0
    %1619 = vmatpush.msra.mxu0 0.0
    %1620 = vmatpush.msra.mxu0 0.0
    %1621 = vmatpush.msra.mxu0 0.0
    %1622 = vmatpush.msra.mxu0 0.0
    %1623 = vmatpush.msra.mxu0 0.0
    %1624 = vmatpush.msra.mxu0 0.0
    %1625 = vmatpush.msra.mxu0 0.0
    %1626 = vmatpush.msra.mxu0 0.0
    %1627 = vmatpush.msra.mxu0 0.0
    %1628 = vmatpush.msra.mxu0 0.0
    %1629 = vmatpush.msra.mxu0 0.0
    %1630 = vmatpush.msra.mxu0 0.0
    %1631 = vmatpush.msra.mxu0 0.0
    %1632 = vmatpush.msra.mxu0 %v1612
    %1633 = vmatmul.f32.gmra.mxu0 %v1615
    %v1634 = vpop.f32.mrf.mxu0
    %v1635 = vadd.f32 0.0, %v1634
    %1636 = vdwg.mxu0
    %1637 = vrot.lane.b32.xlu0 %v106, 48
    %v1638 = vpop.permute.xlu0 %1637
    %v1641 = vsel %vm115, %v1471, 0
    %1643 = vmatpush.msra.mxu0 0.0
    %1644 = vmatpush.msra.mxu0 0.0
    %1645 = vmatpush.msra.mxu0 0.0
    %1646 = vmatpush.msra.mxu0 0.0
    %1647 = vmatpush.msra.mxu0 0.0
    %1648 = vmatpush.msra.mxu0 0.0
    %1649 = vmatpush.msra.mxu0 0.0
    %1650 = vmatpush.msra.mxu0 0.0
    %1651 = vmatpush.msra.mxu0 0.0
    %1652 = vmatpush.msra.mxu0 0.0
    %1653 = vmatpush.msra.mxu0 0.0
    %1654 = vmatpush.msra.mxu0 0.0
    %1655 = vmatpush.msra.mxu0 0.0
    %1656 = vmatpush.msra.mxu0 0.0
    %1657 = vmatpush.msra.mxu0 0.0
    %1658 = vmatpush.msra.mxu0 %v1638
    %1659 = vmatmul.f32.gmra.mxu0 %v1641
    %v1660 = vpop.f32.mrf.mxu0
    %v1661 = vadd.f32 0.0, %v1660
    %1662 = vdwg.mxu0
    %1663 = vrot.lane.b32.xlu0 %v109, 48
    %v1664 = vpop.permute.xlu0 %1663
    %v1667 = vsel %vm115, %v1472, 0
    %1669 = vmatpush.msra.mxu0 0.0
    %1670 = vmatpush.msra.mxu0 0.0
    %1671 = vmatpush.msra.mxu0 0.0
    %1672 = vmatpush.msra.mxu0 0.0
    %1673 = vmatpush.msra.mxu0 0.0
    %1674 = vmatpush.msra.mxu0 0.0
    %1675 = vmatpush.msra.mxu0 0.0
    %1676 = vmatpush.msra.mxu0 0.0
    %1677 = vmatpush.msra.mxu0 0.0
    %1678 = vmatpush.msra.mxu0 0.0
    %1679 = vmatpush.msra.mxu0 0.0
    %1680 = vmatpush.msra.mxu0 0.0
    %1681 = vmatpush.msra.mxu0 0.0
    %1682 = vmatpush.msra.mxu0 0.0
    %1683 = vmatpush.msra.mxu0 0.0
    %1684 = vmatpush.msra.mxu0 %v1664
    %1685 = vmatmul.f32.gmra.mxu0 %v1667
    %v1686 = vpop.f32.mrf.mxu0
    %v1687 = vadd.f32 0.0, %v1686
    %1688 = vdwg.mxu0
    %1689 = vrot.lane.b32.xlu0 %v88, 104
    %v1690 = vpop.permute.xlu0 %1689
    %1691 = vrot.lane.b32.xlu0 %v88, 72
    %v1692 = vpop.permute.xlu0 %1691
    %v1693 = vsel %vm115, %v1690, 0
    %v1695 = vsel %vm115, %v1692, 0
    %1697 = vmatpush.xpose.msra.mxu0 0.0
    %1698 = vmatpush.xpose.msra.mxu0 0.0
    %1699 = vmatpush.xpose.msra.mxu0 0.0
    %1700 = vmatpush.xpose.msra.mxu0 0.0
    %1701 = vmatpush.xpose.msra.mxu0 0.0
    %1702 = vmatpush.xpose.msra.mxu0 0.0
    %1703 = vmatpush.xpose.msra.mxu0 0.0
    %1704 = vmatpush.xpose.msra.mxu0 0.0
    %1705 = vmatpush.xpose.msra.mxu0 0.0
    %1706 = vmatpush.xpose.msra.mxu0 0.0
    %1707 = vmatpush.xpose.msra.mxu0 0.0
    %1708 = vmatpush.xpose.msra.mxu0 0.0
    %1709 = vmatpush.xpose.msra.mxu0 0.0
    %1710 = vmatpush.xpose.msra.mxu0 0.0
    %1711 = vmatpush.xpose.msra.mxu0 0.0
    %1712 = vmatpush.xpose.msra.mxu0 %v1695
    %1713 = vmatmul.f32.gmra.mxu0 %v1693
    %v1714 = vpop.f32.mrf.mxu0
    %v1715 = vadd.f32 %v111, %v1714
    %1716 = vdwg.mxu0
    %1717 = vrot.lane.b32.xlu0 %v91, 104
    %v1718 = vpop.permute.xlu0 %1717
    %1719 = vrot.lane.b32.xlu0 %v91, 72
    %v1720 = vpop.permute.xlu0 %1719
    %v1721 = vsel %vm115, %v1718, 0
    %v1723 = vsel %vm115, %v1720, 0
    %1725 = vmatpush.xpose.msra.mxu0 0.0
    %1726 = vmatpush.xpose.msra.mxu0 0.0
    %1727 = vmatpush.xpose.msra.mxu0 0.0
    %1728 = vmatpush.xpose.msra.mxu0 0.0
    %1729 = vmatpush.xpose.msra.mxu0 0.0
    %1730 = vmatpush.xpose.msra.mxu0 0.0
    %1731 = vmatpush.xpose.msra.mxu0 0.0
    %1732 = vmatpush.xpose.msra.mxu0 0.0
    %1733 = vmatpush.xpose.msra.mxu0 0.0
    %1734 = vmatpush.xpose.msra.mxu0 0.0
    %1735 = vmatpush.xpose.msra.mxu0 0.0
    %1736 = vmatpush.xpose.msra.mxu0 0.0
    %1737 = vmatpush.xpose.msra.mxu0 0.0
    %1738 = vmatpush.xpose.msra.mxu0 0.0
    %1739 = vmatpush.xpose.msra.mxu0 0.0
    %1740 = vmatpush.xpose.msra.mxu0 %v1723
    %1741 = vmatmul.f32.gmra.mxu0 %v1721
    %v1742 = vpop.f32.mrf.mxu0
    %v1743 = vadd.f32 %v111, %v1742
    %1744 = vdwg.mxu0
    %1745 = vrot.lane.b32.xlu0 %v94, 104
    %v1746 = vpop.permute.xlu0 %1745
    %1747 = vrot.lane.b32.xlu0 %v94, 72
    %v1748 = vpop.permute.xlu0 %1747
    %v1749 = vsel %vm115, %v1746, 0
    %v1751 = vsel %vm115, %v1748, 0
    %1753 = vmatpush.xpose.msra.mxu0 0.0
    %1754 = vmatpush.xpose.msra.mxu0 0.0
    %1755 = vmatpush.xpose.msra.mxu0 0.0
    %1756 = vmatpush.xpose.msra.mxu0 0.0
    %1757 = vmatpush.xpose.msra.mxu0 0.0
    %1758 = vmatpush.xpose.msra.mxu0 0.0
    %1759 = vmatpush.xpose.msra.mxu0 0.0
    %1760 = vmatpush.xpose.msra.mxu0 0.0
    %1761 = vmatpush.xpose.msra.mxu0 0.0
    %1762 = vmatpush.xpose.msra.mxu0 0.0
    %1763 = vmatpush.xpose.msra.mxu0 0.0
    %1764 = vmatpush.xpose.msra.mxu0 0.0
    %1765 = vmatpush.xpose.msra.mxu0 0.0
    %1766 = vmatpush.xpose.msra.mxu0 0.0
    %1767 = vmatpush.xpose.msra.mxu0 0.0
    %1768 = vmatpush.xpose.msra.mxu0 %v1751
    %1769 = vmatmul.f32.gmra.mxu0 %v1749
    %v1770 = vpop.f32.mrf.mxu0
    %v1771 = vadd.f32 %v111, %v1770
    %1772 = vdwg.mxu0
    %1773 = vrot.lane.b32.xlu0 %v97, 104
    %v1774 = vpop.permute.xlu0 %1773
    %1775 = vrot.lane.b32.xlu0 %v97, 72
    %v1776 = vpop.permute.xlu0 %1775
    %v1777 = vsel %vm115, %v1774, 0
    %v1779 = vsel %vm115, %v1776, 0
    %1781 = vmatpush.xpose.msra.mxu0 0.0
    %1782 = vmatpush.xpose.msra.mxu0 0.0
    %1783 = vmatpush.xpose.msra.mxu0 0.0
    %1784 = vmatpush.xpose.msra.mxu0 0.0
    %1785 = vmatpush.xpose.msra.mxu0 0.0
    %1786 = vmatpush.xpose.msra.mxu0 0.0
    %1787 = vmatpush.xpose.msra.mxu0 0.0
    %1788 = vmatpush.xpose.msra.mxu0 0.0
    %1789 = vmatpush.xpose.msra.mxu0 0.0
    %1790 = vmatpush.xpose.msra.mxu0 0.0
    %1791 = vmatpush.xpose.msra.mxu0 0.0
    %1792 = vmatpush.xpose.msra.mxu0 0.0
    %1793 = vmatpush.xpose.msra.mxu0 0.0
    %1794 = vmatpush.xpose.msra.mxu0 0.0
    %1795 = vmatpush.xpose.msra.mxu0 0.0
    %1796 = vmatpush.xpose.msra.mxu0 %v1779
    %1797 = vmatmul.f32.gmra.mxu0 %v1777
    %v1798 = vpop.f32.mrf.mxu0
    %v1799 = vadd.f32 %v111, %v1798
    %1800 = vdwg.mxu0
    %1801 = vrot.lane.b32.xlu0 %v100, 104
    %v1802 = vpop.permute.xlu0 %1801
    %1803 = vrot.lane.b32.xlu0 %v100, 72
    %v1804 = vpop.permute.xlu0 %1803
    %v1805 = vsel %vm115, %v1802, 0
    %v1807 = vsel %vm115, %v1804, 0
    %1809 = vmatpush.xpose.msra.mxu0 0.0
    %1810 = vmatpush.xpose.msra.mxu0 0.0
    %1811 = vmatpush.xpose.msra.mxu0 0.0
    %1812 = vmatpush.xpose.msra.mxu0 0.0
    %1813 = vmatpush.xpose.msra.mxu0 0.0
    %1814 = vmatpush.xpose.msra.mxu0 0.0
    %1815 = vmatpush.xpose.msra.mxu0 0.0
    %1816 = vmatpush.xpose.msra.mxu0 0.0
    %1817 = vmatpush.xpose.msra.mxu0 0.0
    %1818 = vmatpush.xpose.msra.mxu0 0.0
    %1819 = vmatpush.xpose.msra.mxu0 0.0
    %1820 = vmatpush.xpose.msra.mxu0 0.0
    %1821 = vmatpush.xpose.msra.mxu0 0.0
    %1822 = vmatpush.xpose.msra.mxu0 0.0
    %1823 = vmatpush.xpose.msra.mxu0 0.0
    %1824 = vmatpush.xpose.msra.mxu0 %v1807
    %1825 = vmatmul.f32.gmra.mxu0 %v1805
    %v1826 = vpop.f32.mrf.mxu0
    %v1827 = vadd.f32 %v111, %v1826
    %1828 = vdwg.mxu0
    %1829 = vrot.lane.b32.xlu0 %v103, 104
    %v1830 = vpop.permute.xlu0 %1829
    %1831 = vrot.lane.b32.xlu0 %v103, 72
    %v1832 = vpop.permute.xlu0 %1831
    %v1833 = vsel %vm115, %v1830, 0
    %v1835 = vsel %vm115, %v1832, 0
    %1837 = vmatpush.xpose.msra.mxu0 0.0
    %1838 = vmatpush.xpose.msra.mxu0 0.0
    %1839 = vmatpush.xpose.msra.mxu0 0.0
    %1840 = vmatpush.xpose.msra.mxu0 0.0
    %1841 = vmatpush.xpose.msra.mxu0 0.0
    %1842 = vmatpush.xpose.msra.mxu0 0.0
    %1843 = vmatpush.xpose.msra.mxu0 0.0
    %1844 = vmatpush.xpose.msra.mxu0 0.0
    %1845 = vmatpush.xpose.msra.mxu0 0.0
    %1846 = vmatpush.xpose.msra.mxu0 0.0
    %1847 = vmatpush.xpose.msra.mxu0 0.0
    %1848 = vmatpush.xpose.msra.mxu0 0.0
    %1849 = vmatpush.xpose.msra.mxu0 0.0
    %1850 = vmatpush.xpose.msra.mxu0 0.0
    %1851 = vmatpush.xpose.msra.mxu0 0.0
    %1852 = vmatpush.xpose.msra.mxu0 %v1835
    %1853 = vmatmul.f32.gmra.mxu0 %v1833
    %v1854 = vpop.f32.mrf.mxu0
    %v1855 = vadd.f32 %v111, %v1854
    %1856 = vdwg.mxu0
    %1857 = vrot.lane.b32.xlu0 %v106, 104
    %v1858 = vpop.permute.xlu0 %1857
    %1859 = vrot.lane.b32.xlu0 %v106, 72
    %v1860 = vpop.permute.xlu0 %1859
    %v1861 = vsel %vm115, %v1858, 0
    %v1863 = vsel %vm115, %v1860, 0
    %1865 = vmatpush.xpose.msra.mxu0 0.0
    %1866 = vmatpush.xpose.msra.mxu0 0.0
    %1867 = vmatpush.xpose.msra.mxu0 0.0
    %1868 = vmatpush.xpose.msra.mxu0 0.0
    %1869 = vmatpush.xpose.msra.mxu0 0.0
    %1870 = vmatpush.xpose.msra.mxu0 0.0
    %1871 = vmatpush.xpose.msra.mxu0 0.0
    %1872 = vmatpush.xpose.msra.mxu0 0.0
    %1873 = vmatpush.xpose.msra.mxu0 0.0
    %1874 = vmatpush.xpose.msra.mxu0 0.0
    %1875 = vmatpush.xpose.msra.mxu0 0.0
    %1876 = vmatpush.xpose.msra.mxu0 0.0
    %1877 = vmatpush.xpose.msra.mxu0 0.0
    %1878 = vmatpush.xpose.msra.mxu0 0.0
    %1879 = vmatpush.xpose.msra.mxu0 0.0
    %1880 = vmatpush.xpose.msra.mxu0 %v1863
    %1881 = vmatmul.f32.gmra.mxu0 %v1861
    %v1882 = vpop.f32.mrf.mxu0
    %v1883 = vadd.f32 %v111, %v1882
    %1884 = vdwg.mxu0
    %1885 = vrot.lane.b32.xlu0 %v109, 104
    %v1886 = vpop.permute.xlu0 %1885
    %1887 = vrot.lane.b32.xlu0 %v109, 72
    %v1888 = vpop.permute.xlu0 %1887
    %v1889 = vsel %vm115, %v1886, 0
    %v1891 = vsel %vm115, %v1888, 0
    %1893 = vmatpush.xpose.msra.mxu0 0.0
    %1894 = vmatpush.xpose.msra.mxu0 0.0
    %1895 = vmatpush.xpose.msra.mxu0 0.0
    %1896 = vmatpush.xpose.msra.mxu0 0.0
    %1897 = vmatpush.xpose.msra.mxu0 0.0
    %1898 = vmatpush.xpose.msra.mxu0 0.0
    %1899 = vmatpush.xpose.msra.mxu0 0.0
    %1900 = vmatpush.xpose.msra.mxu0 0.0
    %1901 = vmatpush.xpose.msra.mxu0 0.0
    %1902 = vmatpush.xpose.msra.mxu0 0.0
    %1903 = vmatpush.xpose.msra.mxu0 0.0
    %1904 = vmatpush.xpose.msra.mxu0 0.0
    %1905 = vmatpush.xpose.msra.mxu0 0.0
    %1906 = vmatpush.xpose.msra.mxu0 0.0
    %1907 = vmatpush.xpose.msra.mxu0 0.0
    %1908 = vmatpush.xpose.msra.mxu0 %v1891
    %1909 = vmatmul.f32.gmra.mxu0 %v1889
    %v1910 = vpop.f32.mrf.mxu0
    %v1911 = vadd.f32 %v111, %v1910
    %1912 = vdwg.mxu0
    %v1913 = vsel %vm115, %v1715, -inf
    %1914 = vmax.xlane.f32.xlu0 %v1913
    %v1915 = vpop.xlane.xlu0 %1914
    %v1916 = vsel %vm115, %v1743, -inf
    %1917 = vmax.xlane.f32.xlu0 %v1916
    %v1918 = vpop.xlane.xlu0 %1917
    %v1919 = vsel %vm115, %v1771, -inf
    %1920 = vmax.xlane.f32.xlu0 %v1919
    %v1921 = vpop.xlane.xlu0 %1920
    %v1922 = vsel %vm115, %v1799, -inf
    %1923 = vmax.xlane.f32.xlu0 %v1922
    %v1924 = vpop.xlane.xlu0 %1923
    %v1925 = vsel %vm115, %v1827, -inf
    %1926 = vmax.xlane.f32.xlu0 %v1925
    %v1927 = vpop.xlane.xlu0 %1926
    %v1928 = vsel %vm115, %v1855, -inf
    %1929 = vmax.xlane.f32.xlu0 %v1928
    %v1930 = vpop.xlane.xlu0 %1929
    %v1931 = vsel %vm115, %v1883, -inf
    %1932 = vmax.xlane.f32.xlu0 %v1931
    %v1933 = vpop.xlane.xlu0 %1932
    %v1934 = vsel %vm115, %v1911, -inf
    %1935 = vmax.xlane.f32.xlu0 %v1934
    %v1936 = vpop.xlane.xlu0 %1935
    %v1937 = vsub.f32 %v1715, %v1915
    %v1938 = vsub.f32 %v1743, %v1918
    %v1939 = vsub.f32 %v1771, %v1921
    %v1940 = vsub.f32 %v1799, %v1924
    %v1941 = vsub.f32 %v1827, %v1927
    %v1942 = vsub.f32 %v1855, %v1930
    %v1943 = vsub.f32 %v1883, %v1933
    %v1944 = vsub.f32 %v1911, %v1936
    %v1945 = vmul.f32 %v1937, 1.442695
    %v1946 = vpow.pop %v1945
    %v1947 = vmul.f32 %v1938, 1.442695
    %v1948 = vpow.pop %v1947
    %v1949 = vmul.f32 %v1939, 1.442695
    %v1950 = vpow.pop %v1949
    %v1951 = vmul.f32 %v1940, 1.442695
    %v1952 = vpow.pop %v1951
    %v1953 = vmul.f32 %v1941, 1.442695
    %v1954 = vpow.pop %v1953
    %v1955 = vmul.f32 %v1942, 1.442695
    %v1956 = vpow.pop %v1955
    %v1957 = vmul.f32 %v1943, 1.442695
    %v1958 = vpow.pop %v1957
    %v1959 = vmul.f32 %v1944, 1.442695
    %v1960 = vpow.pop %v1959
    %v1961 = vsel %vm115, %v1946, 0.0
    %1962 = vadd.xlane.f32.xlu0 %v1961
    %v1963 = vpop.xlane.xlu0 %1962
    %v1964 = vsel %vm115, %v1948, 0.0
    %1965 = vadd.xlane.f32.xlu0 %v1964
    %v1966 = vpop.xlane.xlu0 %1965
    %v1967 = vsel %vm115, %v1950, 0.0
    %1968 = vadd.xlane.f32.xlu0 %v1967
    %v1969 = vpop.xlane.xlu0 %1968
    %v1970 = vsel %vm115, %v1952, 0.0
    %1971 = vadd.xlane.f32.xlu0 %v1970
    %v1972 = vpop.xlane.xlu0 %1971
    %v1973 = vsel %vm115, %v1954, 0.0
    %1974 = vadd.xlane.f32.xlu0 %v1973
    %v1975 = vpop.xlane.xlu0 %1974
    %v1976 = vsel %vm115, %v1956, 0.0
    %1977 = vadd.xlane.f32.xlu0 %v1976
    %v1978 = vpop.xlane.xlu0 %1977
    %v1979 = vsel %vm115, %v1958, 0.0
    %1980 = vadd.xlane.f32.xlu0 %v1979
    %v1981 = vpop.xlane.xlu0 %1980
    %v1982 = vsel %vm115, %v1960, 0.0
    %1983 = vadd.xlane.f32.xlu0 %v1982
    %v1984 = vpop.xlane.xlu0 %1983
    %v1985 = vrcp.pop %v1963
    %v1986 = vrcp.pop %v1966
    %v1987 = vrcp.pop %v1969
    %v1988 = vrcp.pop %v1972
    %v1989 = vrcp.pop %v1975
    %v1990 = vrcp.pop %v1978
    %v1991 = vrcp.pop %v1981
    %v1992 = vrcp.pop %v1984
    %v1993 = vmul.f32 %v1946, %v1985
    %v1994 = vmul.f32 %v1948, %v1986
    %v1995 = vmul.f32 %v1950, %v1987
    %v1996 = vmul.f32 %v1952, %v1988
    %v1997 = vmul.f32 %v1954, %v1989
    %v1998 = vmul.f32 %v1956, %v1990
    %v1999 = vmul.f32 %v1958, %v1991
    %v2000 = vmul.f32 %v1960, %v1992
    %v2001 = vadd.f32 %v1473, %v1993
    %v2002 = vadd.f32 %v1474, %v1994
    %v2003 = vadd.f32 %v1475, %v1995
    %v2004 = vadd.f32 %v1476, %v1996
    %v2005 = vadd.f32 %v1477, %v1997
    %v2006 = vadd.f32 %v1478, %v1998
    %v2007 = vadd.f32 %v1479, %v1999
    %v2008 = vadd.f32 %v1480, %v2000
    %2009 = vrot.lane.b32.xlu0 %v88, 40
    %v2010 = vpop.permute.xlu0 %2009
    %v2013 = vsel %vm115, %v1993, 0
    %2015 = vmatpush.msra.mxu0 0.0
    %2016 = vmatpush.msra.mxu0 0.0
    %2017 = vmatpush.msra.mxu0 0.0
    %2018 = vmatpush.msra.mxu0 0.0
    %2019 = vmatpush.msra.mxu0 0.0
    %2020 = vmatpush.msra.mxu0 0.0
    %2021 = vmatpush.msra.mxu0 0.0
    %2022 = vmatpush.msra.mxu0 0.0
    %2023 = vmatpush.msra.mxu0 0.0
    %2024 = vmatpush.msra.mxu0 0.0
    %2025 = vmatpush.msra.mxu0 0.0
    %2026 = vmatpush.msra.mxu0 0.0
    %2027 = vmatpush.msra.mxu0 0.0
    %2028 = vmatpush.msra.mxu0 0.0
    %2029 = vmatpush.msra.mxu0 0.0
    %2030 = vmatpush.msra.mxu0 %v2010
    %2031 = vmatmul.f32.gmra.mxu0 %v2013
    %v2032 = vpop.f32.mrf.mxu0
    %v2033 = vadd.f32 0.0, %v2032
    %2034 = vdwg.mxu0
    %2035 = vrot.lane.b32.xlu0 %v91, 40
    %v2036 = vpop.permute.xlu0 %2035
    %v2039 = vsel %vm115, %v1994, 0
    %2041 = vmatpush.msra.mxu0 0.0
    %2042 = vmatpush.msra.mxu0 0.0
    %2043 = vmatpush.msra.mxu0 0.0
    %2044 = vmatpush.msra.mxu0 0.0
    %2045 = vmatpush.msra.mxu0 0.0
    %2046 = vmatpush.msra.mxu0 0.0
    %2047 = vmatpush.msra.mxu0 0.0
    %2048 = vmatpush.msra.mxu0 0.0
    %2049 = vmatpush.msra.mxu0 0.0
    %2050 = vmatpush.msra.mxu0 0.0
    %2051 = vmatpush.msra.mxu0 0.0
    %2052 = vmatpush.msra.mxu0 0.0
    %2053 = vmatpush.msra.mxu0 0.0
    %2054 = vmatpush.msra.mxu0 0.0
    %2055 = vmatpush.msra.mxu0 0.0
    %2056 = vmatpush.msra.mxu0 %v2036
    %2057 = vmatmul.f32.gmra.mxu0 %v2039
    %v2058 = vpop.f32.mrf.mxu0
    %v2059 = vadd.f32 0.0, %v2058
    %2060 = vdwg.mxu0
    %2061 = vrot.lane.b32.xlu0 %v94, 40
    %v2062 = vpop.permute.xlu0 %2061
    %v2065 = vsel %vm115, %v1995, 0
    %2067 = vmatpush.msra.mxu0 0.0
    %2068 = vmatpush.msra.mxu0 0.0
    %2069 = vmatpush.msra.mxu0 0.0
    %2070 = vmatpush.msra.mxu0 0.0
    %2071 = vmatpush.msra.mxu0 0.0
    %2072 = vmatpush.msra.mxu0 0.0
    %2073 = vmatpush.msra.mxu0 0.0
    %2074 = vmatpush.msra.mxu0 0.0
    %2075 = vmatpush.msra.mxu0 0.0
    %2076 = vmatpush.msra.mxu0 0.0
    %2077 = vmatpush.msra.mxu0 0.0
    %2078 = vmatpush.msra.mxu0 0.0
    %2079 = vmatpush.msra.mxu0 0.0
    %2080 = vmatpush.msra.mxu0 0.0
    %2081 = vmatpush.msra.mxu0 0.0
    %2082 = vmatpush.msra.mxu0 %v2062
    %2083 = vmatmul.f32.gmra.mxu0 %v2065
    %v2084 = vpop.f32.mrf.mxu0
    %v2085 = vadd.f32 0.0, %v2084
    %2086 = vdwg.mxu0
    %2087 = vrot.lane.b32.xlu0 %v97, 40
    %v2088 = vpop.permute.xlu0 %2087
    %v2091 = vsel %vm115, %v1996, 0
    %2093 = vmatpush.msra.mxu0 0.0
    %2094 = vmatpush.msra.mxu0 0.0
    %2095 = vmatpush.msra.mxu0 0.0
    %2096 = vmatpush.msra.mxu0 0.0
    %2097 = vmatpush.msra.mxu0 0.0
    %2098 = vmatpush.msra.mxu0 0.0
    %2099 = vmatpush.msra.mxu0 0.0
    %2100 = vmatpush.msra.mxu0 0.0
    %2101 = vmatpush.msra.mxu0 0.0
    %2102 = vmatpush.msra.mxu0 0.0
    %2103 = vmatpush.msra.mxu0 0.0
    %2104 = vmatpush.msra.mxu0 0.0
    %2105 = vmatpush.msra.mxu0 0.0
    %2106 = vmatpush.msra.mxu0 0.0
    %2107 = vmatpush.msra.mxu0 0.0
    %2108 = vmatpush.msra.mxu0 %v2088
    %2109 = vmatmul.f32.gmra.mxu0 %v2091
    %v2110 = vpop.f32.mrf.mxu0
    %v2111 = vadd.f32 0.0, %v2110
    %2112 = vdwg.mxu0
    %2113 = vrot.lane.b32.xlu0 %v100, 40
    %v2114 = vpop.permute.xlu0 %2113
    %v2117 = vsel %vm115, %v1997, 0
    %2119 = vmatpush.msra.mxu0 0.0
    %2120 = vmatpush.msra.mxu0 0.0
    %2121 = vmatpush.msra.mxu0 0.0
    %2122 = vmatpush.msra.mxu0 0.0
    %2123 = vmatpush.msra.mxu0 0.0
    %2124 = vmatpush.msra.mxu0 0.0
    %2125 = vmatpush.msra.mxu0 0.0
    %2126 = vmatpush.msra.mxu0 0.0
    %2127 = vmatpush.msra.mxu0 0.0
    %2128 = vmatpush.msra.mxu0 0.0
    %2129 = vmatpush.msra.mxu0 0.0
    %2130 = vmatpush.msra.mxu0 0.0
    %2131 = vmatpush.msra.mxu0 0.0
    %2132 = vmatpush.msra.mxu0 0.0
    %2133 = vmatpush.msra.mxu0 0.0
    %2134 = vmatpush.msra.mxu0 %v2114
    %2135 = vmatmul.f32.gmra.mxu0 %v2117
    %v2136 = vpop.f32.mrf.mxu0
    %v2137 = vadd.f32 0.0, %v2136
    %2138 = vdwg.mxu0
    %2139 = vrot.lane.b32.xlu0 %v103, 40
    %v2140 = vpop.permute.xlu0 %2139
    %v2143 = vsel %vm115, %v1998, 0
    %2145 = vmatpush.msra.mxu0 0.0
    %2146 = vmatpush.msra.mxu0 0.0
    %2147 = vmatpush.msra.mxu0 0.0
    %2148 = vmatpush.msra.mxu0 0.0
    %2149 = vmatpush.msra.mxu0 0.0
    %2150 = vmatpush.msra.mxu0 0.0
    %2151 = vmatpush.msra.mxu0 0.0
    %2152 = vmatpush.msra.mxu0 0.0
    %2153 = vmatpush.msra.mxu0 0.0
    %2154 = vmatpush.msra.mxu0 0.0
    %2155 = vmatpush.msra.mxu0 0.0
    %2156 = vmatpush.msra.mxu0 0.0
    %2157 = vmatpush.msra.mxu0 0.0
    %2158 = vmatpush.msra.mxu0 0.0
    %2159 = vmatpush.msra.mxu0 0.0
    %2160 = vmatpush.msra.mxu0 %v2140
    %2161 = vmatmul.f32.gmra.mxu0 %v2143
    %v2162 = vpop.f32.mrf.mxu0
    %v2163 = vadd.f32 0.0, %v2162
    %2164 = vdwg.mxu0
    %2165 = vrot.lane.b32.xlu0 %v106, 40
    %v2166 = vpop.permute.xlu0 %2165
    %v2169 = vsel %vm115, %v1999, 0
    %2171 = vmatpush.msra.mxu0 0.0
    %2172 = vmatpush.msra.mxu0 0.0
    %2173 = vmatpush.msra.mxu0 0.0
    %2174 = vmatpush.msra.mxu0 0.0
    %2175 = vmatpush.msra.mxu0 0.0
    %2176 = vmatpush.msra.mxu0 0.0
    %2177 = vmatpush.msra.mxu0 0.0
    %2178 = vmatpush.msra.mxu0 0.0
    %2179 = vmatpush.msra.mxu0 0.0
    %2180 = vmatpush.msra.mxu0 0.0
    %2181 = vmatpush.msra.mxu0 0.0
    %2182 = vmatpush.msra.mxu0 0.0
    %2183 = vmatpush.msra.mxu0 0.0
    %2184 = vmatpush.msra.mxu0 0.0
    %2185 = vmatpush.msra.mxu0 0.0
    %2186 = vmatpush.msra.mxu0 %v2166
    %2187 = vmatmul.f32.gmra.mxu0 %v2169
    %v2188 = vpop.f32.mrf.mxu0
    %v2189 = vadd.f32 0.0, %v2188
    %2190 = vdwg.mxu0
    %2191 = vrot.lane.b32.xlu0 %v109, 40
    %v2192 = vpop.permute.xlu0 %2191
    %v2195 = vsel %vm115, %v2000, 0
    %2197 = vmatpush.msra.mxu0 0.0
    %2198 = vmatpush.msra.mxu0 0.0
    %2199 = vmatpush.msra.mxu0 0.0
    %2200 = vmatpush.msra.mxu0 0.0
    %2201 = vmatpush.msra.mxu0 0.0
    %2202 = vmatpush.msra.mxu0 0.0
    %2203 = vmatpush.msra.mxu0 0.0
    %2204 = vmatpush.msra.mxu0 0.0
    %2205 = vmatpush.msra.mxu0 0.0
    %2206 = vmatpush.msra.mxu0 0.0
    %2207 = vmatpush.msra.mxu0 0.0
    %2208 = vmatpush.msra.mxu0 0.0
    %2209 = vmatpush.msra.mxu0 0.0
    %2210 = vmatpush.msra.mxu0 0.0
    %2211 = vmatpush.msra.mxu0 0.0
    %2212 = vmatpush.msra.mxu0 %v2192
    %2213 = vmatmul.f32.gmra.mxu0 %v2195
    %v2214 = vpop.f32.mrf.mxu0
    %v2215 = vadd.f32 0.0, %v2214
    %2216 = vdwg.mxu0
    %2225 = vrot.lane.b32.xlu0 %v977, 8
    %v2226 = vpop.permute.xlu0 %2225
    %2227 = vrot.lane.b32.xlu0 %v1003, 8
    %v2228 = vpop.permute.xlu0 %2227
    %2229 = vrot.lane.b32.xlu0 %v1029, 8
    %v2230 = vpop.permute.xlu0 %2229
    %2231 = vrot.lane.b32.xlu0 %v1055, 8
    %v2232 = vpop.permute.xlu0 %2231
    %2233 = vrot.lane.b32.xlu0 %v1081, 8
    %v2234 = vpop.permute.xlu0 %2233
    %2235 = vrot.lane.b32.xlu0 %v1107, 8
    %v2236 = vpop.permute.xlu0 %2235
    %2237 = vrot.lane.b32.xlu0 %v1133, 8
    %v2238 = vpop.permute.xlu0 %2237
    %2239 = vrot.lane.b32.xlu0 %v1159, 8
    %v2240 = vpop.permute.xlu0 %2239
    %2257 = vrot.lane.b32.xlu0 %v1505, 16
    %v2258 = vpop.permute.xlu0 %2257
    %2259 = vrot.lane.b32.xlu0 %v1531, 16
    %v2260 = vpop.permute.xlu0 %2259
    %2261 = vrot.lane.b32.xlu0 %v1557, 16
    %v2262 = vpop.permute.xlu0 %2261
    %2263 = vrot.lane.b32.xlu0 %v1583, 16
    %v2264 = vpop.permute.xlu0 %2263
    %2265 = vrot.lane.b32.xlu0 %v1609, 16
    %v2266 = vpop.permute.xlu0 %2265
    %2267 = vrot.lane.b32.xlu0 %v1635, 16
    %v2268 = vpop.permute.xlu0 %2267
    %2269 = vrot.lane.b32.xlu0 %v1661, 16
    %v2270 = vpop.permute.xlu0 %2269
    %2271 = vrot.lane.b32.xlu0 %v1687, 16
    %v2272 = vpop.permute.xlu0 %2271
    %2289 = vrot.lane.b32.xlu0 %v2033, 24
    %v2290 = vpop.permute.xlu0 %2289
    %2291 = vrot.lane.b32.xlu0 %v2059, 24
    %v2292 = vpop.permute.xlu0 %2291
    %2293 = vrot.lane.b32.xlu0 %v2085, 24
    %v2294 = vpop.permute.xlu0 %2293
    %2295 = vrot.lane.b32.xlu0 %v2111, 24
    %v2296 = vpop.permute.xlu0 %2295
    %2297 = vrot.lane.b32.xlu0 %v2137, 24
    %v2298 = vpop.permute.xlu0 %2297
    %2299 = vrot.lane.b32.xlu0 %v2163, 24
    %v2300 = vpop.permute.xlu0 %2299
    %2301 = vrot.lane.b32.xlu0 %v2189, 24
    %v2302 = vpop.permute.xlu0 %2301
    %2303 = vrot.lane.b32.xlu0 %v2215, 24
    %v2304 = vpop.permute.xlu0 %2303
    %v2313 = vsel %vm115, %v449, %v2226
    %v2314 = vsel %vm115, %v475, %v2228
    %v2315 = vsel %vm115, %v501, %v2230
    %v2316 = vsel %vm115, %v527, %v2232
    %v2317 = vsel %vm115, %v553, %v2234
    %v2318 = vsel %vm115, %v579, %v2236
    %v2319 = vsel %vm115, %v605, %v2238
    %v2320 = vsel %vm115, %v631, %v2240
    %vm2321 = vcmask 130048
    %v2322 = vsel %vm2321, %v2313, %v2258
    %v2323 = vsel %vm2321, %v2314, %v2260
    %v2324 = vsel %vm2321, %v2315, %v2262
    %v2325 = vsel %vm2321, %v2316, %v2264
    %v2326 = vsel %vm2321, %v2317, %v2266
    %v2327 = vsel %vm2321, %v2318, %v2268
    %v2328 = vsel %vm2321, %v2319, %v2270
    %v2329 = vsel %vm2321, %v2320, %v2272
    %vm2330 = vcmask 195584
    %v2331 = vsel %vm2330, %v2322, %v2290
    %v2332 = vsel %vm2330, %v2323, %v2292
    %v2333 = vsel %vm2330, %v2324, %v2294
    %v2334 = vsel %vm2330, %v2325, %v2296
    %v2335 = vsel %vm2330, %v2326, %v2298
    %v2336 = vsel %vm2330, %v2327, %v2300
    %v2337 = vsel %vm2330, %v2328, %v2302
    %v2338 = vsel %vm2330, %v2329, %v2304
    %2343 = vrot.lane.b32.xlu0 %v32, 32
    %v2344 = vpop.permute.xlu0 %2343
    %2345 = vrot.lane.b32.xlu0 %v33, 32
    %v2346 = vpop.permute.xlu0 %2345
    %2347 = vrot.lane.b32.xlu0 %v34, 32
    %v2348 = vpop.permute.xlu0 %2347
    %2349 = vrot.lane.b32.xlu0 %v35, 32
    %v2350 = vpop.permute.xlu0 %2349
    %2356 = vrot.lane.b32.xlu0 %v44, 32
    %v2357 = vpop.permute.xlu0 %2356
    %v2360 = vsel %vm45, %v2331, 0
    %v2363 = vsel %vm45, %v2332, 0
    %v2366 = vsel %vm45, %v2333, 0
    %v2369 = vsel %vm45, %v2334, 0
    %v2372 = vsel %vm45, %v2335, 0
    %v2375 = vsel %vm45, %v2336, 0
    %v2378 = vsel %vm45, %v2337, 0
    %v2381 = vsel %vm45, %v2338, 0
    %2383 = vmatpush.msra.mxu0 0.0
    %2384 = vmatpush.msra.mxu0 0.0
    %2385 = vmatpush.msra.mxu0 0.0
    %2386 = vmatpush.msra.mxu0 0.0
    %2387 = vmatpush.msra.mxu0 0.0
    %2388 = vmatpush.msra.mxu0 0.0
    %2389 = vmatpush.msra.mxu0 0.0
    %2390 = vmatpush.msra.mxu0 0.0
    %2391 = vmatpush.msra.mxu0 0.0
    %2392 = vmatpush.msra.mxu0 0.0
    %2393 = vmatpush.msra.mxu0 0.0
    %2394 = vmatpush.msra.mxu0 0.0
    %2395 = vmatpush.msra.mxu0 %v2350
    %2396 = vmatpush.msra.mxu0 %v2348
    %2397 = vmatpush.msra.mxu0 %v2346
    %2398 = vmatpush.msra.mxu0 %v2344
    %2399 = vmatmul.f32.gmra.mxu0 %v2360
    %v2400 = vpop.f32.mrf.mxu0
    %v2401 = vadd.f32 %v2357, %v2400
    %2402 = vmatmul.f32.gmra.mxu0 %v2363
    %v2403 = vpop.f32.mrf.mxu0
    %v2404 = vadd.f32 %v2357, %v2403
    %2405 = vmatmul.f32.gmra.mxu0 %v2366
    %v2406 = vpop.f32.mrf.mxu0
    %v2407 = vadd.f32 %v2357, %v2406
    %2408 = vmatmul.f32.gmra.mxu0 %v2369
    %v2409 = vpop.f32.mrf.mxu0
    %v2410 = vadd.f32 %v2357, %v2409
    %2411 = vmatmul.f32.gmra.mxu0 %v2372
    %v2412 = vpop.f32.mrf.mxu0
    %v2413 = vadd.f32 %v2357, %v2412
    %2414 = vmatmul.f32.gmra.mxu0 %v2375
    %v2415 = vpop.f32.mrf.mxu0
    %v2416 = vadd.f32 %v2357, %v2415
    %2417 = vmatmul.f32.gmra.mxu0 %v2378
    %v2418 = vpop.f32.mrf.mxu0
    %v2419 = vadd.f32 %v2357, %v2418
    %2420 = vmatmul.f32.gmra.mxu0 %v2381
    %v2421 = vpop.f32.mrf.mxu0
    %v2422 = vadd.f32 %v2357, %v2421
    %2423 = vdwg.mxu0
    %v2424 = vadd.f32 %v24, %v2401
    %v2425 = vadd.f32 %v25, %v2404
    %v2426 = vadd.f32 %v26, %v2407
    %v2427 = vadd.f32 %v27, %v2410
    %v2428 = vadd.f32 %v28, %v2413
    %v2429 = vadd.f32 %v29, %v2416
    %v2430 = vadd.f32 %v30, %v2419
    %v2431 = vadd.f32 %v31, %v2422
    %v2432 = vsel %vm45, %v2424, 0.0
    %2433 = vadd.xlane.f32.xlu0 %v2432
    %v2434 = vpop.xlane.xlu0 %2433
    %v2435 = vsel %vm45, %v2425, 0.0
    %2436 = vadd.xlane.f32.xlu0 %v2435
    %v2437 = vpop.xlane.xlu0 %2436
    %v2438 = vsel %vm45, %v2426, 0.0
    %2439 = vadd.xlane.f32.xlu0 %v2438
    %v2440 = vpop.xlane.xlu0 %2439
    %v2441 = vsel %vm45, %v2427, 0.0
    %2442 = vadd.xlane.f32.xlu0 %v2441
    %v2443 = vpop.xlane.xlu0 %2442
    %v2444 = vsel %vm45, %v2428, 0.0
    %2445 = vadd.xlane.f32.xlu0 %v2444
    %v2446 = vpop.xlane.xlu0 %2445
    %v2447 = vsel %vm45, %v2429, 0.0
    %2448 = vadd.xlane.f32.xlu0 %v2447
    %v2449 = vpop.xlane.xlu0 %2448
    %v2450 = vsel %vm45, %v2430, 0.0
    %2451 = vadd.xlane.f32.xlu0 %v2450
    %v2452 = vpop.xlane.xlu0 %2451
    %v2453 = vsel %vm45, %v2431, 0.0
    %2454 = vadd.xlane.f32.xlu0 %v2453
    %v2455 = vpop.xlane.xlu0 %2454
    %v2456 = vrcp.pop 32.0
    %v2457 = vmul.f32 32.0, %v2456
    %v2458 = vsub.f32 1.0, %v2457
    %v2459 = vmul.f32 %v2456, %v2458
    %v2460 = vadd.f32 %v2456, %v2459
    %vm2461 = vweird.f32 %v2456
    %v2462 = vsel %vm2461, %v2456, %v2460
    %v2463 = vmul.f32 %v2434, %v2462
    %v2464 = vmul.f32 %v2437, %v2462
    %v2465 = vmul.f32 %v2440, %v2462
    %v2466 = vmul.f32 %v2443, %v2462
    %v2467 = vmul.f32 %v2446, %v2462
    %v2468 = vmul.f32 %v2449, %v2462
    %v2469 = vmul.f32 %v2452, %v2462
    %v2470 = vmul.f32 %v2455, %v2462
    %v2471 = vsub.f32 %v2424, %v2463
    %v2472 = vsub.f32 %v2425, %v2464
    %v2473 = vsub.f32 %v2426, %v2465
    %v2474 = vsub.f32 %v2427, %v2466
    %v2475 = vsub.f32 %v2428, %v2467
    %v2476 = vsub.f32 %v2429, %v2468
    %v2477 = vsub.f32 %v2430, %v2469
    %v2478 = vsub.f32 %v2431, %v2470
    %v2479 = vmul.f32 %v2471, %v2471
    %v2480 = vmul.f32 %v2472, %v2472
    %v2481 = vmul.f32 %v2473, %v2473
    %v2482 = vmul.f32 %v2474, %v2474
    %v2483 = vmul.f32 %v2475, %v2475
    %v2484 = vmul.f32 %v2476, %v2476
    %v2485 = vmul.f32 %v2477, %v2477
    %v2486 = vmul.f32 %v2478, %v2478
    %v2487 = vsel %vm45, %v2479, 0.0
    %2488 = vadd.xlane.f32.xlu0 %v2487
    %v2489 = vpop.xlane.xlu0 %2488
    %v2490 = vsel %vm45, %v2480, 0.0
    %2491 = vadd.xlane.f32.xlu0 %v2490
    %v2492 = vpop.xlane.xlu0 %2491
    %v2493 = vsel %vm45, %v2481, 0.0
    %2494 = vadd.xlane.f32.xlu0 %v2493
    %v2495 = vpop.xlane.xlu0 %2494
    %v2496 = vsel %vm45, %v2482, 0.0
    %2497 = vadd.xlane.f32.xlu0 %v2496
    %v2498 = vpop.xlane.xlu0 %2497
    %v2499 = vsel %vm45, %v2483, 0.0
    %2500 = vadd.xlane.f32.xlu0 %v2499
    %v2501 = vpop.xlane.xlu0 %2500
    %v2502 = vsel %vm45, %v2484, 0.0
    %2503 = vadd.xlane.f32.xlu0 %v2502
    %v2504 = vpop.xlane.xlu0 %2503
    %v2505 = vsel %vm45, %v2485, 0.0
    %2506 = vadd.xlane.f32.xlu0 %v2505
    %v2507 = vpop.xlane.xlu0 %2506
    %v2508 = vsel %vm45, %v2486, 0.0
    %2509 = vadd.xlane.f32.xlu0 %v2508
    %v2510 = vpop.xlane.xlu0 %2509
    %v2511 = vmul.f32 %v2489, %v2462
    %v2512 = vmul.f32 %v2492, %v2462
    %v2513 = vmul.f32 %v2495, %v2462
    %v2514 = vmul.f32 %v2498, %v2462
    %v2515 = vmul.f32 %v2501, %v2462
    %v2516 = vmul.f32 %v2504, %v2462
    %v2517 = vmul.f32 %v2507, %v2462
    %v2518 = vmul.f32 %v2510, %v2462
    %v2519 = vadd.f32 %v2511, 1e-05
    %v2520 = vadd.f32 %v2512, 1e-05
    %v2521 = vadd.f32 %v2513, 1e-05
    %v2522 = vadd.f32 %v2514, 1e-05
    %v2523 = vadd.f32 %v2515, 1e-05
    %v2524 = vadd.f32 %v2516, 1e-05
    %v2525 = vadd.f32 %v2517, 1e-05
    %v2526 = vadd.f32 %v2518, 1e-05
    %v2527 = vrsqrt.pop %v2519
    %v2528 = vmul.f32 %v2527, %v2519
    %v2529 = vmul.f32 %v2528, %v2527
    %v2530 = vmul.f32 0.5, %v2529
    %v2531 = vsub.f32 1.5, %v2530
    %v2532 = vmul.f32 %v2527, %v2531
    %vm2533 = vweird.f32 %v2519
    %vm2534 = vweird.f32 %v2527
    %vm2535 = vmor %vm2533, %vm2534
    %v2536 = vsel %vm2535, %v2527, %v2532
    %v2537 = vrsqrt.pop %v2520
    %v2538 = vmul.f32 %v2537, %v2520
    %v2539 = vmul.f32 %v2538, %v2537
    %v2540 = vmul.f32 0.5, %v2539
    %v2541 = vsub.f32 1.5, %v2540
    %v2542 = vmul.f32 %v2537, %v2541
    %vm2543 = vweird.f32 %v2520
    %vm2544 = vweird.f32 %v2537
    %vm2545 = vmor %vm2543, %vm2544
    %v2546 = vsel %vm2545, %v2537, %v2542
    %v2547 = vrsqrt.pop %v2521
    %v2548 = vmul.f32 %v2547, %v2521
    %v2549 = vmul.f32 %v2548, %v2547
    %v2550 = vmul.f32 0.5, %v2549
    %v2551 = vsub.f32 1.5, %v2550
    %v2552 = vmul.f32 %v2547, %v2551
    %vm2553 = vweird.f32 %v2521
    %vm2554 = vweird.f32 %v2547
    %vm2555 = vmor %vm2553, %vm2554
    %v2556 = vsel %vm2555, %v2547, %v2552
    %v2557 = vrsqrt.pop %v2522
    %v2558 = vmul.f32 %v2557, %v2522
    %v2559 = vmul.f32 %v2558, %v2557
    %v2560 = vmul.f32 0.5, %v2559
    %v2561 = vsub.f32 1.5, %v2560
    %v2562 = vmul.f32 %v2557, %v2561
    %vm2563 = vweird.f32 %v2522
    %vm2564 = vweird.f32 %v2557
    %vm2565 = vmor %vm2563, %vm2564
    %v2566 = vsel %vm2565, %v2557, %v2562
    %v2567 = vrsqrt.pop %v2523
    %v2568 = vmul.f32 %v2567, %v2523
    %v2569 = vmul.f32 %v2568, %v2567
    %v2570 = vmul.f32 0.5, %v2569
    %v2571 = vsub.f32 1.5, %v2570
    %v2572 = vmul.f32 %v2567, %v2571
    %vm2573 = vweird.f32 %v2523
    %vm2574 = vweird.f32 %v2567
    %vm2575 = vmor %vm2573, %vm2574
    %v2576 = vsel %vm2575, %v2567, %v2572
    %v2577 = vrsqrt.pop %v2524
    %v2578 = vmul.f32 %v2577, %v2524
    %v2579 = vmul.f32 %v2578, %v2577
    %v2580 = vmul.f32 0.5, %v2579
    %v2581 = vsub.f32 1.5, %v2580
    %v2582 = vmul.f32 %v2577, %v2581
    %vm2583 = vweird.f32 %v2524
    %vm2584 = vweird.f32 %v2577
    %vm2585 = vmor %vm2583, %vm2584
    %v2586 = vsel %vm2585, %v2577, %v2582
    %v2587 = vrsqrt.pop %v2525
    %v2588 = vmul.f32 %v2587, %v2525
    %v2589 = vmul.f32 %v2588, %v2587
    %v2590 = vmul.f32 0.5, %v2589
    %v2591 = vsub.f32 1.5, %v2590
    %v2592 = vmul.f32 %v2587, %v2591
    %vm2593 = vweird.f32 %v2525
    %vm2594 = vweird.f32 %v2587
    %vm2595 = vmor %vm2593, %vm2594
    %v2596 = vsel %vm2595, %v2587, %v2592
    %v2597 = vrsqrt.pop %v2526
    %v2598 = vmul.f32 %v2597, %v2526
    %v2599 = vmul.f32 %v2598, %v2597
    %v2600 = vmul.f32 0.5, %v2599
    %v2601 = vsub.f32 1.5, %v2600
    %v2602 = vmul.f32 %v2597, %v2601
    %vm2603 = vweird.f32 %v2526
    %vm2604 = vweird.f32 %v2597
    %vm2605 = vmor %vm2603, %vm2604
    %v2606 = vsel %vm2605, %v2597, %v2602
    %v2607 = vmul.f32 %v2471, %v2536
    %v2608 = vmul.f32 %v2472, %v2546
    %v2609 = vmul.f32 %v2473, %v2556
    %v2610 = vmul.f32 %v2474, %v2566
    %v2611 = vmul.f32 %v2475, %v2576
    %v2612 = vmul.f32 %v2476, %v2586
    %v2613 = vmul.f32 %v2477, %v2596
    %v2614 = vmul.f32 %v2478, %v2606
    %v2615 = vperm.slane %v42, 0
    %2617 = vrot.lane.b32.xlu0 %v2615, 96
    %v2618 = vpop.permute.xlu0 %2617
    %v2620 = vmul.f32 %v2607, %v2618
    %v2621 = vmul.f32 %v2608, %v2618
    %v2622 = vmul.f32 %v2609, %v2618
    %v2623 = vmul.f32 %v2610, %v2618
    %v2624 = vmul.f32 %v2611, %v2618
    %v2625 = vmul.f32 %v2612, %v2618
    %v2626 = vmul.f32 %v2613, %v2618
    %v2627 = vmul.f32 %v2614, %v2618
    %2628 = vrot.lane.b32.xlu0 %v2615, 64
    %v2629 = vpop.permute.xlu0 %2628
    %v2631 = vadd.f32 %v2620, %v2629
    %v2632 = vadd.f32 %v2621, %v2629
    %v2633 = vadd.f32 %v2622, %v2629
    %v2634 = vadd.f32 %v2623, %v2629
    %v2635 = vadd.f32 %v2624, %v2629
    %v2636 = vadd.f32 %v2625, %v2629
    %v2637 = vadd.f32 %v2626, %v2629
    %v2638 = vadd.f32 %v2627, %v2629
    %v2639 = vperm.slane %v41, 0
    %v2641 = vsel %vm45, %v2631, 0
    %v2644 = vsel %vm45, %v2632, 0
    %v2647 = vsel %vm45, %v2633, 0
    %v2650 = vsel %vm45, %v2634, 0
    %v2653 = vsel %vm45, %v2635, 0
    %v2656 = vsel %vm45, %v2636, 0
    %v2659 = vsel %vm45, %v2637, 0
    %v2662 = vsel %vm45, %v2638, 0
    %2664 = vmatpush.msra.mxu0 0.0
    %2665 = vmatpush.msra.mxu0 0.0
    %2666 = vmatpush.msra.mxu0 0.0
    %2667 = vmatpush.msra.mxu0 0.0
    %2668 = vmatpush.msra.mxu0 0.0
    %2669 = vmatpush.msra.mxu0 0.0
    %2670 = vmatpush.msra.mxu0 0.0
    %2671 = vmatpush.msra.mxu0 0.0
    %2672 = vmatpush.msra.mxu0 0.0
    %2673 = vmatpush.msra.mxu0 0.0
    %2674 = vmatpush.msra.mxu0 0.0
    %2675 = vmatpush.msra.mxu0 0.0
    %2676 = vmatpush.msra.mxu0 %v39
    %2677 = vmatpush.msra.mxu0 %v38
    %2678 = vmatpush.msra.mxu0 %v37
    %2679 = vmatpush.msra.mxu0 %v36
    %2680 = vmatmul.f32.gmra.mxu0 %v2641
    %v2681 = vpop.f32.mrf.mxu0
    %v2682 = vadd.f32 %v2639, %v2681
    %2683 = vmatmul.f32.gmra.mxu0 %v2644
    %v2684 = vpop.f32.mrf.mxu0
    %v2685 = vadd.f32 %v2639, %v2684
    %2686 = vmatmul.f32.gmra.mxu0 %v2647
    %v2687 = vpop.f32.mrf.mxu0
    %v2688 = vadd.f32 %v2639, %v2687
    %2689 = vmatmul.f32.gmra.mxu0 %v2650
    %v2690 = vpop.f32.mrf.mxu0
    %v2691 = vadd.f32 %v2639, %v2690
    %2692 = vmatmul.f32.gmra.mxu0 %v2653
    %v2693 = vpop.f32.mrf.mxu0
    %v2694 = vadd.f32 %v2639, %v2693
    %2695 = vmatmul.f32.gmra.mxu0 %v2656
    %v2696 = vpop.f32.mrf.mxu0
    %v2697 = vadd.f32 %v2639, %v2696
    %2698 = vmatmul.f32.gmra.mxu0 %v2659
    %v2699 = vpop.f32.mrf.mxu0
    %v2700 = vadd.f32 %v2639, %v2699
    %2701 = vmatmul.f32.gmra.mxu0 %v2662
    %v2702 = vpop.f32.mrf.mxu0
    %v2703 = vadd.f32 %v2639, %v2702
    %2704 = vdwg.mxu0
    %v2705 = vmax.f32 %v2682, 0.0
    %v2706 = vmax.f32 %v2685, 0.0
    %v2707 = vmax.f32 %v2688, 0.0
    %v2708 = vmax.f32 %v2691, 0.0
    %v2709 = vmax.f32 %v2694, 0.0
    %v2710 = vmax.f32 %v2697, 0.0
    %v2711 = vmax.f32 %v2700, 0.0
    %v2712 = vmax.f32 %v2703, 0.0
    %v2713 = vld [vmem:[%s3] sm:$0xff]
    %v2714 = vld [vmem:[%s3 + $0x8] sm:$0xff]
    %v2715 = vld [vmem:[%s3 + $0x10] sm:$0xff]
    %v2716 = vld [vmem:[%s3 + $0x18] sm:$0xff]
    %v2717 = vld [vmem:[%s3 + $0x20] sm:$0xff]
    %v2718 = vld [vmem:[%s3 + $0x28] sm:$0xff]
    %v2719 = vld [vmem:[%s3 + $0x30] sm:$0xff]
    %v2720 = vld [vmem:[%s3 + $0x38] sm:$0xff]
    %v2721 = vld [vmem:[%s3 + $0x40] sm:$0xff]
    %v2722 = vld [vmem:[%s3 + $0x48] sm:$0xff]
    %v2723 = vld [vmem:[%s3 + $0x50] sm:$0xff]
    %v2724 = vld [vmem:[%s3 + $0x58] sm:$0xff]
    %v2725 = vld [vmem:[%s3 + $0x60] sm:$0xff]
    %v2726 = vld [vmem:[%s3 + $0x68] sm:$0xff]
    %v2727 = vld [vmem:[%s3 + $0x70] sm:$0xff]
    %v2728 = vld [vmem:[%s3 + $0x78] sm:$0xff]
    %2729 = vmatpush.msra.mxu0 %v2728
    %2730 = vmatpush.msra.mxu0 %v2727
    %2731 = vmatpush.msra.mxu0 %v2726
    %2732 = vmatpush.msra.mxu0 %v2725
    %2733 = vmatpush.msra.mxu0 %v2724
    %2734 = vmatpush.msra.mxu0 %v2723
    %2735 = vmatpush.msra.mxu0 %v2722
    %2736 = vmatpush.msra.mxu0 %v2721
    %2737 = vmatpush.msra.mxu0 %v2720
    %2738 = vmatpush.msra.mxu0 %v2719
    %2739 = vmatpush.msra.mxu0 %v2718
    %2740 = vmatpush.msra.mxu0 %v2717
    %2741 = vmatpush.msra.mxu0 %v2716
    %2742 = vmatpush.msra.mxu0 %v2715
    %2743 = vmatpush.msra.mxu0 %v2714
    %2744 = vmatpush.msra.mxu0 %v2713
    %2745 = vmatmul.f32.gmra.mxu0 %v2705
    %v2746 = vpop.f32.mrf.mxu0
    %v2747 = vadd.f32 %v2615, %v2746
    %2748 = vmatmul.f32.gmra.mxu0 %v2706
    %v2749 = vpop.f32.mrf.mxu0
    %v2750 = vadd.f32 %v2615, %v2749
    %2751 = vmatmul.f32.gmra.mxu0 %v2707
    %v2752 = vpop.f32.mrf.mxu0
    %v2753 = vadd.f32 %v2615, %v2752
    %2754 = vmatmul.f32.gmra.mxu0 %v2708
    %v2755 = vpop.f32.mrf.mxu0
    %v2756 = vadd.f32 %v2615, %v2755
    %2757 = vmatmul.f32.gmra.mxu0 %v2709
    %v2758 = vpop.f32.mrf.mxu0
    %v2759 = vadd.f32 %v2615, %v2758
    %2760 = vmatmul.f32.gmra.mxu0 %v2710
    %v2761 = vpop.f32.mrf.mxu0
    %v2762 = vadd.f32 %v2615, %v2761
    %2763 = vmatmul.f32.gmra.mxu0 %v2711
    %v2764 = vpop.f32.mrf.mxu0
    %v2765 = vadd.f32 %v2615, %v2764
    %2766 = vmatmul.f32.gmra.mxu0 %v2712
    %v2767 = vpop.f32.mrf.mxu0
    %v2768 = vadd.f32 %v2615, %v2767
    %2769 = vdwg.mxu0
    %v2770 = vadd.f32 %v2631, %v2747
    %v2771 = vadd.f32 %v2632, %v2750
    %v2772 = vadd.f32 %v2633, %v2753
    %v2773 = vadd.f32 %v2634, %v2756
    %v2774 = vadd.f32 %v2635, %v2759
    %v2775 = vadd.f32 %v2636, %v2762
    %v2776 = vadd.f32 %v2637, %v2765
    %v2777 = vadd.f32 %v2638, %v2768
    %v2778 = vsel %vm45, %v2770, 0.0
    %2779 = vadd.xlane.f32.xlu0 %v2778
    %v2780 = vpop.xlane.xlu0 %2779
    %v2781 = vsel %vm45, %v2771, 0.0
    %2782 = vadd.xlane.f32.xlu0 %v2781
    %v2783 = vpop.xlane.xlu0 %2782
    %v2784 = vsel %vm45, %v2772, 0.0
    %2785 = vadd.xlane.f32.xlu0 %v2784
    %v2786 = vpop.xlane.xlu0 %2785
    %v2787 = vsel %vm45, %v2773, 0.0
    %2788 = vadd.xlane.f32.xlu0 %v2787
    %v2789 = vpop.xlane.xlu0 %2788
    %v2790 = vsel %vm45, %v2774, 0.0
    %2791 = vadd.xlane.f32.xlu0 %v2790
    %v2792 = vpop.xlane.xlu0 %2791
    %v2793 = vsel %vm45, %v2775, 0.0
    %2794 = vadd.xlane.f32.xlu0 %v2793
    %v2795 = vpop.xlane.xlu0 %2794
    %v2796 = vsel %vm45, %v2776, 0.0
    %2797 = vadd.xlane.f32.xlu0 %v2796
    %v2798 = vpop.xlane.xlu0 %2797
    %v2799 = vsel %vm45, %v2777, 0.0
    %2800 = vadd.xlane.f32.xlu0 %v2799
    %v2801 = vpop.xlane.xlu0 %2800
    %v2802 = vmul.f32 %v2780, %v2462
    %v2803 = vmul.f32 %v2783, %v2462
    %v2804 = vmul.f32 %v2786, %v2462
    %v2805 = vmul.f32 %v2789, %v2462
    %v2806 = vmul.f32 %v2792, %v2462
    %v2807 = vmul.f32 %v2795, %v2462
    %v2808 = vmul.f32 %v2798, %v2462
    %v2809 = vmul.f32 %v2801, %v2462
    %v2810 = vsub.f32 %v2770, %v2802
    %v2811 = vsub.f32 %v2771, %v2803
    %v2812 = vsub.f32 %v2772, %v2804
    %v2813 = vsub.f32 %v2773, %v2805
    %v2814 = vsub.f32 %v2774, %v2806
    %v2815 = vsub.f32 %v2775, %v2807
    %v2816 = vsub.f32 %v2776, %v2808
    %v2817 = vsub.f32 %v2777, %v2809
    %v2818 = vmul.f32 %v2810, %v2810
    %v2819 = vmul.f32 %v2811, %v2811
    %v2820 = vmul.f32 %v2812, %v2812
    %v2821 = vmul.f32 %v2813, %v2813
    %v2822 = vmul.f32 %v2814, %v2814
    %v2823 = vmul.f32 %v2815, %v2815
    %v2824 = vmul.f32 %v2816, %v2816
    %v2825 = vmul.f32 %v2817, %v2817
    %v2826 = vsel %vm45, %v2818, 0.0
    %2827 = vadd.xlane.f32.xlu0 %v2826
    %v2828 = vpop.xlane.xlu0 %2827
    %v2829 = vsel %vm45, %v2819, 0.0
    %2830 = vadd.xlane.f32.xlu0 %v2829
    %v2831 = vpop.xlane.xlu0 %2830
    %v2832 = vsel %vm45, %v2820, 0.0
    %2833 = vadd.xlane.f32.xlu0 %v2832
    %v2834 = vpop.xlane.xlu0 %2833
    %v2835 = vsel %vm45, %v2821, 0.0
    %2836 = vadd.xlane.f32.xlu0 %v2835
    %v2837 = vpop.xlane.xlu0 %2836
    %v2838 = vsel %vm45, %v2822, 0.0
    %2839 = vadd.xlane.f32.xlu0 %v2838
    %v2840 = vpop.xlane.xlu0 %2839
    %v2841 = vsel %vm45, %v2823, 0.0
    %2842 = vadd.xlane.f32.xlu0 %v2841
    %v2843 = vpop.xlane.xlu0 %2842
    %v2844 = vsel %vm45, %v2824, 0.0
    %2845 = vadd.xlane.f32.xlu0 %v2844
    %v2846 = vpop.xlane.xlu0 %2845
    %v2847 = vsel %vm45, %v2825, 0.0
    %2848 = vadd.xlane.f32.xlu0 %v2847
    %v2849 = vpop.xlane.xlu0 %2848
    %v2850 = vmul.f32 %v2828, %v2462
    %v2851 = vmul.f32 %v2831, %v2462
    %v2852 = vmul.f32 %v2834, %v2462
    %v2853 = vmul.f32 %v2837, %v2462
    %v2854 = vmul.f32 %v2840, %v2462
    %v2855 = vmul.f32 %v2843, %v2462
    %v2856 = vmul.f32 %v2846, %v2462
    %v2857 = vmul.f32 %v2849, %v2462
    %v2858 = vadd.f32 %v2850, 1e-05
    %v2859 = vadd.f32 %v2851, 1e-05
    %v2860 = vadd.f32 %v2852, 1e-05
    %v2861 = vadd.f32 %v2853, 1e-05
    %v2862 = vadd.f32 %v2854, 1e-05
    %v2863 = vadd.f32 %v2855, 1e-05
    %v2864 = vadd.f32 %v2856, 1e-05
    %v2865 = vadd.f32 %v2857, 1e-05
    %v2866 = vrsqrt.pop %v2858
    %v2867 = vmul.f32 %v2866, %v2858
    %v2868 = vmul.f32 %v2867, %v2866
    %v2869 = vmul.f32 0.5, %v2868
    %v2870 = vsub.f32 1.5, %v2869
    %v2871 = vmul.f32 %v2866, %v2870
    %vm2872 = vweird.f32 %v2858
    %vm2873 = vweird.f32 %v2866
    %vm2874 = vmor %vm2872, %vm2873
    %v2875 = vsel %vm2874, %v2866, %v2871
    %v2876 = vrsqrt.pop %v2859
    %v2877 = vmul.f32 %v2876, %v2859
    %v2878 = vmul.f32 %v2877, %v2876
    %v2879 = vmul.f32 0.5, %v2878
    %v2880 = vsub.f32 1.5, %v2879
    %v2881 = vmul.f32 %v2876, %v2880
    %vm2882 = vweird.f32 %v2859
    %vm2883 = vweird.f32 %v2876
    %vm2884 = vmor %vm2882, %vm2883
    %v2885 = vsel %vm2884, %v2876, %v2881
    %v2886 = vrsqrt.pop %v2860
    %v2887 = vmul.f32 %v2886, %v2860
    %v2888 = vmul.f32 %v2887, %v2886
    %v2889 = vmul.f32 0.5, %v2888
    %v2890 = vsub.f32 1.5, %v2889
    %v2891 = vmul.f32 %v2886, %v2890
    %vm2892 = vweird.f32 %v2860
    %vm2893 = vweird.f32 %v2886
    %vm2894 = vmor %vm2892, %vm2893
    %v2895 = vsel %vm2894, %v2886, %v2891
    %v2896 = vrsqrt.pop %v2861
    %v2897 = vmul.f32 %v2896, %v2861
    %v2898 = vmul.f32 %v2897, %v2896
    %v2899 = vmul.f32 0.5, %v2898
    %v2900 = vsub.f32 1.5, %v2899
    %v2901 = vmul.f32 %v2896, %v2900
    %vm2902 = vweird.f32 %v2861
    %vm2903 = vweird.f32 %v2896
    %vm2904 = vmor %vm2902, %vm2903
    %v2905 = vsel %vm2904, %v2896, %v2901
    %v2906 = vrsqrt.pop %v2862
    %v2907 = vmul.f32 %v2906, %v2862
    %v2908 = vmul.f32 %v2907, %v2906
    %v2909 = vmul.f32 0.5, %v2908
    %v2910 = vsub.f32 1.5, %v2909
    %v2911 = vmul.f32 %v2906, %v2910
    %vm2912 = vweird.f32 %v2862
    %vm2913 = vweird.f32 %v2906
    %vm2914 = vmor %vm2912, %vm2913
    %v2915 = vsel %vm2914, %v2906, %v2911
    %v2916 = vrsqrt.pop %v2863
    %v2917 = vmul.f32 %v2916, %v2863
    %v2918 = vmul.f32 %v2917, %v2916
    %v2919 = vmul.f32 0.5, %v2918
    %v2920 = vsub.f32 1.5, %v2919
    %v2921 = vmul.f32 %v2916, %v2920
    %vm2922 = vweird.f32 %v2863
    %vm2923 = vweird.f32 %v2916
    %vm2924 = vmor %vm2922, %vm2923
    %v2925 = vsel %vm2924, %v2916, %v2921
    %v2926 = vrsqrt.pop %v2864
    %v2927 = vmul.f32 %v2926, %v2864
    %v2928 = vmul.f32 %v2927, %v2926
    %v2929 = vmul.f32 0.5, %v2928
    %v2930 = vsub.f32 1.5, %v2929
    %v2931 = vmul.f32 %v2926, %v2930
    %vm2932 = vweird.f32 %v2864
    %vm2933 = vweird.f32 %v2926
    %vm2934 = vmor %vm2932, %vm2933
    %v2935 = vsel %vm2934, %v2926, %v2931
    %v2936 = vrsqrt.pop %v2865
    %v2937 = vmul.f32 %v2936, %v2865
    %v2938 = vmul.f32 %v2937, %v2936
    %v2939 = vmul.f32 0.5, %v2938
    %v2940 = vsub.f32 1.5, %v2939
    %v2941 = vmul.f32 %v2936, %v2940
    %vm2942 = vweird.f32 %v2865
    %vm2943 = vweird.f32 %v2936
    %vm2944 = vmor %vm2942, %vm2943
    %v2945 = vsel %vm2944, %v2936, %v2941
    %v2946 = vmul.f32 %v2810, %v2875
    %v2947 = vmul.f32 %v2811, %v2885
    %v2948 = vmul.f32 %v2812, %v2895
    %v2949 = vmul.f32 %v2813, %v2905
    %v2950 = vmul.f32 %v2814, %v2915
    %v2951 = vmul.f32 %v2815, %v2925
    %v2952 = vmul.f32 %v2816, %v2935
    %v2953 = vmul.f32 %v2817, %v2945
    %2954 = vrot.lane.b32.xlu0 %v2615, 32
    %v2955 = vpop.permute.xlu0 %2954
    %v2957 = vmul.f32 %v2946, %v2955
    %v2958 = vmul.f32 %v2947, %v2955
    %v2959 = vmul.f32 %v2948, %v2955
    %v2960 = vmul.f32 %v2949, %v2955
    %v2961 = vmul.f32 %v2950, %v2955
    %v2962 = vmul.f32 %v2951, %v2955
    %v2963 = vmul.f32 %v2952, %v2955
    %v2964 = vmul.f32 %v2953, %v2955
    %v2965 = vperm.slane %v43, 0
    %v2966 = vadd.f32 %v2957, %v2965
    %v2967 = vadd.f32 %v2958, %v2965
    %v2968 = vadd.f32 %v2959, %v2965
    %v2969 = vadd.f32 %v2960, %v2965
    %v2970 = vadd.f32 %v2961, %v2965
    %v2971 = vadd.f32 %v2962, %v2965
    %v2972 = vadd.f32 %v2963, %v2965
    %v2973 = vadd.f32 %v2964, %v2965
    %v2982 = vrot.slane %v2967, 7
    %vm2983 = vcmask 1041409
    %v2984 = vsel %vm2983, %v2982, %v2966
    %v2985 = vrot.slane %v2968, 6
    %vm2986 = vcmask 1042434
    %v2987 = vsel %vm2986, %v2985, %v2984
    %v2988 = vrot.slane %v2969, 5
    %vm2989 = vcmask 1043459
    %v2990 = vsel %vm2989, %v2988, %v2987
    %v2991 = vrot.slane %v2970, 4
    %vm2992 = vcmask 1044484
    %v2993 = vsel %vm2992, %v2991, %v2990
    %v2994 = vrot.slane %v2971, 3
    %vm2995 = vcmask 1045509
    %v2996 = vsel %vm2995, %v2994, %v2993
    %v2997 = vrot.slane %v2972, 2
    %vm2998 = vcmask 1046534
    %v2999 = vsel %vm2998, %v2997, %v2996
    %v3000 = vrot.slane %v2973, 1
    %vm3001 = vcmask 1047559
    %v3002 = vsel %vm3001, %v3000, %v2999
    %v3004 = vrot.slane %v2966, 1
    %v3005 = vsel %vm2983, %v2967, %v3004
    %v3006 = vrot.slane %v2968, 7
    %v3007 = vsel %vm2986, %v3006, %v3005
    %v3008 = vrot.slane %v2969, 6
    %v3009 = vsel %vm2989, %v3008, %v3007
    %v3010 = vrot.slane %v2970, 5
    %v3011 = vsel %vm2992, %v3010, %v3009
    %v3012 = vrot.slane %v2971, 4
    %v3013 = vsel %vm2995, %v3012, %v3011
    %v3014 = vrot.slane %v2972, 3
    %v3015 = vsel %vm2998, %v3014, %v3013
    %v3016 = vrot.slane %v2973, 2
    %v3017 = vsel %vm3001, %v3016, %v3015
    %3018 = vrot.lane.b32.xlu0 %v3017, 32
    %v3019 = vpop.permute.xlu0 %3018
    %v3021 = vrot.slane %v2966, 2
    %v3022 = vrot.slane %v2967, 1
    %v3023 = vsel %vm2983, %v3022, %v3021
    %v3024 = vsel %vm2986, %v2968, %v3023
    %v3025 = vrot.slane %v2969, 7
    %v3026 = vsel %vm2989, %v3025, %v3024
    %v3027 = vrot.slane %v2970, 6
    %v3028 = vsel %vm2992, %v3027, %v3026
    %v3029 = vrot.slane %v2971, 5
    %v3030 = vsel %vm2995, %v3029, %v3028
    %v3031 = vrot.slane %v2972, 4
    %v3032 = vsel %vm2998, %v3031, %v3030
    %v3033 = vrot.slane %v2973, 3
    %v3034 = vsel %vm3001, %v3033, %v3032
    %3035 = vrot.lane.b32.xlu0 %v3034, 64
    %v3036 = vpop.permute.xlu0 %3035
    %v3038 = vrot.slane %v2966, 3
    %v3039 = vrot.slane %v2967, 2
    %v3040 = vsel %vm2983, %v3039, %v3038
    %v3041 = vrot.slane %v2968, 1
    %v3042 = vsel %vm2986, %v3041, %v3040
    %v3043 = vsel %vm2989, %v2969, %v3042
    %v3044 = vrot.slane %v2970, 7
    %v3045 = vsel %vm2992, %v3044, %v3043
    %v3046 = vrot.slane %v2971, 6
    %v3047 = vsel %vm2995, %v3046, %v3045
    %v3048 = vrot.slane %v2972, 5
    %v3049 = vsel %vm2998, %v3048, %v3047
    %v3050 = vrot.slane %v2973, 4
    %v3051 = vsel %vm3001, %v3050, %v3049
    %3052 = vrot.lane.b32.xlu0 %v3051, 96
    %v3053 = vpop.permute.xlu0 %3052
    %v3055 = vrot.slane %v2966, 4
    %v3056 = vrot.slane %v2967, 3
    %v3057 = vsel %vm2983, %v3056, %v3055
    %v3058 = vrot.slane %v2968, 2
    %v3059 = vsel %vm2986, %v3058, %v3057
    %v3060 = vrot.slane %v2969, 1
    %v3061 = vsel %vm2989, %v3060, %v3059
    %v3062 = vsel %vm2992, %v2970, %v3061
    %v3063 = vrot.slane %v2971, 7
    %v3064 = vsel %vm2995, %v3063, %v3062
    %v3065 = vrot.slane %v2972, 6
    %v3066 = vsel %vm2998, %v3065, %v3064
    %v3067 = vrot.slane %v2973, 5
    %v3068 = vsel %vm3001, %v3067, %v3066
    %v3070 = vrot.slane %v2966, 5
    %v3071 = vrot.slane %v2967, 4
    %v3072 = vsel %vm2983, %v3071, %v3070
    %v3073 = vrot.slane %v2968, 3
    %v3074 = vsel %vm2986, %v3073, %v3072
    %v3075 = vrot.slane %v2969, 2
    %v3076 = vsel %vm2989, %v3075, %v3074
    %v3077 = vrot.slane %v2970, 1
    %v3078 = vsel %vm2992, %v3077, %v3076
    %v3079 = vsel %vm2995, %v2971, %v3078
    %v3080 = vrot.slane %v2972, 7
    %v3081 = vsel %vm2998, %v3080, %v3079
    %v3082 = vrot.slane %v2973, 6
    %v3083 = vsel %vm3001, %v3082, %v3081
    %3084 = vrot.lane.b32.xlu0 %v3083, 32
    %v3085 = vpop.permute.xlu0 %3084
    %v3087 = vrot.slane %v2966, 6
    %v3088 = vrot.slane %v2967, 5
    %v3089 = vsel %vm2983, %v3088, %v3087
    %v3090 = vrot.slane %v2968, 4
    %v3091 = vsel %vm2986, %v3090, %v3089
    %v3092 = vrot.slane %v2969, 3
    %v3093 = vsel %vm2989, %v3092, %v3091
    %v3094 = vrot.slane %v2970, 2
    %v3095 = vsel %vm2992, %v3094, %v3093
    %v3096 = vrot.slane %v2971, 1
    %v3097 = vsel %vm2995, %v3096, %v3095
    %v3098 = vsel %vm2998, %v2972, %v3097
    %v3099 = vrot.slane %v2973, 7
    %v3100 = vsel %vm3001, %v3099, %v3098
    %3101 = vrot.lane.b32.xlu0 %v3100, 64
    %v3102 = vpop.permute.xlu0 %3101
    %v3104 = vrot.slane %v2966, 7
    %v3105 = vrot.slane %v2967, 6
    %v3106 = vsel %vm2983, %v3105, %v3104
    %v3107 = vrot.slane %v2968, 5
    %v3108 = vsel %vm2986, %v3107, %v3106
    %v3109 = vrot.slane %v2969, 4
    %v3110 = vsel %vm2989, %v3109, %v3108
    %v3111 = vrot.slane %v2970, 3
    %v3112 = vsel %vm2992, %v3111, %v3110
    %v3113 = vrot.slane %v2971, 2
    %v3114 = vsel %vm2995, %v3113, %v3112
    %v3115 = vrot.slane %v2972, 1
    %v3116 = vsel %vm2998, %v3115, %v3114
    %v3117 = vsel %vm3001, %v2973, %v3116
    %3118 = vrot.lane.b32.xlu0 %v3117, 96
    %v3119 = vpop.permute.xlu0 %3118
    %v3121 = vsel %vm45, %v3002, %v3019
    %vm3122 = vcmask 523264
    %v3123 = vsel %vm3122, %v3121, %v3036
    %vm3124 = vcmask 785408
    %v3125 = vsel %vm3124, %v3123, %v3053
    %v3126 = vsel %vm45, %v3068, %v3085
    %v3127 = vsel %vm3122, %v3126, %v3102
    %v3128 = vsel %vm3124, %v3127, %v3119
    %3129 = vst [vmem:[#allocation2] sm:$0xff] %v3125
    %3130 = vst [vmem:[#allocation2 + $0x8] sm:$0xff] %v3128
    %v3131 = vmul.f32 %v2001, 0.25
    %v3132 = vmul.f32 %v2002, 0.25
    %v3133 = vmul.f32 %v2003, 0.25
    %v3134 = vmul.f32 %v2004, 0.25
    %v3135 = vmul.f32 %v2005, 0.25
    %v3136 = vmul.f32 %v2006, 0.25
    %v3137 = vmul.f32 %v2007, 0.25
    %v3138 = vmul.f32 %v2008, 0.25
    %v3147 = vrot.slane %v3132, 7
    %v3148 = vsel %vm2983, %v3147, %v3131
    %v3149 = vrot.slane %v3133, 6
    %v3150 = vsel %vm2986, %v3149, %v3148
    %v3151 = vrot.slane %v3134, 5
    %v3152 = vsel %vm2989, %v3151, %v3150
    %v3153 = vrot.slane %v3135, 4
    %v3154 = vsel %vm2992, %v3153, %v3152
    %v3155 = vrot.slane %v3136, 3
    %v3156 = vsel %vm2995, %v3155, %v3154
    %v3157 = vrot.slane %v3137, 2
    %v3158 = vsel %vm2998, %v3157, %v3156
    %v3159 = vrot.slane %v3138, 1
    %v3160 = vsel %vm3001, %v3159, %v3158
    %v3162 = vrot.slane %v3131, 1
    %v3163 = vsel %vm2983, %v3132, %v3162
    %v3164 = vrot.slane %v3133, 7
    %v3165 = vsel %vm2986, %v3164, %v3163
    %v3166 = vrot.slane %v3134, 6
    %v3167 = vsel %vm2989, %v3166, %v3165
    %v3168 = vrot.slane %v3135, 5
    %v3169 = vsel %vm2992, %v3168, %v3167
    %v3170 = vrot.slane %v3136, 4
    %v3171 = vsel %vm2995, %v3170, %v3169
    %v3172 = vrot.slane %v3137, 3
    %v3173 = vsel %vm2998, %v3172, %v3171
    %v3174 = vrot.slane %v3138, 2
    %v3175 = vsel %vm3001, %v3174, %v3173
    %3176 = vrot.lane.b32.xlu0 %v3175, 8
    %v3177 = vpop.permute.xlu0 %3176
    %v3179 = vrot.slane %v3131, 2
    %v3180 = vrot.slane %v3132, 1
    %v3181 = vsel %vm2983, %v3180, %v3179
    %v3182 = vsel %vm2986, %v3133, %v3181
    %v3183 = vrot.slane %v3134, 7
    %v3184 = vsel %vm2989, %v3183, %v3182
    %v3185 = vrot.slane %v3135, 6
    %v3186 = vsel %vm2992, %v3185, %v3184
    %v3187 = vrot.slane %v3136, 5
    %v3188 = vsel %vm2995, %v3187, %v3186
    %v3189 = vrot.slane %v3137, 4
    %v3190 = vsel %vm2998, %v3189, %v3188
    %v3191 = vrot.slane %v3138, 3
    %v3192 = vsel %vm3001, %v3191, %v3190
    %3193 = vrot.lane.b32.xlu0 %v3192, 16
    %v3194 = vpop.permute.xlu0 %3193
    %v3196 = vrot.slane %v3131, 3
    %v3197 = vrot.slane %v3132, 2
    %v3198 = vsel %vm2983, %v3197, %v3196
    %v3199 = vrot.slane %v3133, 1
    %v3200 = vsel %vm2986, %v3199, %v3198
    %v3201 = vsel %vm2989, %v3134, %v3200
    %v3202 = vrot.slane %v3135, 7
    %v3203 = vsel %vm2992, %v3202, %v3201
    %v3204 = vrot.slane %v3136, 6
    %v3205 = vsel %vm2995, %v3204, %v3203
    %v3206 = vrot.slane %v3137, 5
    %v3207 = vsel %vm2998, %v3206, %v3205
    %v3208 = vrot.slane %v3138, 4
    %v3209 = vsel %vm3001, %v3208, %v3207
    %3210 = vrot.lane.b32.xlu0 %v3209, 24
    %v3211 = vpop.permute.xlu0 %3210
    %v3213 = vrot.slane %v3131, 4
    %v3214 = vrot.slane %v3132, 3
    %v3215 = vsel %vm2983, %v3214, %v3213
    %v3216 = vrot.slane %v3133, 2
    %v3217 = vsel %vm2986, %v3216, %v3215
    %v3218 = vrot.slane %v3134, 1
    %v3219 = vsel %vm2989, %v3218, %v3217
    %v3220 = vsel %vm2992, %v3135, %v3219
    %v3221 = vrot.slane %v3136, 7
    %v3222 = vsel %vm2995, %v3221, %v3220
    %v3223 = vrot.slane %v3137, 6
    %v3224 = vsel %vm2998, %v3223, %v3222
    %v3225 = vrot.slane %v3138, 5
    %v3226 = vsel %vm3001, %v3225, %v3224
    %3227 = vrot.lane.b32.xlu0 %v3226, 32
    %v3228 = vpop.permute.xlu0 %3227
    %v3230 = vrot.slane %v3131, 5
    %v3231 = vrot.slane %v3132, 4
    %v3232 = vsel %vm2983, %v3231, %v3230
    %v3233 = vrot.slane %v3133, 3
    %v3234 = vsel %vm2986, %v3233, %v3232
    %v3235 = vrot.slane %v3134, 2
    %v3236 = vsel %vm2989, %v3235, %v3234
    %v3237 = vrot.slane %v3135, 1
    %v3238 = vsel %vm2992, %v3237, %v3236
    %v3239 = vsel %vm2995, %v3136, %v3238
    %v3240 = vrot.slane %v3137, 7
    %v3241 = vsel %vm2998, %v3240, %v3239
    %v3242 = vrot.slane %v3138, 6
    %v3243 = vsel %vm3001, %v3242, %v3241
    %3244 = vrot.lane.b32.xlu0 %v3243, 40
    %v3245 = vpop.permute.xlu0 %3244
    %v3247 = vrot.slane %v3131, 6
    %v3248 = vrot.slane %v3132, 5
    %v3249 = vsel %vm2983, %v3248, %v3247
    %v3250 = vrot.slane %v3133, 4
    %v3251 = vsel %vm2986, %v3250, %v3249
    %v3252 = vrot.slane %v3134, 3
    %v3253 = vsel %vm2989, %v3252, %v3251
    %v3254 = vrot.slane %v3135, 2
    %v3255 = vsel %vm2992, %v3254, %v3253
    %v3256 = vrot.slane %v3136, 1
    %v3257 = vsel %vm2995, %v3256, %v3255
    %v3258 = vsel %vm2998, %v3137, %v3257
    %v3259 = vrot.slane %v3138, 7
    %v3260 = vsel %vm3001, %v3259, %v3258
    %3261 = vrot.lane.b32.xlu0 %v3260, 48
    %v3262 = vpop.permute.xlu0 %3261
    %v3264 = vrot.slane %v3131, 7
    %v3265 = vrot.slane %v3132, 6
    %v3266 = vsel %vm2983, %v3265, %v3264
    %v3267 = vrot.slane %v3133, 5
    %v3268 = vsel %vm2986, %v3267, %v3266
    %v3269 = vrot.slane %v3134, 4
    %v3270 = vsel %vm2989, %v3269, %v3268
    %v3271 = vrot.slane %v3135, 3
    %v3272 = vsel %vm2992, %v3271, %v3270
    %v3273 = vrot.slane %v3136, 2
    %v3274 = vsel %vm2995, %v3273, %v3272
    %v3275 = vrot.slane %v3137, 1
    %v3276 = vsel %vm2998, %v3275, %v3274
    %v3277 = vsel %vm3001, %v3138, %v3276
    %3278 = vrot.lane.b32.xlu0 %v3277, 56
    %v3279 = vpop.permute.xlu0 %3278
    %v3281 = vsel %vm115, %v3160, %v3177
    %v3282 = vsel %vm2321, %v3281, %v3194
    %v3283 = vsel %vm2330, %v3282, %v3211
    %v3284 = vsel %vm45, %v3283, %v3228
    %vm3285 = vcmask 326656
    %v3286 = vsel %vm3285, %v3284, %v3245
    %vm3287 = vcmask 392192
    %v3288 = vsel %vm3287, %v3286, %v3262
    %vm3289 = vcmask 457728
    %v3290 = vsel %vm3289, %v3288, %v3279
    %3291 = vst.msk [vmem:[#allocation4] sm:$0xff] %vm3122, %v3290
    // Predicated region
    $region22: #{tpu_custom_call.1} parent=1 // pred_check
      _
    $region23: #{tpu_custom_call.1} parent=1 // pred_check_branch
      %3293 = sbr.rel (0) target = $region25
    $region24: #{tpu_custom_call.1} parent=1 // pred_region
      %3295 = vsyncadd [#allocation3], 0
      %s3297 = sshll.u32 [#allocation2], 4
      %s3298 = int_to_ptr.vmem [resolvable:$true] %s3297
      %s3299 = sshll.u32 %s5, 4
      %s3300 = int_to_ptr.hbm [resolvable:$true] %s3299
      %3302 = dma.vmem_to_hbm [thread:$0]  %s3298, 256, %s3300, [#allocation3]
    $region25: #{tpu_custom_call.1} parent=1 // pred_fallthru
      _
    // Predicated region
    $region26: #{tpu_custom_call.1} parent=1 // pred_check
      _
    $region27: #{tpu_custom_call.1} parent=1 // pred_check_branch
      %3304 = sbr.rel (0) target = $region29
    $region28: #{tpu_custom_call.1} parent=1 // pred_region
      %3306 = vsyncadd [#allocation5], 0
      %s3308 = sshll.u32 [#allocation4], 4
      %s3309 = int_to_ptr.vmem [resolvable:$true] %s3308
      %s3310 = sshll.u32 %s6, 4
      %s3311 = int_to_ptr.hbm [resolvable:$true] %s3310
      %3313 = dma.vmem_to_hbm [thread:$0]  %s3309, 128, %s3311, [#allocation5]
    $region29: #{tpu_custom_call.1} parent=1 // pred_fallthru
      _
    // Predicated region
    $region30: #{tpu_custom_call.1} parent=1 // pred_check
      _
    $region31: #{tpu_custom_call.1} parent=1 // pred_check_branch
      %3315 = sbr.rel (0) target = $region33
    $region32: #{tpu_custom_call.1} parent=1 // pred_region
      %3317 = dma.done [#allocation3], 256
    $region33: #{tpu_custom_call.1} parent=1 // pred_fallthru
      _
    // Predicated region
    $region34: #{tpu_custom_call.1} parent=1 // pred_check
      _
    $region35: #{tpu_custom_call.1} parent=1 // pred_check_branch
      %3319 = sbr.rel (0) target = $region37
    $region36: #{tpu_custom_call.1} parent=1 // pred_region
      %3321 = dma.done [#allocation5], 128
    $region37: #{tpu_custom_call.1} parent=1 // pred_fallthru
      _
    %3322 = vsyncpa [#allocation3], 1
    %3323 = vsyncpa [#allocation5], 1

</llo_original>
